<compile_context>
chip_gen: v7x
topology: tpu7x:2x2x1
jax: 0.10.0
libtpu: 0.0.40
codegen_flags: <defaults>
</compile_context>

<pallas_src>
import functools

import jax
import jax.numpy as jnp
from jax.experimental import pallas as pl
from jax.experimental.pallas import tpu as pltpu


# ----------------------------------------------------------------------------
# Fused forward kernel (one batch tile per grid step)
# ----------------------------------------------------------------------------
def _nnet_kernel(x_ref, b1m_ref, b2m_ref, w1g_ref, w2f_ref,
                 bias1_ref, bias2_ref, fcb1_ref, fcb2_ref, out_ref,
                 *, tb, compute_dtype):
    """Whole NNet forward for a tile of `tb` images.

    x_ref   : (4, 7, tb, 28)  input rows split by parity: x_ref[r%4, r//4, n, :]
                              holds image row r of sample n.
    b1m_ref : (5, 28, 256)    banded conv1 matrices (one per row offset di);
                              column = sv*128 + p*10 + co  (sv = pool col phase,
                              p = pooled col, co = out channel), zero padded.
    b2m_ref : (5, 128, 256)   banded conv2 matrices; row = p*10 + ci (padded),
                              column = sh*128 + h*20 + co (padded).
    w1g_ref : (4, 128, 50)    fc1 weights regrouped per pooled row g (padded).
    w2f_ref : (50, 10)        fc2 weights, transposed.
    bias*_ref, fcb*_ref       biases (f32), layouts matching the activations.
    out_ref : (tb, 10)        per-sample log-softmax.
    """
    f32 = jnp.float32

    # ---- stage 1: conv1 + bias + 2x2 max-pool + relu -------------------------
    # p1[rho] holds pooled rows a = 2*a2 + rho as a 2-D (6*tb, 128) slab with
    # rows a2*tb + n and columns p*10 + co (zero padded 120..127).
    bias1 = bias1_ref[...]
    p1 = []
    for rho in (0, 1):                          # pooled-row parity (for stage 2)
        pooled = None
        for su in (0, 1):                       # pool sub-row
            acc = None
            for di in range(5):                 # conv row offset
                r = 2 * rho + su + di           # input image row = 4*a2 + r
                slab = x_ref[r % 4, r // 4:r // 4 + 6]        # (6, tb, 28)
                slab = slab.reshape(6 * tb, 28)
                term = jnp.dot(slab, b1m_ref[di],
                               preferred_element_type=f32)    # (6*tb, 256)
                acc = term if acc is None else acc + term
            cand = jnp.maximum(acc[:, :128], acc[:, 128:])    # pool over columns
            pooled = cand if pooled is None else jnp.maximum(pooled, cand)
        p1.append(jnp.maximum(pooled + bias1, 0.0)
                  .astype(compute_dtype))                     # (6*tb, 128)

    # ---- stage 2: conv2 + bias + 2x2 max-pool + relu -------------------------
    pooled2 = None
    for sg in (0, 1):                           # pool sub-row
        acc = None
        for di in range(5):
            t = sg + di                         # needed p1 row = 2*(g + t//2) + t%2
            slab = p1[t % 2][(t // 2) * tb:(t // 2 + 4) * tb, :]   # (4*tb, 128)
            term = jnp.dot(slab, b2m_ref[di],
                           preferred_element_type=f32)             # (4*tb, 256)
            acc = term if acc is None else acc + term
        cand = jnp.maximum(acc[:, :128], acc[:, 128:])
        pooled2 = cand if pooled2 is None else jnp.maximum(pooled2, cand)
    p2 = jnp.maximum(pooled2 + bias2_ref[...], 0.0).astype(compute_dtype)  # (4*tb,128)

    # ---- stage 3: fc1 + relu, fc2 + log_softmax ------------------------------
    h = None
    for g in range(4):                          # pooled spatial row
        term = jnp.dot(p2[g * tb:(g + 1) * tb, :], w1g_ref[g],
                       preferred_element_type=f32)                 # (tb, 50)
        h = term if h is None else h + term
    h = jnp.maximum(h + fcb1_ref[...], 0.0).astype(compute_dtype)

    logits = jnp.dot(h, w2f_ref[...], preferred_element_type=f32) + fcb2_ref[...]
    m = jnp.max(logits, axis=-1, keepdims=True)
    lse = m + jnp.log(jnp.sum(jnp.exp(logits - m), axis=-1, keepdims=True))
    out_ref[...] = (logits - lse).astype(out_ref.dtype)


# ----------------------------------------------------------------------------
# Host-side (wrapper) packing of weights and input
# ----------------------------------------------------------------------------
def _pack_params(params, dtype):
    f32 = jnp.float32
    w1 = params["conv1_w"].astype(f32)      # (10, 1, 5, 5)
    b1 = params["conv1_b"].astype(f32)      # (10,)
    w2 = params["conv2_w"].astype(f32)      # (20, 10, 5, 5)
    b2 = params["conv2_b"].astype(f32)      # (20,)
    fw1 = params["fc1_w"].astype(f32)       # (50, 320)
    fb1 = params["fc1_b"].astype(f32)       # (50,)
    fw2 = params["fc2_w"].astype(f32)       # (10, 50)
    fb2 = params["fc2_b"].astype(f32)       # (10,)

    # Banded conv1 matrices B1[di] so that for an image row x_row (length 28):
    #   (x_row @ B1[di])[sv*128 + p*10 + co]
    #       = sum_dj w1[co, 0, di, dj] * x_row[2*p + sv + dj]
    w1t = jnp.transpose(w1[:, 0], (1, 2, 0))                 # (di, dj, co)
    j = jnp.arange(28)[:, None, None]
    sv = jnp.arange(2)[None, :, None]
    p = jnp.arange(12)[None, None, :]
    dj = j - (2 * p + sv)                                    # (28, 2, 12)
    valid = (dj >= 0) & (dj <= 4)
    b1m = jnp.where(valid[None, :, :, :, None],
                    w1t[:, jnp.clip(dj, 0, 4), :], 0.0)      # (5, 28, 2, 12, 10)
    b1m = b1m.reshape(5, 28, 2, 120)
    b1m = jnp.pad(b1m, ((0, 0), (0, 0), (0, 0), (0, 8))).reshape(5, 28, 256)

    # Banded conv2 matrices B2[di]: rows = p*10 + ci (stage-1 column layout,
    # padded to 128), columns = sh*128 + h*20 + co (padded).
    w2t = jnp.transpose(w2, (2, 3, 1, 0))                    # (di, dj, ci, co)
    pp = jnp.arange(12)[:, None, None]
    sh = jnp.arange(2)[None, :, None]
    hh = jnp.arange(4)[None, None, :]
    dj2 = pp - (2 * hh + sh)                                 # (12, 2, 4)
    valid2 = (dj2 >= 0) & (dj2 <= 4)
    b2m = jnp.where(valid2[None, :, :, :, None, None],
                    w2t[:, jnp.clip(dj2, 0, 4), :, :], 0.0)  # (5, 12, 2, 4, 10, 20)
    b2m = jnp.transpose(b2m, (0, 1, 4, 2, 3, 5))             # (5, 12, 10, 2, 4, 20)
    b2m = b2m.reshape(5, 120, 2, 80)
    b2m = jnp.pad(b2m, ((0, 0), (0, 8), (0, 0), (0, 48))).reshape(5, 128, 256)

    # fc1 weights regrouped by pooled spatial row g; rows = h*20 + co (padded),
    # columns = fc1 output feature.  Matches torch's NCHW .view(-1, 320) order.
    w1g = jnp.transpose(fw1.reshape(50, 20, 4, 4), (2, 3, 1, 0))  # (g, h, co, f)
    w1g = jnp.pad(w1g.reshape(4, 80, 50), ((0, 0), (0, 48), (0, 0)))  # (4,128,50)

    return dict(
        b1m=b1m.astype(dtype),
        b2m=b2m.astype(dtype),
        w1g=w1g.astype(dtype),
        w2f=fw2.T.astype(dtype),                                   # (50, 10)
        bias1=jnp.pad(jnp.tile(b1, 12), (0, 8)).reshape(1, 128),
        bias2=jnp.pad(jnp.tile(b2, 4), (0, 48)).reshape(1, 128),
        fcb1=fb1.reshape(1, 50),
        fcb2=fb2.reshape(1, 10),
    )


def _pack_input(x, block_n, dtype):
    """x: (N, 1, 28, 28) -> (4, 7, Np, 28) with [r%4, r//4, n, :] = x[n, 0, r, :]."""
    n = x.shape[0]
    xs = x[:, 0, :, :].astype(jnp.float32)
    n_pad = -(-n // block_n) * block_n
    if n_pad != n:
        xs = jnp.pad(xs, ((0, n_pad - n), (0, 0), (0, 0)))
    xr = xs.reshape(n_pad, 7, 4, 28).transpose(2, 1, 0, 3)
    return xr.astype(dtype)


# ----------------------------------------------------------------------------
# Public forward
# ----------------------------------------------------------------------------
def nnet_forward(x, params, *, block_n=None, compute_dtype=jnp.bfloat16):
    n = x.shape[0]
    if block_n is None:
        # Adaptive batch tile: large batches use 128 images / grid step (big MXU
        # M dim, amortized step overhead); small batches collapse to one step.
        block_n = min(128, -(-n // 8) * 8)
    block_n = max(8, (block_n // 8) * 8)          # keep sublane-aligned

    w = _pack_params(params, compute_dtype)
    xr = _pack_input(x, block_n, compute_dtype)
    n_pad = xr.shape[2]

    kernel = functools.partial(_nnet_kernel, tb=block_n, compute_dtype=compute_dtype)
    out = pl.pallas_call(
        kernel,
        out_shape=jax.ShapeDtypeStruct((n_pad, 10), jnp.float32),
        grid=(n_pad // block_n,),
        in_specs=[
            pl.BlockSpec((4, 7, block_n, 28), lambda i: (0, 0, i, 0)),  # images
            pl.BlockSpec((5, 28, 256), lambda i: (0, 0, 0)),            # conv1 (banded)
            pl.BlockSpec((5, 128, 256), lambda i: (0, 0, 0)),           # conv2 (banded)
            pl.BlockSpec((4, 128, 50), lambda i: (0, 0, 0)),            # fc1 (per row g)
            pl.BlockSpec((50, 10), lambda i: (0, 0)),                   # fc2^T
            pl.BlockSpec((1, 128), lambda i: (0, 0)),                   # conv1 bias
            pl.BlockSpec((1, 128), lambda i: (0, 0)),                   # conv2 bias
            pl.BlockSpec((1, 50), lambda i: (0, 0)),                    # fc1 bias
            pl.BlockSpec((1, 10), lambda i: (0, 0)),                    # fc2 bias
        ],
        out_specs=pl.BlockSpec((block_n, 10), lambda i: (i, 0)),
        compiler_params=pltpu.CompilerParams(
            dimension_semantics=("parallel",)),
    )(xr, w["b1m"], w["b2m"], w["w1g"], w["w2f"],
      w["bias1"], w["bias2"], w["fcb1"], w["fcb2"])
    return out[:n]


# ----------------------------------------------------------------------------
# Plain-JAX reference (same bf16 rounding points as the kernel) for self-check
# ----------------------------------------------------------------------------
def nnet_reference(x, params, compute_dtype=jnp.bfloat16):
    f32 = jnp.float32
    q = lambda a: a.astype(compute_dtype).astype(f32)
    dn = ("NCHW", "OIHW", "NCHW")

    def pool_relu(t):
        m = jnp.maximum(jnp.maximum(t[:, :, 0::2, 0::2], t[:, :, 0::2, 1::2]),
                        jnp.maximum(t[:, :, 1::2, 0::2], t[:, :, 1::2, 1::2]))
        return jnp.maximum(m, 0.0)

    c1 = jax.lax.conv_general_dilated(q(x), q(params["conv1_w"]), (1, 1), "VALID",
                                      dimension_numbers=dn)
    h1 = pool_relu(c1 + params["conv1_b"].reshape(1, -1, 1, 1))
    c2 = jax.lax.conv_general_dilated(q(h1), q(params["conv2_w"]), (1, 1), "VALID",
                                      dimension_numbers=dn)
    h2 = pool_relu(c2 + params["conv2_b"].reshape(1, -1, 1, 1))
    flat = h2.reshape(h2.shape[0], 320)
    f1 = jnp.maximum(q(flat) @ q(params["fc1_w"]).T + params["fc1_b"], 0.0)
    logits = q(f1) @ q(params["fc2_w"]).T + params["fc2_b"]
    return jax.nn.log_softmax(logits, axis=-1)


# ----------------------------------------------------------------------------
# Deterministic parameter initialization (shapes from NNet.__init__)
# ----------------------------------------------------------------------------
def init_params(key):
    ks = jax.random.split(key, 8)
    return {
        "conv1_w": 0.1 * jax.random.normal(ks[0], (10, 1, 5, 5), jnp.float32),
        "conv1_b": 0.1 * jax.random.normal(ks[1], (10,), jnp.float32),
        "conv2_w": 0.05 * jax.random.normal(ks[2], (20, 10, 5, 5), jnp.float32),
        "conv2_b": 0.05 * jax.random.normal(ks[3], (20,), jnp.float32),
        "fc1_w": 0.05 * jax.random.normal(ks[4], (50, 320), jnp.float32),
        "fc1_b": 0.05 * jax.random.normal(ks[5], (50,), jnp.float32),
        "fc2_w": 0.1 * jax.random.normal(ks[6], (10, 50), jnp.float32),
        "fc2_b": 0.1 * jax.random.normal(ks[7], (10,), jnp.float32),
    }


if __name__ == "__main__":
    key = jax.random.PRNGKey(0)
    k_x, k_p = jax.random.split(key)

    # MNIST-shaped input (fc1's 320 = 20*4*4 input features force 28x28 spatial).
    x = jax.random.normal(k_x, (2, 1, 28, 28), jnp.float32)
    params = init_params(k_p)

    out = jax.block_until_ready(jax.jit(nnet_forward)(x, params))

    assert out.shape == (2, 10), out.shape
    # log-softmax rows must exp-sum to 1.
    assert bool(jnp.allclose(jnp.sum(jnp.exp(out), axis=1), 1.0, atol=1e-3))
    # Match a plain-JAX/XLA reference of the same forward pass.
    ref = nnet_reference(x, params)
    assert bool(jnp.allclose(out, ref, atol=1e-2, rtol=1e-2)), (out, ref)
    print("KERNEL_OK")
</pallas_src>

<mosaic_0001>
module attributes {stable_mosaic.version = 11 : i64} {
  func.func @_nnet_kernel(%arg0: i32, %arg1: memref<4x7x8x28xbf16, #tpu.memory_space<vmem>>, %arg2: memref<5x28x256xbf16, #tpu.memory_space<vmem>>, %arg3: memref<5x128x256xbf16, #tpu.memory_space<vmem>>, %arg4: memref<4x128x50xbf16, #tpu.memory_space<vmem>>, %arg5: memref<50x10xbf16, #tpu.memory_space<vmem>>, %arg6: memref<1x128xf32, #tpu.memory_space<vmem>>, %arg7: memref<1x128xf32, #tpu.memory_space<vmem>>, %arg8: memref<1x50xf32, #tpu.memory_space<vmem>>, %arg9: memref<1x10xf32, #tpu.memory_space<vmem>>, %arg10: memref<8x10xf32, #tpu.memory_space<vmem>>) attributes {dimension_semantics = [#tpu.dimension_semantics<parallel>], iteration_bounds = array<i64: 1>, scalar_prefetch = 0 : i64, scratch_operands = 0 : i64, tpu.core_type = #tpu.core_type<tc>, window_params = [{transform_indices = @transform_0, window_bounds = array<i64: 4, 7, 8, 28>}, {pipeline_mode = #tpu.pipeline_mode<synchronous>, transform_indices = @transform_1, window_bounds = array<i64: 5, 28, 256>}, {pipeline_mode = #tpu.pipeline_mode<synchronous>, transform_indices = @transform_2, window_bounds = array<i64: 5, 128, 256>}, {pipeline_mode = #tpu.pipeline_mode<synchronous>, transform_indices = @transform_3, window_bounds = array<i64: 4, 128, 50>}, {pipeline_mode = #tpu.pipeline_mode<synchronous>, transform_indices = @transform_4, window_bounds = array<i64: 50, 10>}, {pipeline_mode = #tpu.pipeline_mode<synchronous>, transform_indices = @transform_5, window_bounds = array<i64: 1, 128>}, {pipeline_mode = #tpu.pipeline_mode<synchronous>, transform_indices = @transform_6, window_bounds = array<i64: 1, 128>}, {pipeline_mode = #tpu.pipeline_mode<synchronous>, transform_indices = @transform_7, window_bounds = array<i64: 1, 50>}, {pipeline_mode = #tpu.pipeline_mode<synchronous>, transform_indices = @transform_8, window_bounds = array<i64: 1, 10>}, {transform_indices = @transform_9, window_bounds = array<i64: 8, 10>}]} {
    %c0 = arith.constant 0 : index
    %c0_0 = arith.constant 0 : index
    %0 = vector.load %arg6[%c0, %c0_0] : memref<1x128xf32, #tpu.memory_space<vmem>>, vector<1x128xf32>
    %c0_1 = arith.constant 0 : index
    %c0_2 = arith.constant 0 : index
    %c0_3 = arith.constant 0 : index
    %c0_4 = arith.constant 0 : index
    %1 = vector.load %arg1[%c0_1, %c0_2, %c0_3, %c0_4] : memref<4x7x8x28xbf16, #tpu.memory_space<vmem>>, vector<1x6x8x28xbf16>
    %2 = vector.shape_cast %1 : vector<1x6x8x28xbf16> to vector<6x8x28xbf16>
    %3 = vector.shape_cast %2 : vector<6x8x28xbf16> to vector<48x28xbf16>
    %c0_5 = arith.constant 0 : index
    %c0_6 = arith.constant 0 : index
    %c0_7 = arith.constant 0 : index
    %4 = vector.load %arg2[%c0_5, %c0_6, %c0_7] : memref<5x28x256xbf16, #tpu.memory_space<vmem>>, vector<1x28x256xbf16>
    %5 = vector.shape_cast %4 : vector<1x28x256xbf16> to vector<28x256xbf16>
    %cst = arith.constant dense<0.000000e+00> : vector<48x256xf32>
    %6 = tpu.matmul %3, %5, %cst {dimension_numbers = #tpu.dot_dimension_numbers<[1], [0], [0], [1], [0, 0, 1, 1], [], []>} : vector<48x28xbf16>, vector<28x256xbf16>, vector<48x256xf32> -> vector<48x256xf32>
    %c1 = arith.constant 1 : index
    %c0_8 = arith.constant 0 : index
    %c0_9 = arith.constant 0 : index
    %c0_10 = arith.constant 0 : index
    %7 = vector.load %arg1[%c1, %c0_8, %c0_9, %c0_10] : memref<4x7x8x28xbf16, #tpu.memory_space<vmem>>, vector<1x6x8x28xbf16>
    %8 = vector.shape_cast %7 : vector<1x6x8x28xbf16> to vector<6x8x28xbf16>
    %9 = vector.shape_cast %8 : vector<6x8x28xbf16> to vector<48x28xbf16>
    %c1_11 = arith.constant 1 : index
    %c0_12 = arith.constant 0 : index
    %c0_13 = arith.constant 0 : index
    %10 = vector.load %arg2[%c1_11, %c0_12, %c0_13] : memref<5x28x256xbf16, #tpu.memory_space<vmem>>, vector<1x28x256xbf16>
    %11 = vector.shape_cast %10 : vector<1x28x256xbf16> to vector<28x256xbf16>
    %cst_14 = arith.constant dense<0.000000e+00> : vector<48x256xf32>
    %12 = tpu.matmul %9, %11, %cst_14 {dimension_numbers = #tpu.dot_dimension_numbers<[1], [0], [0], [1], [0, 0, 1, 1], [], []>} : vector<48x28xbf16>, vector<28x256xbf16>, vector<48x256xf32> -> vector<48x256xf32>
    %13 = arith.addf %6, %12 : vector<48x256xf32>
    %c2 = arith.constant 2 : index
    %c0_15 = arith.constant 0 : index
    %c0_16 = arith.constant 0 : index
    %c0_17 = arith.constant 0 : index
    %14 = vector.load %arg1[%c2, %c0_15, %c0_16, %c0_17] : memref<4x7x8x28xbf16, #tpu.memory_space<vmem>>, vector<1x6x8x28xbf16>
    %15 = vector.shape_cast %14 : vector<1x6x8x28xbf16> to vector<6x8x28xbf16>
    %16 = vector.shape_cast %15 : vector<6x8x28xbf16> to vector<48x28xbf16>
    %c2_18 = arith.constant 2 : index
    %c0_19 = arith.constant 0 : index
    %c0_20 = arith.constant 0 : index
    %17 = vector.load %arg2[%c2_18, %c0_19, %c0_20] : memref<5x28x256xbf16, #tpu.memory_space<vmem>>, vector<1x28x256xbf16>
    %18 = vector.shape_cast %17 : vector<1x28x256xbf16> to vector<28x256xbf16>
    %cst_21 = arith.constant dense<0.000000e+00> : vector<48x256xf32>
    %19 = tpu.matmul %16, %18, %cst_21 {dimension_numbers = #tpu.dot_dimension_numbers<[1], [0], [0], [1], [0, 0, 1, 1], [], []>} : vector<48x28xbf16>, vector<28x256xbf16>, vector<48x256xf32> -> vector<48x256xf32>
    %20 = arith.addf %13, %19 : vector<48x256xf32>
    %c3 = arith.constant 3 : index
    %c0_22 = arith.constant 0 : index
    %c0_23 = arith.constant 0 : index
    %c0_24 = arith.constant 0 : index
    %21 = vector.load %arg1[%c3, %c0_22, %c0_23, %c0_24] : memref<4x7x8x28xbf16, #tpu.memory_space<vmem>>, vector<1x6x8x28xbf16>
    %22 = vector.shape_cast %21 : vector<1x6x8x28xbf16> to vector<6x8x28xbf16>
    %23 = vector.shape_cast %22 : vector<6x8x28xbf16> to vector<48x28xbf16>
    %c3_25 = arith.constant 3 : index
    %c0_26 = arith.constant 0 : index
    %c0_27 = arith.constant 0 : index
    %24 = vector.load %arg2[%c3_25, %c0_26, %c0_27] : memref<5x28x256xbf16, #tpu.memory_space<vmem>>, vector<1x28x256xbf16>
    %25 = vector.shape_cast %24 : vector<1x28x256xbf16> to vector<28x256xbf16>
    %cst_28 = arith.constant dense<0.000000e+00> : vector<48x256xf32>
    %26 = tpu.matmul %23, %25, %cst_28 {dimension_numbers = #tpu.dot_dimension_numbers<[1], [0], [0], [1], [0, 0, 1, 1], [], []>} : vector<48x28xbf16>, vector<28x256xbf16>, vector<48x256xf32> -> vector<48x256xf32>
    %27 = arith.addf %20, %26 : vector<48x256xf32>
    %c0_29 = arith.constant 0 : index
    %c1_30 = arith.constant 1 : index
    %c0_31 = arith.constant 0 : index
    %c0_32 = arith.constant 0 : index
    %28 = vector.load %arg1[%c0_29, %c1_30, %c0_31, %c0_32] : memref<4x7x8x28xbf16, #tpu.memory_space<vmem>>, vector<1x6x8x28xbf16>
    %29 = vector.shape_cast %28 : vector<1x6x8x28xbf16> to vector<6x8x28xbf16>
    %30 = vector.shape_cast %29 : vector<6x8x28xbf16> to vector<48x28xbf16>
    %c4 = arith.constant 4 : index
    %c0_33 = arith.constant 0 : index
    %c0_34 = arith.constant 0 : index
    %31 = vector.load %arg2[%c4, %c0_33, %c0_34] : memref<5x28x256xbf16, #tpu.memory_space<vmem>>, vector<1x28x256xbf16>
    %32 = vector.shape_cast %31 : vector<1x28x256xbf16> to vector<28x256xbf16>
    %cst_35 = arith.constant dense<0.000000e+00> : vector<48x256xf32>
    %33 = tpu.matmul %30, %32, %cst_35 {dimension_numbers = #tpu.dot_dimension_numbers<[1], [0], [0], [1], [0, 0, 1, 1], [], []>} : vector<48x28xbf16>, vector<28x256xbf16>, vector<48x256xf32> -> vector<48x256xf32>
    %34 = arith.addf %27, %33 : vector<48x256xf32>
    %35 = vector.extract_strided_slice %34 {offsets = [0, 0], sizes = [48, 128], strides = [1, 1]} : vector<48x256xf32> to vector<48x128xf32>
    %36 = vector.extract_strided_slice %34 {offsets = [0, 128], sizes = [48, 128], strides = [1, 1]} : vector<48x256xf32> to vector<48x128xf32>
    %37 = arith.maximumf %35, %36 : vector<48x128xf32>
    %c1_36 = arith.constant 1 : index
    %c0_37 = arith.constant 0 : index
    %c0_38 = arith.constant 0 : index
    %c0_39 = arith.constant 0 : index
    %38 = vector.load %arg1[%c1_36, %c0_37, %c0_38, %c0_39] : memref<4x7x8x28xbf16, #tpu.memory_space<vmem>>, vector<1x6x8x28xbf16>
    %39 = vector.shape_cast %38 : vector<1x6x8x28xbf16> to vector<6x8x28xbf16>
    %40 = vector.shape_cast %39 : vector<6x8x28xbf16> to vector<48x28xbf16>
    %c0_40 = arith.constant 0 : index
    %c0_41 = arith.constant 0 : index
    %c0_42 = arith.constant 0 : index
    %41 = vector.load %arg2[%c0_40, %c0_41, %c0_42] : memref<5x28x256xbf16, #tpu.memory_space<vmem>>, vector<1x28x256xbf16>
    %42 = vector.shape_cast %41 : vector<1x28x256xbf16> to vector<28x256xbf16>
    %cst_43 = arith.constant dense<0.000000e+00> : vector<48x256xf32>
    %43 = tpu.matmul %40, %42, %cst_43 {dimension_numbers = #tpu.dot_dimension_numbers<[1], [0], [0], [1], [0, 0, 1, 1], [], []>} : vector<48x28xbf16>, vector<28x256xbf16>, vector<48x256xf32> -> vector<48x256xf32>
    %c2_44 = arith.constant 2 : index
    %c0_45 = arith.constant 0 : index
    %c0_46 = arith.constant 0 : index
    %c0_47 = arith.constant 0 : index
    %44 = vector.load %arg1[%c2_44, %c0_45, %c0_46, %c0_47] : memref<4x7x8x28xbf16, #tpu.memory_space<vmem>>, vector<1x6x8x28xbf16>
    %45 = vector.shape_cast %44 : vector<1x6x8x28xbf16> to vector<6x8x28xbf16>
    %46 = vector.shape_cast %45 : vector<6x8x28xbf16> to vector<48x28xbf16>
    %c1_48 = arith.constant 1 : index
    %c0_49 = arith.constant 0 : index
    %c0_50 = arith.constant 0 : index
    %47 = vector.load %arg2[%c1_48, %c0_49, %c0_50] : memref<5x28x256xbf16, #tpu.memory_space<vmem>>, vector<1x28x256xbf16>
    %48 = vector.shape_cast %47 : vector<1x28x256xbf16> to vector<28x256xbf16>
    %cst_51 = arith.constant dense<0.000000e+00> : vector<48x256xf32>
    %49 = tpu.matmul %46, %48, %cst_51 {dimension_numbers = #tpu.dot_dimension_numbers<[1], [0], [0], [1], [0, 0, 1, 1], [], []>} : vector<48x28xbf16>, vector<28x256xbf16>, vector<48x256xf32> -> vector<48x256xf32>
    %50 = arith.addf %43, %49 : vector<48x256xf32>
    %c3_52 = arith.constant 3 : index
    %c0_53 = arith.constant 0 : index
    %c0_54 = arith.constant 0 : index
    %c0_55 = arith.constant 0 : index
    %51 = vector.load %arg1[%c3_52, %c0_53, %c0_54, %c0_55] : memref<4x7x8x28xbf16, #tpu.memory_space<vmem>>, vector<1x6x8x28xbf16>
    %52 = vector.shape_cast %51 : vector<1x6x8x28xbf16> to vector<6x8x28xbf16>
    %53 = vector.shape_cast %52 : vector<6x8x28xbf16> to vector<48x28xbf16>
    %c2_56 = arith.constant 2 : index
    %c0_57 = arith.constant 0 : index
    %c0_58 = arith.constant 0 : index
    %54 = vector.load %arg2[%c2_56, %c0_57, %c0_58] : memref<5x28x256xbf16, #tpu.memory_space<vmem>>, vector<1x28x256xbf16>
    %55 = vector.shape_cast %54 : vector<1x28x256xbf16> to vector<28x256xbf16>
    %cst_59 = arith.constant dense<0.000000e+00> : vector<48x256xf32>
    %56 = tpu.matmul %53, %55, %cst_59 {dimension_numbers = #tpu.dot_dimension_numbers<[1], [0], [0], [1], [0, 0, 1, 1], [], []>} : vector<48x28xbf16>, vector<28x256xbf16>, vector<48x256xf32> -> vector<48x256xf32>
    %57 = arith.addf %50, %56 : vector<48x256xf32>
    %c0_60 = arith.constant 0 : index
    %c1_61 = arith.constant 1 : index
    %c0_62 = arith.constant 0 : index
    %c0_63 = arith.constant 0 : index
    %58 = vector.load %arg1[%c0_60, %c1_61, %c0_62, %c0_63] : memref<4x7x8x28xbf16, #tpu.memory_space<vmem>>, vector<1x6x8x28xbf16>
    %59 = vector.shape_cast %58 : vector<1x6x8x28xbf16> to vector<6x8x28xbf16>
    %60 = vector.shape_cast %59 : vector<6x8x28xbf16> to vector<48x28xbf16>
    %c3_64 = arith.constant 3 : index
    %c0_65 = arith.constant 0 : index
    %c0_66 = arith.constant 0 : index
    %61 = vector.load %arg2[%c3_64, %c0_65, %c0_66] : memref<5x28x256xbf16, #tpu.memory_space<vmem>>, vector<1x28x256xbf16>
    %62 = vector.shape_cast %61 : vector<1x28x256xbf16> to vector<28x256xbf16>
    %cst_67 = arith.constant dense<0.000000e+00> : vector<48x256xf32>
    %63 = tpu.matmul %60, %62, %cst_67 {dimension_numbers = #tpu.dot_dimension_numbers<[1], [0], [0], [1], [0, 0, 1, 1], [], []>} : vector<48x28xbf16>, vector<28x256xbf16>, vector<48x256xf32> -> vector<48x256xf32>
    %64 = arith.addf %57, %63 : vector<48x256xf32>
    %c1_68 = arith.constant 1 : index
    %c1_69 = arith.constant 1 : index
    %c0_70 = arith.constant 0 : index
    %c0_71 = arith.constant 0 : index
    %65 = vector.load %arg1[%c1_68, %c1_69, %c0_70, %c0_71] : memref<4x7x8x28xbf16, #tpu.memory_space<vmem>>, vector<1x6x8x28xbf16>
    %66 = vector.shape_cast %65 : vector<1x6x8x28xbf16> to vector<6x8x28xbf16>
    %67 = vector.shape_cast %66 : vector<6x8x28xbf16> to vector<48x28xbf16>
    %c4_72 = arith.constant 4 : index
    %c0_73 = arith.constant 0 : index
    %c0_74 = arith.constant 0 : index
    %68 = vector.load %arg2[%c4_72, %c0_73, %c0_74] : memref<5x28x256xbf16, #tpu.memory_space<vmem>>, vector<1x28x256xbf16>
    %69 = vector.shape_cast %68 : vector<1x28x256xbf16> to vector<28x256xbf16>
    %cst_75 = arith.constant dense<0.000000e+00> : vector<48x256xf32>
    %70 = tpu.matmul %67, %69, %cst_75 {dimension_numbers = #tpu.dot_dimension_numbers<[1], [0], [0], [1], [0, 0, 1, 1], [], []>} : vector<48x28xbf16>, vector<28x256xbf16>, vector<48x256xf32> -> vector<48x256xf32>
    %71 = arith.addf %64, %70 : vector<48x256xf32>
    %72 = vector.extract_strided_slice %71 {offsets = [0, 0], sizes = [48, 128], strides = [1, 1]} : vector<48x256xf32> to vector<48x128xf32>
    %73 = vector.extract_strided_slice %71 {offsets = [0, 128], sizes = [48, 128], strides = [1, 1]} : vector<48x256xf32> to vector<48x128xf32>
    %74 = arith.maximumf %72, %73 : vector<48x128xf32>
    %75 = arith.maximumf %37, %74 : vector<48x128xf32>
    %76 = vector.broadcast %0 : vector<1x128xf32> to vector<48x128xf32>
    %77 = arith.addf %75, %76 : vector<48x128xf32>
    %cst_76 = arith.constant 0.000000e+00 : f32
    %78 = vector.broadcast %cst_76 : f32 to vector<48x128xf32>
    %79 = arith.maximumf %77, %78 : vector<48x128xf32>
    %80 = arith.truncf %79 : vector<48x128xf32> to vector<48x128xbf16>
    %c2_77 = arith.constant 2 : index
    %c0_78 = arith.constant 0 : index
    %c0_79 = arith.constant 0 : index
    %c0_80 = arith.constant 0 : index
    %81 = vector.load %arg1[%c2_77, %c0_78, %c0_79, %c0_80] : memref<4x7x8x28xbf16, #tpu.memory_space<vmem>>, vector<1x6x8x28xbf16>
    %82 = vector.shape_cast %81 : vector<1x6x8x28xbf16> to vector<6x8x28xbf16>
    %83 = vector.shape_cast %82 : vector<6x8x28xbf16> to vector<48x28xbf16>
    %c0_81 = arith.constant 0 : index
    %c0_82 = arith.constant 0 : index
    %c0_83 = arith.constant 0 : index
    %84 = vector.load %arg2[%c0_81, %c0_82, %c0_83] : memref<5x28x256xbf16, #tpu.memory_space<vmem>>, vector<1x28x256xbf16>
    %85 = vector.shape_cast %84 : vector<1x28x256xbf16> to vector<28x256xbf16>
    %cst_84 = arith.constant dense<0.000000e+00> : vector<48x256xf32>
    %86 = tpu.matmul %83, %85, %cst_84 {dimension_numbers = #tpu.dot_dimension_numbers<[1], [0], [0], [1], [0, 0, 1, 1], [], []>} : vector<48x28xbf16>, vector<28x256xbf16>, vector<48x256xf32> -> vector<48x256xf32>
    %c3_85 = arith.constant 3 : index
    %c0_86 = arith.constant 0 : index
    %c0_87 = arith.constant 0 : index
    %c0_88 = arith.constant 0 : index
    %87 = vector.load %arg1[%c3_85, %c0_86, %c0_87, %c0_88] : memref<4x7x8x28xbf16, #tpu.memory_space<vmem>>, vector<1x6x8x28xbf16>
    %88 = vector.shape_cast %87 : vector<1x6x8x28xbf16> to vector<6x8x28xbf16>
    %89 = vector.shape_cast %88 : vector<6x8x28xbf16> to vector<48x28xbf16>
    %c1_89 = arith.constant 1 : index
    %c0_90 = arith.constant 0 : index
    %c0_91 = arith.constant 0 : index
    %90 = vector.load %arg2[%c1_89, %c0_90, %c0_91] : memref<5x28x256xbf16, #tpu.memory_space<vmem>>, vector<1x28x256xbf16>
    %91 = vector.shape_cast %90 : vector<1x28x256xbf16> to vector<28x256xbf16>
    %cst_92 = arith.constant dense<0.000000e+00> : vector<48x256xf32>
    %92 = tpu.matmul %89, %91, %cst_92 {dimension_numbers = #tpu.dot_dimension_numbers<[1], [0], [0], [1], [0, 0, 1, 1], [], []>} : vector<48x28xbf16>, vector<28x256xbf16>, vector<48x256xf32> -> vector<48x256xf32>
    %93 = arith.addf %86, %92 : vector<48x256xf32>
    %c0_93 = arith.constant 0 : index
    %c1_94 = arith.constant 1 : index
    %c0_95 = arith.constant 0 : index
    %c0_96 = arith.constant 0 : index
    %94 = vector.load %arg1[%c0_93, %c1_94, %c0_95, %c0_96] : memref<4x7x8x28xbf16, #tpu.memory_space<vmem>>, vector<1x6x8x28xbf16>
    %95 = vector.shape_cast %94 : vector<1x6x8x28xbf16> to vector<6x8x28xbf16>
    %96 = vector.shape_cast %95 : vector<6x8x28xbf16> to vector<48x28xbf16>
    %c2_97 = arith.constant 2 : index
    %c0_98 = arith.constant 0 : index
    %c0_99 = arith.constant 0 : index
    %97 = vector.load %arg2[%c2_97, %c0_98, %c0_99] : memref<5x28x256xbf16, #tpu.memory_space<vmem>>, vector<1x28x256xbf16>
    %98 = vector.shape_cast %97 : vector<1x28x256xbf16> to vector<28x256xbf16>
    %cst_100 = arith.constant dense<0.000000e+00> : vector<48x256xf32>
    %99 = tpu.matmul %96, %98, %cst_100 {dimension_numbers = #tpu.dot_dimension_numbers<[1], [0], [0], [1], [0, 0, 1, 1], [], []>} : vector<48x28xbf16>, vector<28x256xbf16>, vector<48x256xf32> -> vector<48x256xf32>
    %100 = arith.addf %93, %99 : vector<48x256xf32>
    %c1_101 = arith.constant 1 : index
    %c1_102 = arith.constant 1 : index
    %c0_103 = arith.constant 0 : index
    %c0_104 = arith.constant 0 : index
    %101 = vector.load %arg1[%c1_101, %c1_102, %c0_103, %c0_104] : memref<4x7x8x28xbf16, #tpu.memory_space<vmem>>, vector<1x6x8x28xbf16>
    %102 = vector.shape_cast %101 : vector<1x6x8x28xbf16> to vector<6x8x28xbf16>
    %103 = vector.shape_cast %102 : vector<6x8x28xbf16> to vector<48x28xbf16>
    %c3_105 = arith.constant 3 : index
    %c0_106 = arith.constant 0 : index
    %c0_107 = arith.constant 0 : index
    %104 = vector.load %arg2[%c3_105, %c0_106, %c0_107] : memref<5x28x256xbf16, #tpu.memory_space<vmem>>, vector<1x28x256xbf16>
    %105 = vector.shape_cast %104 : vector<1x28x256xbf16> to vector<28x256xbf16>
    %cst_108 = arith.constant dense<0.000000e+00> : vector<48x256xf32>
    %106 = tpu.matmul %103, %105, %cst_108 {dimension_numbers = #tpu.dot_dimension_numbers<[1], [0], [0], [1], [0, 0, 1, 1], [], []>} : vector<48x28xbf16>, vector<28x256xbf16>, vector<48x256xf32> -> vector<48x256xf32>
    %107 = arith.addf %100, %106 : vector<48x256xf32>
    %c2_109 = arith.constant 2 : index
    %c1_110 = arith.constant 1 : index
    %c0_111 = arith.constant 0 : index
    %c0_112 = arith.constant 0 : index
    %108 = vector.load %arg1[%c2_109, %c1_110, %c0_111, %c0_112] : memref<4x7x8x28xbf16, #tpu.memory_space<vmem>>, vector<1x6x8x28xbf16>
    %109 = vector.shape_cast %108 : vector<1x6x8x28xbf16> to vector<6x8x28xbf16>
    %110 = vector.shape_cast %109 : vector<6x8x28xbf16> to vector<48x28xbf16>
    %c4_113 = arith.constant 4 : index
    %c0_114 = arith.constant 0 : index
    %c0_115 = arith.constant 0 : index
    %111 = vector.load %arg2[%c4_113, %c0_114, %c0_115] : memref<5x28x256xbf16, #tpu.memory_space<vmem>>, vector<1x28x256xbf16>
    %112 = vector.shape_cast %111 : vector<1x28x256xbf16> to vector<28x256xbf16>
    %cst_116 = arith.constant dense<0.000000e+00> : vector<48x256xf32>
    %113 = tpu.matmul %110, %112, %cst_116 {dimension_numbers = #tpu.dot_dimension_numbers<[1], [0], [0], [1], [0, 0, 1, 1], [], []>} : vector<48x28xbf16>, vector<28x256xbf16>, vector<48x256xf32> -> vector<48x256xf32>
    %114 = arith.addf %107, %113 : vector<48x256xf32>
    %115 = vector.extract_strided_slice %114 {offsets = [0, 0], sizes = [48, 128], strides = [1, 1]} : vector<48x256xf32> to vector<48x128xf32>
    %116 = vector.extract_strided_slice %114 {offsets = [0, 128], sizes = [48, 128], strides = [1, 1]} : vector<48x256xf32> to vector<48x128xf32>
    %117 = arith.maximumf %115, %116 : vector<48x128xf32>
    %c3_117 = arith.constant 3 : index
    %c0_118 = arith.constant 0 : index
    %c0_119 = arith.constant 0 : index
    %c0_120 = arith.constant 0 : index
    %118 = vector.load %arg1[%c3_117, %c0_118, %c0_119, %c0_120] : memref<4x7x8x28xbf16, #tpu.memory_space<vmem>>, vector<1x6x8x28xbf16>
    %119 = vector.shape_cast %118 : vector<1x6x8x28xbf16> to vector<6x8x28xbf16>
    %120 = vector.shape_cast %119 : vector<6x8x28xbf16> to vector<48x28xbf16>
    %c0_121 = arith.constant 0 : index
    %c0_122 = arith.constant 0 : index
    %c0_123 = arith.constant 0 : index
    %121 = vector.load %arg2[%c0_121, %c0_122, %c0_123] : memref<5x28x256xbf16, #tpu.memory_space<vmem>>, vector<1x28x256xbf16>
    %122 = vector.shape_cast %121 : vector<1x28x256xbf16> to vector<28x256xbf16>
    %cst_124 = arith.constant dense<0.000000e+00> : vector<48x256xf32>
    %123 = tpu.matmul %120, %122, %cst_124 {dimension_numbers = #tpu.dot_dimension_numbers<[1], [0], [0], [1], [0, 0, 1, 1], [], []>} : vector<48x28xbf16>, vector<28x256xbf16>, vector<48x256xf32> -> vector<48x256xf32>
    %c0_125 = arith.constant 0 : index
    %c1_126 = arith.constant 1 : index
    %c0_127 = arith.constant 0 : index
    %c0_128 = arith.constant 0 : index
    %124 = vector.load %arg1[%c0_125, %c1_126, %c0_127, %c0_128] : memref<4x7x8x28xbf16, #tpu.memory_space<vmem>>, vector<1x6x8x28xbf16>
    %125 = vector.shape_cast %124 : vector<1x6x8x28xbf16> to vector<6x8x28xbf16>
    %126 = vector.shape_cast %125 : vector<6x8x28xbf16> to vector<48x28xbf16>
    %c1_129 = arith.constant 1 : index
    %c0_130 = arith.constant 0 : index
    %c0_131 = arith.constant 0 : index
    %127 = vector.load %arg2[%c1_129, %c0_130, %c0_131] : memref<5x28x256xbf16, #tpu.memory_space<vmem>>, vector<1x28x256xbf16>
    %128 = vector.shape_cast %127 : vector<1x28x256xbf16> to vector<28x256xbf16>
    %cst_132 = arith.constant dense<0.000000e+00> : vector<48x256xf32>
    %129 = tpu.matmul %126, %128, %cst_132 {dimension_numbers = #tpu.dot_dimension_numbers<[1], [0], [0], [1], [0, 0, 1, 1], [], []>} : vector<48x28xbf16>, vector<28x256xbf16>, vector<48x256xf32> -> vector<48x256xf32>
    %130 = arith.addf %123, %129 : vector<48x256xf32>
    %c1_133 = arith.constant 1 : index
    %c1_134 = arith.constant 1 : index
    %c0_135 = arith.constant 0 : index
    %c0_136 = arith.constant 0 : index
    %131 = vector.load %arg1[%c1_133, %c1_134, %c0_135, %c0_136] : memref<4x7x8x28xbf16, #tpu.memory_space<vmem>>, vector<1x6x8x28xbf16>
    %132 = vector.shape_cast %131 : vector<1x6x8x28xbf16> to vector<6x8x28xbf16>
    %133 = vector.shape_cast %132 : vector<6x8x28xbf16> to vector<48x28xbf16>
    %c2_137 = arith.constant 2 : index
    %c0_138 = arith.constant 0 : index
    %c0_139 = arith.constant 0 : index
    %134 = vector.load %arg2[%c2_137, %c0_138, %c0_139] : memref<5x28x256xbf16, #tpu.memory_space<vmem>>, vector<1x28x256xbf16>
    %135 = vector.shape_cast %134 : vector<1x28x256xbf16> to vector<28x256xbf16>
    %cst_140 = arith.constant dense<0.000000e+00> : vector<48x256xf32>
    %136 = tpu.matmul %133, %135, %cst_140 {dimension_numbers = #tpu.dot_dimension_numbers<[1], [0], [0], [1], [0, 0, 1, 1], [], []>} : vector<48x28xbf16>, vector<28x256xbf16>, vector<48x256xf32> -> vector<48x256xf32>
    %137 = arith.addf %130, %136 : vector<48x256xf32>
    %c2_141 = arith.constant 2 : index
    %c1_142 = arith.constant 1 : index
    %c0_143 = arith.constant 0 : index
    %c0_144 = arith.constant 0 : index
    %138 = vector.load %arg1[%c2_141, %c1_142, %c0_143, %c0_144] : memref<4x7x8x28xbf16, #tpu.memory_space<vmem>>, vector<1x6x8x28xbf16>
    %139 = vector.shape_cast %138 : vector<1x6x8x28xbf16> to vector<6x8x28xbf16>
    %140 = vector.shape_cast %139 : vector<6x8x28xbf16> to vector<48x28xbf16>
    %c3_145 = arith.constant 3 : index
    %c0_146 = arith.constant 0 : index
    %c0_147 = arith.constant 0 : index
    %141 = vector.load %arg2[%c3_145, %c0_146, %c0_147] : memref<5x28x256xbf16, #tpu.memory_space<vmem>>, vector<1x28x256xbf16>
    %142 = vector.shape_cast %141 : vector<1x28x256xbf16> to vector<28x256xbf16>
    %cst_148 = arith.constant dense<0.000000e+00> : vector<48x256xf32>
    %143 = tpu.matmul %140, %142, %cst_148 {dimension_numbers = #tpu.dot_dimension_numbers<[1], [0], [0], [1], [0, 0, 1, 1], [], []>} : vector<48x28xbf16>, vector<28x256xbf16>, vector<48x256xf32> -> vector<48x256xf32>
    %144 = arith.addf %137, %143 : vector<48x256xf32>
    %c3_149 = arith.constant 3 : index
    %c1_150 = arith.constant 1 : index
    %c0_151 = arith.constant 0 : index
    %c0_152 = arith.constant 0 : index
    %145 = vector.load %arg1[%c3_149, %c1_150, %c0_151, %c0_152] : memref<4x7x8x28xbf16, #tpu.memory_space<vmem>>, vector<1x6x8x28xbf16>
    %146 = vector.shape_cast %145 : vector<1x6x8x28xbf16> to vector<6x8x28xbf16>
    %147 = vector.shape_cast %146 : vector<6x8x28xbf16> to vector<48x28xbf16>
    %c4_153 = arith.constant 4 : index
    %c0_154 = arith.constant 0 : index
    %c0_155 = arith.constant 0 : index
    %148 = vector.load %arg2[%c4_153, %c0_154, %c0_155] : memref<5x28x256xbf16, #tpu.memory_space<vmem>>, vector<1x28x256xbf16>
    %149 = vector.shape_cast %148 : vector<1x28x256xbf16> to vector<28x256xbf16>
    %cst_156 = arith.constant dense<0.000000e+00> : vector<48x256xf32>
    %150 = tpu.matmul %147, %149, %cst_156 {dimension_numbers = #tpu.dot_dimension_numbers<[1], [0], [0], [1], [0, 0, 1, 1], [], []>} : vector<48x28xbf16>, vector<28x256xbf16>, vector<48x256xf32> -> vector<48x256xf32>
    %151 = arith.addf %144, %150 : vector<48x256xf32>
    %152 = vector.extract_strided_slice %151 {offsets = [0, 0], sizes = [48, 128], strides = [1, 1]} : vector<48x256xf32> to vector<48x128xf32>
    %153 = vector.extract_strided_slice %151 {offsets = [0, 128], sizes = [48, 128], strides = [1, 1]} : vector<48x256xf32> to vector<48x128xf32>
    %154 = arith.maximumf %152, %153 : vector<48x128xf32>
    %155 = arith.maximumf %117, %154 : vector<48x128xf32>
    %156 = vector.broadcast %0 : vector<1x128xf32> to vector<48x128xf32>
    %157 = arith.addf %155, %156 : vector<48x128xf32>
    %cst_157 = arith.constant 0.000000e+00 : f32
    %158 = vector.broadcast %cst_157 : f32 to vector<48x128xf32>
    %159 = arith.maximumf %157, %158 : vector<48x128xf32>
    %160 = arith.truncf %159 : vector<48x128xf32> to vector<48x128xbf16>
    %161 = vector.extract_strided_slice %80 {offsets = [0, 0], sizes = [32, 128], strides = [1, 1]} : vector<48x128xbf16> to vector<32x128xbf16>
    %c0_158 = arith.constant 0 : index
    %c0_159 = arith.constant 0 : index
    %c0_160 = arith.constant 0 : index
    %162 = vector.load %arg3[%c0_158, %c0_159, %c0_160] : memref<5x128x256xbf16, #tpu.memory_space<vmem>>, vector<1x128x256xbf16>
    %163 = vector.shape_cast %162 : vector<1x128x256xbf16> to vector<128x256xbf16>
    %cst_161 = arith.constant dense<0.000000e+00> : vector<32x256xf32>
    %164 = tpu.matmul %161, %163, %cst_161 {dimension_numbers = #tpu.dot_dimension_numbers<[1], [0], [0], [1], [0, 0, 1, 1], [], []>} : vector<32x128xbf16>, vector<128x256xbf16>, vector<32x256xf32> -> vector<32x256xf32>
    %165 = vector.extract_strided_slice %160 {offsets = [0, 0], sizes = [32, 128], strides = [1, 1]} : vector<48x128xbf16> to vector<32x128xbf16>
    %c1_162 = arith.constant 1 : index
    %c0_163 = arith.constant 0 : index
    %c0_164 = arith.constant 0 : index
    %166 = vector.load %arg3[%c1_162, %c0_163, %c0_164] : memref<5x128x256xbf16, #tpu.memory_space<vmem>>, vector<1x128x256xbf16>
    %167 = vector.shape_cast %166 : vector<1x128x256xbf16> to vector<128x256xbf16>
    %cst_165 = arith.constant dense<0.000000e+00> : vector<32x256xf32>
    %168 = tpu.matmul %165, %167, %cst_165 {dimension_numbers = #tpu.dot_dimension_numbers<[1], [0], [0], [1], [0, 0, 1, 1], [], []>} : vector<32x128xbf16>, vector<128x256xbf16>, vector<32x256xf32> -> vector<32x256xf32>
    %169 = arith.addf %164, %168 : vector<32x256xf32>
    %170 = vector.extract_strided_slice %80 {offsets = [8, 0], sizes = [32, 128], strides = [1, 1]} : vector<48x128xbf16> to vector<32x128xbf16>
    %c2_166 = arith.constant 2 : index
    %c0_167 = arith.constant 0 : index
    %c0_168 = arith.constant 0 : index
    %171 = vector.load %arg3[%c2_166, %c0_167, %c0_168] : memref<5x128x256xbf16, #tpu.memory_space<vmem>>, vector<1x128x256xbf16>
    %172 = vector.shape_cast %171 : vector<1x128x256xbf16> to vector<128x256xbf16>
    %cst_169 = arith.constant dense<0.000000e+00> : vector<32x256xf32>
    %173 = tpu.matmul %170, %172, %cst_169 {dimension_numbers = #tpu.dot_dimension_numbers<[1], [0], [0], [1], [0, 0, 1, 1], [], []>} : vector<32x128xbf16>, vector<128x256xbf16>, vector<32x256xf32> -> vector<32x256xf32>
    %174 = arith.addf %169, %173 : vector<32x256xf32>
    %175 = vector.extract_strided_slice %160 {offsets = [8, 0], sizes = [32, 128], strides = [1, 1]} : vector<48x128xbf16> to vector<32x128xbf16>
    %c3_170 = arith.constant 3 : index
    %c0_171 = arith.constant 0 : index
    %c0_172 = arith.constant 0 : index
    %176 = vector.load %arg3[%c3_170, %c0_171, %c0_172] : memref<5x128x256xbf16, #tpu.memory_space<vmem>>, vector<1x128x256xbf16>
    %177 = vector.shape_cast %176 : vector<1x128x256xbf16> to vector<128x256xbf16>
    %cst_173 = arith.constant dense<0.000000e+00> : vector<32x256xf32>
    %178 = tpu.matmul %175, %177, %cst_173 {dimension_numbers = #tpu.dot_dimension_numbers<[1], [0], [0], [1], [0, 0, 1, 1], [], []>} : vector<32x128xbf16>, vector<128x256xbf16>, vector<32x256xf32> -> vector<32x256xf32>
    %179 = arith.addf %174, %178 : vector<32x256xf32>
    %180 = vector.extract_strided_slice %80 {offsets = [16, 0], sizes = [32, 128], strides = [1, 1]} : vector<48x128xbf16> to vector<32x128xbf16>
    %c4_174 = arith.constant 4 : index
    %c0_175 = arith.constant 0 : index
    %c0_176 = arith.constant 0 : index
    %181 = vector.load %arg3[%c4_174, %c0_175, %c0_176] : memref<5x128x256xbf16, #tpu.memory_space<vmem>>, vector<1x128x256xbf16>
    %182 = vector.shape_cast %181 : vector<1x128x256xbf16> to vector<128x256xbf16>
    %cst_177 = arith.constant dense<0.000000e+00> : vector<32x256xf32>
    %183 = tpu.matmul %180, %182, %cst_177 {dimension_numbers = #tpu.dot_dimension_numbers<[1], [0], [0], [1], [0, 0, 1, 1], [], []>} : vector<32x128xbf16>, vector<128x256xbf16>, vector<32x256xf32> -> vector<32x256xf32>
    %184 = arith.addf %179, %183 : vector<32x256xf32>
    %185 = vector.extract_strided_slice %184 {offsets = [0, 0], sizes = [32, 128], strides = [1, 1]} : vector<32x256xf32> to vector<32x128xf32>
    %186 = vector.extract_strided_slice %184 {offsets = [0, 128], sizes = [32, 128], strides = [1, 1]} : vector<32x256xf32> to vector<32x128xf32>
    %187 = arith.maximumf %185, %186 : vector<32x128xf32>
    %188 = vector.extract_strided_slice %160 {offsets = [0, 0], sizes = [32, 128], strides = [1, 1]} : vector<48x128xbf16> to vector<32x128xbf16>
    %c0_178 = arith.constant 0 : index
    %c0_179 = arith.constant 0 : index
    %c0_180 = arith.constant 0 : index
    %189 = vector.load %arg3[%c0_178, %c0_179, %c0_180] : memref<5x128x256xbf16, #tpu.memory_space<vmem>>, vector<1x128x256xbf16>
    %190 = vector.shape_cast %189 : vector<1x128x256xbf16> to vector<128x256xbf16>
    %cst_181 = arith.constant dense<0.000000e+00> : vector<32x256xf32>
    %191 = tpu.matmul %188, %190, %cst_181 {dimension_numbers = #tpu.dot_dimension_numbers<[1], [0], [0], [1], [0, 0, 1, 1], [], []>} : vector<32x128xbf16>, vector<128x256xbf16>, vector<32x256xf32> -> vector<32x256xf32>
    %192 = vector.extract_strided_slice %80 {offsets = [8, 0], sizes = [32, 128], strides = [1, 1]} : vector<48x128xbf16> to vector<32x128xbf16>
    %c1_182 = arith.constant 1 : index
    %c0_183 = arith.constant 0 : index
    %c0_184 = arith.constant 0 : index
    %193 = vector.load %arg3[%c1_182, %c0_183, %c0_184] : memref<5x128x256xbf16, #tpu.memory_space<vmem>>, vector<1x128x256xbf16>
    %194 = vector.shape_cast %193 : vector<1x128x256xbf16> to vector<128x256xbf16>
    %cst_185 = arith.constant dense<0.000000e+00> : vector<32x256xf32>
    %195 = tpu.matmul %192, %194, %cst_185 {dimension_numbers = #tpu.dot_dimension_numbers<[1], [0], [0], [1], [0, 0, 1, 1], [], []>} : vector<32x128xbf16>, vector<128x256xbf16>, vector<32x256xf32> -> vector<32x256xf32>
    %196 = arith.addf %191, %195 : vector<32x256xf32>
    %197 = vector.extract_strided_slice %160 {offsets = [8, 0], sizes = [32, 128], strides = [1, 1]} : vector<48x128xbf16> to vector<32x128xbf16>
    %c2_186 = arith.constant 2 : index
    %c0_187 = arith.constant 0 : index
    %c0_188 = arith.constant 0 : index
    %198 = vector.load %arg3[%c2_186, %c0_187, %c0_188] : memref<5x128x256xbf16, #tpu.memory_space<vmem>>, vector<1x128x256xbf16>
    %199 = vector.shape_cast %198 : vector<1x128x256xbf16> to vector<128x256xbf16>
    %cst_189 = arith.constant dense<0.000000e+00> : vector<32x256xf32>
    %200 = tpu.matmul %197, %199, %cst_189 {dimension_numbers = #tpu.dot_dimension_numbers<[1], [0], [0], [1], [0, 0, 1, 1], [], []>} : vector<32x128xbf16>, vector<128x256xbf16>, vector<32x256xf32> -> vector<32x256xf32>
    %201 = arith.addf %196, %200 : vector<32x256xf32>
    %202 = vector.extract_strided_slice %80 {offsets = [16, 0], sizes = [32, 128], strides = [1, 1]} : vector<48x128xbf16> to vector<32x128xbf16>
    %c3_190 = arith.constant 3 : index
    %c0_191 = arith.constant 0 : index
    %c0_192 = arith.constant 0 : index
    %203 = vector.load %arg3[%c3_190, %c0_191, %c0_192] : memref<5x128x256xbf16, #tpu.memory_space<vmem>>, vector<1x128x256xbf16>
    %204 = vector.shape_cast %203 : vector<1x128x256xbf16> to vector<128x256xbf16>
    %cst_193 = arith.constant dense<0.000000e+00> : vector<32x256xf32>
    %205 = tpu.matmul %202, %204, %cst_193 {dimension_numbers = #tpu.dot_dimension_numbers<[1], [0], [0], [1], [0, 0, 1, 1], [], []>} : vector<32x128xbf16>, vector<128x256xbf16>, vector<32x256xf32> -> vector<32x256xf32>
    %206 = arith.addf %201, %205 : vector<32x256xf32>
    %207 = vector.extract_strided_slice %160 {offsets = [16, 0], sizes = [32, 128], strides = [1, 1]} : vector<48x128xbf16> to vector<32x128xbf16>
    %c4_194 = arith.constant 4 : index
    %c0_195 = arith.constant 0 : index
    %c0_196 = arith.constant 0 : index
    %208 = vector.load %arg3[%c4_194, %c0_195, %c0_196] : memref<5x128x256xbf16, #tpu.memory_space<vmem>>, vector<1x128x256xbf16>
    %209 = vector.shape_cast %208 : vector<1x128x256xbf16> to vector<128x256xbf16>
    %cst_197 = arith.constant dense<0.000000e+00> : vector<32x256xf32>
    %210 = tpu.matmul %207, %209, %cst_197 {dimension_numbers = #tpu.dot_dimension_numbers<[1], [0], [0], [1], [0, 0, 1, 1], [], []>} : vector<32x128xbf16>, vector<128x256xbf16>, vector<32x256xf32> -> vector<32x256xf32>
    %211 = arith.addf %206, %210 : vector<32x256xf32>
    %212 = vector.extract_strided_slice %211 {offsets = [0, 0], sizes = [32, 128], strides = [1, 1]} : vector<32x256xf32> to vector<32x128xf32>
    %213 = vector.extract_strided_slice %211 {offsets = [0, 128], sizes = [32, 128], strides = [1, 1]} : vector<32x256xf32> to vector<32x128xf32>
    %214 = arith.maximumf %212, %213 : vector<32x128xf32>
    %215 = arith.maximumf %187, %214 : vector<32x128xf32>
    %c0_198 = arith.constant 0 : index
    %c0_199 = arith.constant 0 : index
    %216 = vector.load %arg7[%c0_198, %c0_199] : memref<1x128xf32, #tpu.memory_space<vmem>>, vector<1x128xf32>
    %217 = vector.broadcast %216 : vector<1x128xf32> to vector<32x128xf32>
    %218 = arith.addf %215, %217 : vector<32x128xf32>
    %cst_200 = arith.constant 0.000000e+00 : f32
    %219 = vector.broadcast %cst_200 : f32 to vector<32x128xf32>
    %220 = arith.maximumf %218, %219 : vector<32x128xf32>
    %221 = arith.truncf %220 : vector<32x128xf32> to vector<32x128xbf16>
    %222 = vector.extract_strided_slice %221 {offsets = [0, 0], sizes = [8, 128], strides = [1, 1]} : vector<32x128xbf16> to vector<8x128xbf16>
    %c0_201 = arith.constant 0 : index
    %c0_202 = arith.constant 0 : index
    %c0_203 = arith.constant 0 : index
    %223 = vector.load %arg4[%c0_201, %c0_202, %c0_203] : memref<4x128x50xbf16, #tpu.memory_space<vmem>>, vector<1x128x50xbf16>
    %224 = vector.shape_cast %223 : vector<1x128x50xbf16> to vector<128x50xbf16>
    %cst_204 = arith.constant dense<0.000000e+00> : vector<8x50xf32>
    %225 = tpu.matmul %222, %224, %cst_204 {dimension_numbers = #tpu.dot_dimension_numbers<[1], [0], [0], [1], [0, 0, 1, 1], [], []>} : vector<8x128xbf16>, vector<128x50xbf16>, vector<8x50xf32> -> vector<8x50xf32>
    %226 = vector.extract_strided_slice %221 {offsets = [8, 0], sizes = [8, 128], strides = [1, 1]} : vector<32x128xbf16> to vector<8x128xbf16>
    %c1_205 = arith.constant 1 : index
    %c0_206 = arith.constant 0 : index
    %c0_207 = arith.constant 0 : index
    %227 = vector.load %arg4[%c1_205, %c0_206, %c0_207] : memref<4x128x50xbf16, #tpu.memory_space<vmem>>, vector<1x128x50xbf16>
    %228 = vector.shape_cast %227 : vector<1x128x50xbf16> to vector<128x50xbf16>
    %cst_208 = arith.constant dense<0.000000e+00> : vector<8x50xf32>
    %229 = tpu.matmul %226, %228, %cst_208 {dimension_numbers = #tpu.dot_dimension_numbers<[1], [0], [0], [1], [0, 0, 1, 1], [], []>} : vector<8x128xbf16>, vector<128x50xbf16>, vector<8x50xf32> -> vector<8x50xf32>
    %230 = arith.addf %225, %229 : vector<8x50xf32>
    %231 = vector.extract_strided_slice %221 {offsets = [16, 0], sizes = [8, 128], strides = [1, 1]} : vector<32x128xbf16> to vector<8x128xbf16>
    %c2_209 = arith.constant 2 : index
    %c0_210 = arith.constant 0 : index
    %c0_211 = arith.constant 0 : index
    %232 = vector.load %arg4[%c2_209, %c0_210, %c0_211] : memref<4x128x50xbf16, #tpu.memory_space<vmem>>, vector<1x128x50xbf16>
    %233 = vector.shape_cast %232 : vector<1x128x50xbf16> to vector<128x50xbf16>
    %cst_212 = arith.constant dense<0.000000e+00> : vector<8x50xf32>
    %234 = tpu.matmul %231, %233, %cst_212 {dimension_numbers = #tpu.dot_dimension_numbers<[1], [0], [0], [1], [0, 0, 1, 1], [], []>} : vector<8x128xbf16>, vector<128x50xbf16>, vector<8x50xf32> -> vector<8x50xf32>
    %235 = arith.addf %230, %234 : vector<8x50xf32>
    %236 = vector.extract_strided_slice %221 {offsets = [24, 0], sizes = [8, 128], strides = [1, 1]} : vector<32x128xbf16> to vector<8x128xbf16>
    %c3_213 = arith.constant 3 : index
    %c0_214 = arith.constant 0 : index
    %c0_215 = arith.constant 0 : index
    %237 = vector.load %arg4[%c3_213, %c0_214, %c0_215] : memref<4x128x50xbf16, #tpu.memory_space<vmem>>, vector<1x128x50xbf16>
    %238 = vector.shape_cast %237 : vector<1x128x50xbf16> to vector<128x50xbf16>
    %cst_216 = arith.constant dense<0.000000e+00> : vector<8x50xf32>
    %239 = tpu.matmul %236, %238, %cst_216 {dimension_numbers = #tpu.dot_dimension_numbers<[1], [0], [0], [1], [0, 0, 1, 1], [], []>} : vector<8x128xbf16>, vector<128x50xbf16>, vector<8x50xf32> -> vector<8x50xf32>
    %240 = arith.addf %235, %239 : vector<8x50xf32>
    %c0_217 = arith.constant 0 : index
    %c0_218 = arith.constant 0 : index
    %241 = vector.load %arg8[%c0_217, %c0_218] : memref<1x50xf32, #tpu.memory_space<vmem>>, vector<1x50xf32>
    %242 = vector.broadcast %241 : vector<1x50xf32> to vector<8x50xf32>
    %243 = arith.addf %240, %242 : vector<8x50xf32>
    %cst_219 = arith.constant 0.000000e+00 : f32
    %244 = vector.broadcast %cst_219 : f32 to vector<8x50xf32>
    %245 = arith.maximumf %243, %244 : vector<8x50xf32>
    %246 = arith.truncf %245 : vector<8x50xf32> to vector<8x50xbf16>
    %c0_220 = arith.constant 0 : index
    %c0_221 = arith.constant 0 : index
    %247 = vector.load %arg5[%c0_220, %c0_221] : memref<50x10xbf16, #tpu.memory_space<vmem>>, vector<50x10xbf16>
    %cst_222 = arith.constant dense<0.000000e+00> : vector<8x10xf32>
    %248 = tpu.matmul %246, %247, %cst_222 {dimension_numbers = #tpu.dot_dimension_numbers<[1], [0], [0], [1], [0, 0, 1, 1], [], []>} : vector<8x50xbf16>, vector<50x10xbf16>, vector<8x10xf32> -> vector<8x10xf32>
    %c0_223 = arith.constant 0 : index
    %c0_224 = arith.constant 0 : index
    %249 = vector.load %arg9[%c0_223, %c0_224] : memref<1x10xf32, #tpu.memory_space<vmem>>, vector<1x10xf32>
    %250 = vector.broadcast %249 : vector<1x10xf32> to vector<8x10xf32>
    %251 = arith.addf %248, %250 : vector<8x10xf32>
    %cst_225 = arith.constant dense<0xFF800000> : vector<8xf32>
    %252 = vector.multi_reduction <maximumf>, %251, %cst_225 [1] : vector<8x10xf32> to vector<8xf32>
    %253 = vector.shape_cast %252 : vector<8xf32> to vector<8x1xf32>
    %254 = vector.broadcast %253 : vector<8x1xf32> to vector<8x10xf32>
    %255 = arith.subf %251, %254 : vector<8x10xf32>
    %256 = math.exp %255 : vector<8x10xf32>
    %cst_226 = arith.constant dense<0.000000e+00> : vector<8xf32>
    %257 = vector.multi_reduction <add>, %256, %cst_226 [1] : vector<8x10xf32> to vector<8xf32>
    %258 = vector.shape_cast %257 : vector<8xf32> to vector<8x1xf32>
    %259 = math.log %258 : vector<8x1xf32>
    %260 = arith.addf %253, %259 : vector<8x1xf32>
    %261 = vector.broadcast %260 : vector<8x1xf32> to vector<8x10xf32>
    %262 = arith.subf %251, %261 : vector<8x10xf32>
    %c0_227 = arith.constant 0 : index
    %c0_228 = arith.constant 0 : index
    %263 = vector.load %arg10[%c0_227, %c0_228] : memref<8x10xf32, #tpu.memory_space<vmem>>, vector<8x10xf32>
    tpu.vector_store %arg10[%c0_227, %c0_228], %262 {strides = array<i32>} : memref<8x10xf32, #tpu.memory_space<vmem>>, vector<8x10xf32>,
    return
  }
  func.func @transform_0(%arg0: i32) -> (i32, i32, i32, i32) {
    %c0_i32 = arith.constant 0 : i32
    %c0_i32_0 = arith.constant 0 : i32
    %c0_i32_1 = arith.constant 0 : i32
    %c0_i32_2 = arith.constant 0 : i32
    return %c0_i32, %c0_i32_0, %arg0, %c0_i32_1 : i32, i32, i32, i32
  }
  func.func @transform_1(%arg0: i32) -> (i32, i32, i32) {
    %c0_i32 = arith.constant 0 : i32
    %c0_i32_0 = arith.constant 0 : i32
    %c0_i32_1 = arith.constant 0 : i32
    %c0_i32_2 = arith.constant 0 : i32
    return %c0_i32, %c0_i32_0, %c0_i32_1 : i32, i32, i32
  }
  func.func @transform_2(%arg0: i32) -> (i32, i32, i32) {
    %c0_i32 = arith.constant 0 : i32
    %c0_i32_0 = arith.constant 0 : i32
    %c0_i32_1 = arith.constant 0 : i32
    %c0_i32_2 = arith.constant 0 : i32
    return %c0_i32, %c0_i32_0, %c0_i32_1 : i32, i32, i32
  }
  func.func @transform_3(%arg0: i32) -> (i32, i32, i32) {
    %c0_i32 = arith.constant 0 : i32
    %c0_i32_0 = arith.constant 0 : i32
    %c0_i32_1 = arith.constant 0 : i32
    %c0_i32_2 = arith.constant 0 : i32
    return %c0_i32, %c0_i32_0, %c0_i32_1 : i32, i32, i32
  }
  func.func @transform_4(%arg0: i32) -> (i32, i32) {
    %c0_i32 = arith.constant 0 : i32
    %c0_i32_0 = arith.constant 0 : i32
    %c0_i32_1 = arith.constant 0 : i32
    return %c0_i32, %c0_i32_0 : i32, i32
  }
  func.func @transform_5(%arg0: i32) -> (i32, i32) {
    %c0_i32 = arith.constant 0 : i32
    %c0_i32_0 = arith.constant 0 : i32
    %c0_i32_1 = arith.constant 0 : i32
    return %c0_i32, %c0_i32_0 : i32, i32
  }
  func.func @transform_6(%arg0: i32) -> (i32, i32) {
    %c0_i32 = arith.constant 0 : i32
    %c0_i32_0 = arith.constant 0 : i32
    %c0_i32_1 = arith.constant 0 : i32
    return %c0_i32, %c0_i32_0 : i32, i32
  }
  func.func @transform_7(%arg0: i32) -> (i32, i32) {
    %c0_i32 = arith.constant 0 : i32
    %c0_i32_0 = arith.constant 0 : i32
    %c0_i32_1 = arith.constant 0 : i32
    return %c0_i32, %c0_i32_0 : i32, i32
  }
  func.func @transform_8(%arg0: i32) -> (i32, i32) {
    %c0_i32 = arith.constant 0 : i32
    %c0_i32_0 = arith.constant 0 : i32
    %c0_i32_1 = arith.constant 0 : i32
    return %c0_i32, %c0_i32_0 : i32, i32
  }
  func.func @transform_9(%arg0: i32) -> (i32, i32) {
    %c0_i32 = arith.constant 0 : i32
    %c0_i32_0 = arith.constant 0 : i32
    return %arg0, %c0_i32 : i32, i32
  }
}

</mosaic_0001>

<llo_original>
// kernel: tile.13
$region0: #{tile.13}
  #allocation0 [shape = 's32[1]{0}', space=sflag, size = 0x4, scoped, tag = 'scoped memory for tile.13']
  %s0 = inlined_call_operand.vmem [shape: f32[10], index: 0, kind: input, shape index: {}]
  %s1 = inlined_call_operand.vmem [shape: f32[12,10], index: 1, kind: output, shape index: {}]
  // Predicated region
  $region2: #{tile.13} parent=0 // pred_check
    _
  $region3: #{tile.13} parent=0 // pred_check_branch
    %3 = sbr.rel (0) target = $region5
  $region4: #{tile.13} parent=0 // pred_region
    _
  $region5: #{tile.13} parent=0 // pred_fallthru
    _
  %v4 = vld [vmem:[%s0] ss:$0 sm:$0xff]
  %5 = vst [vmem:[%s1] sm:$0xff] %v4
  %s6 = scalar_lea.vmem %s1, 8
  %7 = vst [vmem:[%s6] sm:$0xff] %v4

// kernel: tile.14
$region0: #{tile.14}
  %s0 = inlined_call_operand.vmem [shape: f32[12,10], index: 0, kind: input, shape index: {}]
  %s1 = inlined_call_operand.vmem [shape: f32[120], index: 1, kind: output, shape index: {}]
  $region1: #{tile.14} parent=0
    #allocation0 [shape = 'u8[4096]{0}', space=vmem, size = 0x1000, scoped, tag = 'scoped mem for output reshape']
    %v2 = vld [vmem:[%s0] sm:$0x1]
    %vm3 = vcmask 80896
    %4 = vst.msk [vmem:[#allocation0] sm:$0x1] %vm3, %v2
    %s5 = scalar_lea.vmem %s0, 11
    %v6 = vld [vmem:[%s5] sm:$0x1]
    %7 = vrot.lane.b32.xlu0 %v6, 110
    %v8 = vpop.permute.xlu0 %7
    %vm9 = vcmask 982896
    %10 = vst.msk [vmem:[#allocation0] sm:$0x1] %vm9, %v8
    %s11 = scalar_lea.vmem %s0, 10
    %v12 = vld [vmem:[%s11] sm:$0x1]
    %13 = vrot.lane.b32.xlu0 %v12, 100
    %v14 = vpop.permute.xlu0 %13
    %vm15 = vcmask 900896
    %16 = vst.msk [vmem:[#allocation0] sm:$0x1] %vm15, %v14
    %s17 = scalar_lea.vmem %s0, 9
    %v18 = vld [vmem:[%s17] sm:$0x1]
    %19 = vrot.lane.b32.xlu0 %v18, 90
    %v20 = vpop.permute.xlu0 %19
    %vm21 = vcmask 818896
    %22 = vst.msk [vmem:[#allocation0] sm:$0x1] %vm21, %v20
    %s23 = scalar_lea.vmem %s0, 8
    %v24 = vld [vmem:[%s23] sm:$0x1]
    %25 = vrot.lane.b32.xlu0 %v24, 80
    %v26 = vpop.permute.xlu0 %25
    %vm27 = vcmask 736896
    %28 = vst.msk [vmem:[#allocation0] sm:$0x1] %vm27, %v26
    %s29 = scalar_lea.vmem %s0, 7
    %v30 = vld [vmem:[%s29] sm:$0x1]
    %31 = vrot.lane.b32.xlu0 %v30, 70
    %v32 = vpop.permute.xlu0 %31
    %vm33 = vcmask 654896
    %34 = vst.msk [vmem:[#allocation0] sm:$0x1] %vm33, %v32
    %s35 = scalar_lea.vmem %s0, 6
    %v36 = vld [vmem:[%s35] sm:$0x1]
    %37 = vrot.lane.b32.xlu0 %v36, 60
    %v38 = vpop.permute.xlu0 %37
    %vm39 = vcmask 572896
    %40 = vst.msk [vmem:[#allocation0] sm:$0x1] %vm39, %v38
    %s41 = scalar_lea.vmem %s0, 5
    %v42 = vld [vmem:[%s41] sm:$0x1]
    %43 = vrot.lane.b32.xlu0 %v42, 50
    %v44 = vpop.permute.xlu0 %43
    %vm45 = vcmask 490896
    %46 = vst.msk [vmem:[#allocation0] sm:$0x1] %vm45, %v44
    %s47 = scalar_lea.vmem %s0, 4
    %v48 = vld [vmem:[%s47] sm:$0x1]
    %49 = vrot.lane.b32.xlu0 %v48, 40
    %v50 = vpop.permute.xlu0 %49
    %vm51 = vcmask 408896
    %52 = vst.msk [vmem:[#allocation0] sm:$0x1] %vm51, %v50
    %s53 = scalar_lea.vmem %s0, 3
    %v54 = vld [vmem:[%s53] sm:$0x1]
    %55 = vrot.lane.b32.xlu0 %v54, 30
    %v56 = vpop.permute.xlu0 %55
    %vm57 = vcmask 326896
    %58 = vst.msk [vmem:[#allocation0] sm:$0x1] %vm57, %v56
    %s59 = scalar_lea.vmem %s0, 2
    %v60 = vld [vmem:[%s59] sm:$0x1]
    %61 = vrot.lane.b32.xlu0 %v60, 20
    %v62 = vpop.permute.xlu0 %61
    %vm63 = vcmask 244896
    %64 = vst.msk [vmem:[#allocation0] sm:$0x1] %vm63, %v62
    %s65 = scalar_lea.vmem %s0, 1
    %v66 = vld [vmem:[%s65] sm:$0x1]
    %67 = vrot.lane.b32.xlu0 %v66, 10
    %v68 = vpop.permute.xlu0 %67
    %vm69 = vcmask 162896
    %70 = vst.msk [vmem:[#allocation0] sm:$0x1] %vm69, %v68
    %s72 = sshllo.u32 0, 1
    %v74 = vld [vmem:[#allocation0] sm:%s72]
    %s75 = sshllo.u32 0, 1
    %76 = vst [vmem:[%s1] sm:%s75] %v74

// kernel: tile.18
$region0: #{tile.18}
  #allocation0 [shape = 's32[1]{0}', space=sflag, size = 0x4, scoped, tag = 'scoped memory for tile.18']
  %s0 = inlined_call_operand.vmem [shape: f32[20], index: 0, kind: input, shape index: {}]
  %s1 = inlined_call_operand.vmem [shape: f32[4,20], index: 1, kind: output, shape index: {}]
  // Predicated region
  $region2: #{tile.18} parent=0 // pred_check
    _
  $region3: #{tile.18} parent=0 // pred_check_branch
    %3 = sbr.rel (0) target = $region5
  $region4: #{tile.18} parent=0 // pred_region
    _
  $region5: #{tile.18} parent=0 // pred_fallthru
    _
  %v4 = vld [vmem:[%s0] ss:$0 sm:$0xff]
  %5 = vst [vmem:[%s1] sm:$0xf] %v4

// kernel: tile.19
$region0: #{tile.19}
  %s0 = inlined_call_operand.vmem [shape: f32[4,20], index: 0, kind: input, shape index: {}]
  %s1 = inlined_call_operand.vmem [shape: f32[80], index: 1, kind: output, shape index: {}]
  $region1: #{tile.19} parent=0
    #allocation0 [shape = 'u8[4096]{0}', space=vmem, size = 0x1000, scoped, tag = 'scoped mem for output reshape']
    #allocation1 [shape = 'u8[4096]{0}', space=vmem, size = 0x1000, scoped, tag = 'scoped mem for input reshape']
    %s3 = sshllo.u32 0, 4
    %v4 = vld [vmem:[%s0] sm:%s3]
    %5 = vst [vmem:[#allocation1] sm:%s3] %v4
    %v6 = vld [vmem:[#allocation1] sm:$0x1]
    %vm7 = vcmask 162816
    %8 = vst.msk [vmem:[#allocation0] sm:$0x1] %vm7, %v6
    %s9 = scalar_lea.vmem [#allocation1], 3
    %v10 = vld [vmem:[%s9] sm:$0x1]
    %11 = vrot.lane.b32.xlu0 %v10, 60
    %v12 = vpop.permute.xlu0 %11
    %vm13 = vcmask 654816
    %14 = vst.msk [vmem:[#allocation0] sm:$0x1] %vm13, %v12
    %s15 = scalar_lea.vmem [#allocation1], 2
    %v16 = vld [vmem:[%s15] sm:$0x1]
    %17 = vrot.lane.b32.xlu0 %v16, 40
    %v18 = vpop.permute.xlu0 %17
    %vm19 = vcmask 490816
    %20 = vst.msk [vmem:[#allocation0] sm:$0x1] %vm19, %v18
    %s21 = scalar_lea.vmem [#allocation1], 1
    %v22 = vld [vmem:[%s21] sm:$0x1]
    %23 = vrot.lane.b32.xlu0 %v22, 20
    %v24 = vpop.permute.xlu0 %23
    %vm25 = vcmask 326816
    %26 = vst.msk [vmem:[#allocation0] sm:$0x1] %vm25, %v24
    %s28 = sshllo.u32 0, 1
    %v30 = vld [vmem:[#allocation0] sm:%s28]
    %s31 = sshllo.u32 0, 1
    %32 = vst [vmem:[%s1] sm:%s31] %v30

// kernel: nnet_forward.1
$region0: #{nnet_forward.1}
  #allocation0 [shape = 'u32[]', space=smem, size = 0x4, offset = 0x4, fixed_abs, tag = 'smem constant byte address 0x4 - core index']
  #allocation1 [shape = 'u32[144,128]{1,0:T(1,128)}', space=vmem, size = 0x12000, scoped, tag = 'internal scratch']
  %s0 = inlined_call_operand.vmem [shape: bf16[4,7,8,28], index: 0, kind: input, shape index: {}]
  %s1 = inlined_call_operand.vmem [shape: bf16[5,28,256], index: 1, kind: input, shape index: {}]
  %s2 = inlined_call_operand.vmem [shape: bf16[5,128,256], index: 2, kind: input, shape index: {}]
  %s3 = inlined_call_operand.vmem [shape: bf16[4,128,50], index: 3, kind: input, shape index: {}]
  %s4 = inlined_call_operand.vmem [shape: bf16[50,10], index: 4, kind: input, shape index: {}]
  %s5 = inlined_call_operand.vmem [shape: f32[1,128], index: 5, kind: input, shape index: {}]
  %s6 = inlined_call_operand.vmem [shape: f32[1,128], index: 6, kind: input, shape index: {}]
  %s7 = inlined_call_operand.vmem [shape: f32[1,50], index: 7, kind: input, shape index: {}]
  %s8 = inlined_call_operand.vmem [shape: f32[1,10], index: 8, kind: input, shape index: {}]
  %s9 = inlined_call_operand.vmem [shape: f32[8,10], index: 9, kind: output, shape index: {}]
  %s10 = sld [smem:[#allocation0]]
  $region46: #{nnet_forward.1} parent=0
    _
  %s12 = ssub.s32 1, %s10
  %s13 = scalar_select 0, %s12, %s10
  // Predicated region
  $region2: #{nnet_forward.1} parent=0 // pred_check
    _
  $region3: #{nnet_forward.1} parent=0 // pred_check_branch
    %15 = sbr.rel (0) target = $region5
  $region4: #{nnet_forward.1} parent=0 // pred_region
    _
  $region5: #{nnet_forward.1} parent=0 // pred_fallthru
    _
  // Predicated region
  $region6: #{nnet_forward.1} parent=0 // pred_check
    _
  $region7: #{nnet_forward.1} parent=0 // pred_check_branch
    %17 = sbr.rel (0) target = $region9
  $region8: #{nnet_forward.1} parent=0 // pred_region
    _
  $region9: #{nnet_forward.1} parent=0 // pred_fallthru
    _
  // Predicated region
  $region10: #{nnet_forward.1} parent=0 // pred_check
    _
  $region11: #{nnet_forward.1} parent=0 // pred_check_branch
    %19 = sbr.rel (0) target = $region13
  $region12: #{nnet_forward.1} parent=0 // pred_region
    _
  $region13: #{nnet_forward.1} parent=0 // pred_fallthru
    _
  // Predicated region
  $region14: #{nnet_forward.1} parent=0 // pred_check
    _
  $region15: #{nnet_forward.1} parent=0 // pred_check_branch
    %21 = sbr.rel (0) target = $region17
  $region16: #{nnet_forward.1} parent=0 // pred_region
    _
  $region17: #{nnet_forward.1} parent=0 // pred_fallthru
    _
  // Predicated region
  $region18: #{nnet_forward.1} parent=0 // pred_check
    _
  $region19: #{nnet_forward.1} parent=0 // pred_check_branch
    %23 = sbr.rel (0) target = $region21
  $region20: #{nnet_forward.1} parent=0 // pred_region
    _
  $region21: #{nnet_forward.1} parent=0 // pred_fallthru
    _
  // Predicated region
  $region22: #{nnet_forward.1} parent=0 // pred_check
    _
  $region23: #{nnet_forward.1} parent=0 // pred_check_branch
    %25 = sbr.rel (0) target = $region25
  $region24: #{nnet_forward.1} parent=0 // pred_region
    _
  $region25: #{nnet_forward.1} parent=0 // pred_fallthru
    _
  // Predicated region
  $region26: #{nnet_forward.1} parent=0 // pred_check
    _
  $region27: #{nnet_forward.1} parent=0 // pred_check_branch
    %27 = sbr.rel (0) target = $region29
  $region28: #{nnet_forward.1} parent=0 // pred_region
    _
  $region29: #{nnet_forward.1} parent=0 // pred_fallthru
    _
  // Predicated region
  $region30: #{nnet_forward.1} parent=0 // pred_check
    _
  $region31: #{nnet_forward.1} parent=0 // pred_check_branch
    %29 = sbr.rel (0) target = $region33
  $region32: #{nnet_forward.1} parent=0 // pred_region
    _
  $region33: #{nnet_forward.1} parent=0 // pred_fallthru
    _
  // Predicated region
  $region34: #{nnet_forward.1} parent=0 // pred_check
    _
  $region35: #{nnet_forward.1} parent=0 // pred_check_branch
    %31 = sbr.rel (0) target = $region37
  $region36: #{nnet_forward.1} parent=0 // pred_region
    _
  $region37: #{nnet_forward.1} parent=0 // pred_fallthru
    _
  %v33 = vld [vmem:[%s5] sm:$0x1]
  %v34 = vld [vmem:[%s0] sm:$0xf]
  %v35 = vld [vmem:[%s0 + $0x4] sm:$0xf]
  %v36 = vld [vmem:[%s0 + $0x8] sm:$0xf]
  %v37 = vld [vmem:[%s0 + $0xc] sm:$0xf]
  %v38 = vld [vmem:[%s0 + $0x10] sm:$0xf]
  %v39 = vld [vmem:[%s0 + $0x14] sm:$0xf]
  %v40 = vld [vmem:[%s1] sm:$0xff]
  %v41 = vld [vmem:[%s1 + $0x8] sm:$0xff]
  %v42 = vld [vmem:[%s1 + $0x10] sm:$0xff]
  %v43 = vld [vmem:[%s1 + $0x18] sm:$0x33]
  %s44 = scalar_lea.vmem %s0, 28
  %v45 = vld [vmem:[%s44] sm:$0xf]
  %v46 = vld [vmem:[%s44 + $0x4] sm:$0xf]
  %v47 = vld [vmem:[%s44 + $0x8] sm:$0xf]
  %v48 = vld [vmem:[%s44 + $0xc] sm:$0xf]
  %v49 = vld [vmem:[%s44 + $0x10] sm:$0xf]
  %v50 = vld [vmem:[%s44 + $0x14] sm:$0xf]
  %s51 = scalar_lea.vmem %s1, 32
  %v52 = vld [vmem:[%s51] sm:$0xff]
  %v53 = vld [vmem:[%s51 + $0x8] sm:$0xff]
  %v54 = vld [vmem:[%s51 + $0x10] sm:$0xff]
  %v55 = vld [vmem:[%s51 + $0x18] sm:$0x33]
  %v62 = vunpack.c.l.b16 %v45
  %v63 = vunpack.c.l.b16 %v46
  %v64 = vunpack.c.l.b16 %v47
  %v65 = vunpack.c.l.b16 %v48
  %v66 = vunpack.c.l.b16 %v49
  %v67 = vunpack.c.l.b16 %v50
  %v68 = vpack.c.b16 %v63, %v62
  %v69 = vpack.c.b16 %v65, %v64
  %v70 = vpack.c.b16 %v67, %v66
  %v75 = vunpack.c.l.b16 %v52
  %v76 = vunpack.c.h.b16 %v52
  %v77 = vunpack.c.l.b16 %v53
  %v78 = vunpack.c.h.b16 %v53
  %v79 = vunpack.c.l.b16 %v54
  %v80 = vunpack.c.h.b16 %v54
  %v81 = vunpack.c.l.b16 %v55
  %v82 = vunpack.c.h.b16 %v55
  %v83 = vpack.c.b16 %v77, %v75
  %v84 = vpack.c.b16 %v78, %v76
  %v85 = vpack.c.b16 %v81, %v79
  %v86 = vpack.c.b16 %v82, %v80
  %vm89 = vcmask 228352
  %v91 = vsel %vm89, %v68, 0
  %v94 = vsel %vm89, %v69, 0
  %v97 = vsel %vm89, %v70, 0
  %vm99 = vcmask 1045504
  %v101 = vsel %vm99, %v85, 0
  %v104 = vsel %vm99, %v86, 0
  %106 = vmatprep.subr.bf16.mxu0 %v84
  %107 = vmatpush1.bf16.msra.mxu0 %v83
  %108 = vmatprep.subr.bf16.mxu0 %v104
  %109 = vmatpush1.bf16.msra.mxu0 %v101
  %110 = vmatprep.subr.bf16.mxu0 0
  %111 = vmatpush1.bf16.msra.mxu0 0
  %112 = vmatprep.subr.bf16.mxu0 0
  %113 = vmatpush1.bf16.msra.mxu0 0
  %114 = vmatprep.subr.bf16.mxu0 0
  %115 = vmatpush1.bf16.msra.mxu0 0
  %116 = vmatprep.subr.bf16.mxu0 0
  %117 = vmatpush1.bf16.msra.mxu0 0
  %118 = vmatprep.subr.bf16.mxu0 0
  %119 = vmatpush1.bf16.msra.mxu0 0
  %120 = vmatprep.subr.bf16.mxu0 0
  %121 = vmatpush1.bf16.msra.mxu0 0
  %122 = vmatprep.subr.bf16.mxu0 0
  %123 = vmatpush1.bf16.msra.mxu0 0
  %124 = vmatprep.subr.bf16.mxu0 0
  %125 = vmatpush1.bf16.msra.mxu0 0
  %126 = vmatprep.subr.bf16.mxu0 0
  %127 = vmatpush1.bf16.msra.mxu0 0
  %128 = vmatprep.subr.bf16.mxu0 0
  %129 = vmatpush1.bf16.msra.mxu0 0
  %130 = vmatprep.subr.bf16.mxu0 0
  %131 = vmatpush1.bf16.msra.mxu0 0
  %132 = vmatprep.subr.bf16.mxu0 0
  %133 = vmatpush1.bf16.msra.mxu0 0
  %134 = vmatprep.subr.bf16.mxu0 0
  %135 = vmatpush1.bf16.msra.mxu0 0
  %136 = vmatprep.subr.bf16.mxu0 0
  %137 = vmatpush1.bf16.msra.mxu0 0
  %138 = vmatprep.mubr.bf16.mxu0 0
  %139 = vmatmul.mubr.bf16.gmra.mrb[0].mxu0 %v91
  %v140 = vpop.f32.mrb[0].mxu0
  %v141 = vadd.f32 0.0, %v140
  %v142 = vpop.f32.mrb[0].mxu0
  %v143 = vadd.f32 0.0, %v142
  %v144 = vpop.f32.mrb[0].mxu0
  %v145 = vadd.f32 0.0, %v144
  %v146 = vpop.f32.mrb[0].mxu0
  %v147 = vadd.f32 0.0, %v146
  %148 = vmatprep.mubr.bf16.mxu0 0
  %149 = vmatmul.mubr.bf16.gmra.mrb[0].mxu0 %v94
  %v150 = vpop.f32.mrb[0].mxu0
  %v151 = vadd.f32 0.0, %v150
  %v152 = vpop.f32.mrb[0].mxu0
  %v153 = vadd.f32 0.0, %v152
  %v154 = vpop.f32.mrb[0].mxu0
  %v155 = vadd.f32 0.0, %v154
  %v156 = vpop.f32.mrb[0].mxu0
  %v157 = vadd.f32 0.0, %v156
  %158 = vmatprep.mubr.bf16.mxu0 0
  %159 = vmatmul.mubr.bf16.gmra.mrb[0].mxu0 %v97
  %v160 = vpop.f32.mrb[0].mxu0
  %v161 = vadd.f32 0.0, %v160
  %v162 = vpop.f32.mrb[0].mxu0
  %v163 = vadd.f32 0.0, %v162
  %v164 = vpop.f32.mrb[0].mxu0
  %v165 = vadd.f32 0.0, %v164
  %v166 = vpop.f32.mrb[0].mxu0
  %v167 = vadd.f32 0.0, %v166
  %168 = vdwg.mxu0
  %v175 = vunpack.c.l.b16 %v34
  %v176 = vunpack.c.l.b16 %v35
  %v177 = vunpack.c.l.b16 %v36
  %v178 = vunpack.c.l.b16 %v37
  %v179 = vunpack.c.l.b16 %v38
  %v180 = vunpack.c.l.b16 %v39
  %v181 = vpack.c.b16 %v176, %v175
  %v182 = vpack.c.b16 %v178, %v177
  %v183 = vpack.c.b16 %v180, %v179
  %v188 = vunpack.c.l.b16 %v40
  %v189 = vunpack.c.h.b16 %v40
  %v190 = vunpack.c.l.b16 %v41
  %v191 = vunpack.c.h.b16 %v41
  %v192 = vunpack.c.l.b16 %v42
  %v193 = vunpack.c.h.b16 %v42
  %v194 = vunpack.c.l.b16 %v43
  %v195 = vunpack.c.h.b16 %v43
  %v196 = vpack.c.b16 %v190, %v188
  %v197 = vpack.c.b16 %v191, %v189
  %v198 = vpack.c.b16 %v194, %v192
  %v199 = vpack.c.b16 %v195, %v193
  %v203 = vsel %vm89, %v181, 0
  %v206 = vsel %vm89, %v182, 0
  %v209 = vsel %vm89, %v183, 0
  %v212 = vsel %vm99, %v198, 0
  %v215 = vsel %vm99, %v199, 0
  %217 = vmatprep.subr.bf16.mxu0 %v197
  %218 = vmatpush1.bf16.msra.mxu0 %v196
  %219 = vmatprep.subr.bf16.mxu0 %v215
  %220 = vmatpush1.bf16.msra.mxu0 %v212
  %221 = vmatprep.subr.bf16.mxu0 0
  %222 = vmatpush1.bf16.msra.mxu0 0
  %223 = vmatprep.subr.bf16.mxu0 0
  %224 = vmatpush1.bf16.msra.mxu0 0
  %225 = vmatprep.subr.bf16.mxu0 0
  %226 = vmatpush1.bf16.msra.mxu0 0
  %227 = vmatprep.subr.bf16.mxu0 0
  %228 = vmatpush1.bf16.msra.mxu0 0
  %229 = vmatprep.subr.bf16.mxu0 0
  %230 = vmatpush1.bf16.msra.mxu0 0
  %231 = vmatprep.subr.bf16.mxu0 0
  %232 = vmatpush1.bf16.msra.mxu0 0
  %233 = vmatprep.subr.bf16.mxu0 0
  %234 = vmatpush1.bf16.msra.mxu0 0
  %235 = vmatprep.subr.bf16.mxu0 0
  %236 = vmatpush1.bf16.msra.mxu0 0
  %237 = vmatprep.subr.bf16.mxu0 0
  %238 = vmatpush1.bf16.msra.mxu0 0
  %239 = vmatprep.subr.bf16.mxu0 0
  %240 = vmatpush1.bf16.msra.mxu0 0
  %241 = vmatprep.subr.bf16.mxu0 0
  %242 = vmatpush1.bf16.msra.mxu0 0
  %243 = vmatprep.subr.bf16.mxu0 0
  %244 = vmatpush1.bf16.msra.mxu0 0
  %245 = vmatprep.subr.bf16.mxu0 0
  %246 = vmatpush1.bf16.msra.mxu0 0
  %247 = vmatprep.subr.bf16.mxu0 0
  %248 = vmatpush1.bf16.msra.mxu0 0
  %249 = vmatprep.mubr.bf16.mxu0 0
  %250 = vmatmul.mubr.bf16.gmra.mrb[0].mxu0 %v203
  %v251 = vpop.f32.mrb[0].mxu0
  %v252 = vadd.f32 %v141, %v251
  %v253 = vpop.f32.mrb[0].mxu0
  %v254 = vadd.f32 %v143, %v253
  %v255 = vpop.f32.mrb[0].mxu0
  %v256 = vadd.f32 %v145, %v255
  %v257 = vpop.f32.mrb[0].mxu0
  %v258 = vadd.f32 %v147, %v257
  %259 = vmatprep.mubr.bf16.mxu0 0
  %260 = vmatmul.mubr.bf16.gmra.mrb[0].mxu0 %v206
  %v261 = vpop.f32.mrb[0].mxu0
  %v262 = vadd.f32 %v151, %v261
  %v263 = vpop.f32.mrb[0].mxu0
  %v264 = vadd.f32 %v153, %v263
  %v265 = vpop.f32.mrb[0].mxu0
  %v266 = vadd.f32 %v155, %v265
  %v267 = vpop.f32.mrb[0].mxu0
  %v268 = vadd.f32 %v157, %v267
  %269 = vmatprep.mubr.bf16.mxu0 0
  %270 = vmatmul.mubr.bf16.gmra.mrb[0].mxu0 %v209
  %v271 = vpop.f32.mrb[0].mxu0
  %v272 = vadd.f32 %v161, %v271
  %v273 = vpop.f32.mrb[0].mxu0
  %v274 = vadd.f32 %v163, %v273
  %v275 = vpop.f32.mrb[0].mxu0
  %v276 = vadd.f32 %v165, %v275
  %v277 = vpop.f32.mrb[0].mxu0
  %v278 = vadd.f32 %v167, %v277
  %279 = vdwg.mxu0
  %s280 = scalar_lea.vmem %s0, 56
  %v281 = vld [vmem:[%s280] sm:$0xf]
  %v282 = vld [vmem:[%s280 + $0x4] sm:$0xf]
  %v283 = vld [vmem:[%s280 + $0x8] sm:$0xf]
  %v284 = vld [vmem:[%s280 + $0xc] sm:$0xf]
  %v285 = vld [vmem:[%s280 + $0x10] sm:$0xf]
  %v286 = vld [vmem:[%s280 + $0x14] sm:$0xf]
  %s287 = scalar_lea.vmem %s1, 64
  %v288 = vld [vmem:[%s287] sm:$0xff]
  %v289 = vld [vmem:[%s287 + $0x8] sm:$0xff]
  %v290 = vld [vmem:[%s287 + $0x10] sm:$0xff]
  %v291 = vld [vmem:[%s287 + $0x18] sm:$0x33]
  %v298 = vunpack.c.l.b16 %v281
  %v299 = vunpack.c.l.b16 %v282
  %v300 = vunpack.c.l.b16 %v283
  %v301 = vunpack.c.l.b16 %v284
  %v302 = vunpack.c.l.b16 %v285
  %v303 = vunpack.c.l.b16 %v286
  %v304 = vpack.c.b16 %v299, %v298
  %v305 = vpack.c.b16 %v301, %v300
  %v306 = vpack.c.b16 %v303, %v302
  %v311 = vunpack.c.l.b16 %v288
  %v312 = vunpack.c.h.b16 %v288
  %v313 = vunpack.c.l.b16 %v289
  %v314 = vunpack.c.h.b16 %v289
  %v315 = vunpack.c.l.b16 %v290
  %v316 = vunpack.c.h.b16 %v290
  %v317 = vunpack.c.l.b16 %v291
  %v318 = vunpack.c.h.b16 %v291
  %v319 = vpack.c.b16 %v313, %v311
  %v320 = vpack.c.b16 %v314, %v312
  %v321 = vpack.c.b16 %v317, %v315
  %v322 = vpack.c.b16 %v318, %v316
  %v326 = vsel %vm89, %v304, 0
  %v329 = vsel %vm89, %v305, 0
  %v332 = vsel %vm89, %v306, 0
  %v335 = vsel %vm99, %v321, 0
  %v338 = vsel %vm99, %v322, 0
  %340 = vmatprep.subr.bf16.mxu0 %v320
  %341 = vmatpush1.bf16.msra.mxu0 %v319
  %342 = vmatprep.subr.bf16.mxu0 %v338
  %343 = vmatpush1.bf16.msra.mxu0 %v335
  %344 = vmatprep.subr.bf16.mxu0 0
  %345 = vmatpush1.bf16.msra.mxu0 0
  %346 = vmatprep.subr.bf16.mxu0 0
  %347 = vmatpush1.bf16.msra.mxu0 0
  %348 = vmatprep.subr.bf16.mxu0 0
  %349 = vmatpush1.bf16.msra.mxu0 0
  %350 = vmatprep.subr.bf16.mxu0 0
  %351 = vmatpush1.bf16.msra.mxu0 0
  %352 = vmatprep.subr.bf16.mxu0 0
  %353 = vmatpush1.bf16.msra.mxu0 0
  %354 = vmatprep.subr.bf16.mxu0 0
  %355 = vmatpush1.bf16.msra.mxu0 0
  %356 = vmatprep.subr.bf16.mxu0 0
  %357 = vmatpush1.bf16.msra.mxu0 0
  %358 = vmatprep.subr.bf16.mxu0 0
  %359 = vmatpush1.bf16.msra.mxu0 0
  %360 = vmatprep.subr.bf16.mxu0 0
  %361 = vmatpush1.bf16.msra.mxu0 0
  %362 = vmatprep.subr.bf16.mxu0 0
  %363 = vmatpush1.bf16.msra.mxu0 0
  %364 = vmatprep.subr.bf16.mxu0 0
  %365 = vmatpush1.bf16.msra.mxu0 0
  %366 = vmatprep.subr.bf16.mxu0 0
  %367 = vmatpush1.bf16.msra.mxu0 0
  %368 = vmatprep.subr.bf16.mxu0 0
  %369 = vmatpush1.bf16.msra.mxu0 0
  %370 = vmatprep.subr.bf16.mxu0 0
  %371 = vmatpush1.bf16.msra.mxu0 0
  %372 = vmatprep.mubr.bf16.mxu0 0
  %373 = vmatmul.mubr.bf16.gmra.mrb[0].mxu0 %v326
  %v374 = vpop.f32.mrb[0].mxu0
  %v375 = vadd.f32 0.0, %v374
  %v376 = vpop.f32.mrb[0].mxu0
  %v377 = vadd.f32 0.0, %v376
  %v378 = vpop.f32.mrb[0].mxu0
  %v379 = vadd.f32 0.0, %v378
  %v380 = vpop.f32.mrb[0].mxu0
  %v381 = vadd.f32 0.0, %v380
  %382 = vmatprep.mubr.bf16.mxu0 0
  %383 = vmatmul.mubr.bf16.gmra.mrb[0].mxu0 %v329
  %v384 = vpop.f32.mrb[0].mxu0
  %v385 = vadd.f32 0.0, %v384
  %v386 = vpop.f32.mrb[0].mxu0
  %v387 = vadd.f32 0.0, %v386
  %v388 = vpop.f32.mrb[0].mxu0
  %v389 = vadd.f32 0.0, %v388
  %v390 = vpop.f32.mrb[0].mxu0
  %v391 = vadd.f32 0.0, %v390
  %392 = vmatprep.mubr.bf16.mxu0 0
  %393 = vmatmul.mubr.bf16.gmra.mrb[0].mxu0 %v332
  %v394 = vpop.f32.mrb[0].mxu0
  %v395 = vadd.f32 0.0, %v394
  %v396 = vpop.f32.mrb[0].mxu0
  %v397 = vadd.f32 0.0, %v396
  %v398 = vpop.f32.mrb[0].mxu0
  %v399 = vadd.f32 0.0, %v398
  %v400 = vpop.f32.mrb[0].mxu0
  %v401 = vadd.f32 0.0, %v400
  %402 = vdwg.mxu0
  %v403 = vadd.f32 %v252, %v375
  %v404 = vadd.f32 %v254, %v377
  %v405 = vadd.f32 %v256, %v379
  %v406 = vadd.f32 %v258, %v381
  %v407 = vadd.f32 %v262, %v385
  %v408 = vadd.f32 %v264, %v387
  %v409 = vadd.f32 %v266, %v389
  %v410 = vadd.f32 %v268, %v391
  %v411 = vadd.f32 %v272, %v395
  %v412 = vadd.f32 %v274, %v397
  %v413 = vadd.f32 %v276, %v399
  %v414 = vadd.f32 %v278, %v401
  %s415 = scalar_lea.vmem %s0, 84
  %v416 = vld [vmem:[%s415] sm:$0xf]
  %v417 = vld [vmem:[%s415 + $0x4] sm:$0xf]
  %v418 = vld [vmem:[%s415 + $0x8] sm:$0xf]
  %v419 = vld [vmem:[%s415 + $0xc] sm:$0xf]
  %v420 = vld [vmem:[%s415 + $0x10] sm:$0xf]
  %v421 = vld [vmem:[%s415 + $0x14] sm:$0xf]
  %s422 = scalar_lea.vmem %s1, 96
  %v423 = vld [vmem:[%s422] sm:$0xff]
  %v424 = vld [vmem:[%s422 + $0x8] sm:$0xff]
  %v425 = vld [vmem:[%s422 + $0x10] sm:$0xff]
  %v426 = vld [vmem:[%s422 + $0x18] sm:$0x33]
  %v433 = vunpack.c.l.b16 %v416
  %v434 = vunpack.c.l.b16 %v417
  %v435 = vunpack.c.l.b16 %v418
  %v436 = vunpack.c.l.b16 %v419
  %v437 = vunpack.c.l.b16 %v420
  %v438 = vunpack.c.l.b16 %v421
  %v439 = vpack.c.b16 %v434, %v433
  %v440 = vpack.c.b16 %v436, %v435
  %v441 = vpack.c.b16 %v438, %v437
  %v446 = vunpack.c.l.b16 %v423
  %v447 = vunpack.c.h.b16 %v423
  %v448 = vunpack.c.l.b16 %v424
  %v449 = vunpack.c.h.b16 %v424
  %v450 = vunpack.c.l.b16 %v425
  %v451 = vunpack.c.h.b16 %v425
  %v452 = vunpack.c.l.b16 %v426
  %v453 = vunpack.c.h.b16 %v426
  %v454 = vpack.c.b16 %v448, %v446
  %v455 = vpack.c.b16 %v449, %v447
  %v456 = vpack.c.b16 %v452, %v450
  %v457 = vpack.c.b16 %v453, %v451
  %v461 = vsel %vm89, %v439, 0
  %v464 = vsel %vm89, %v440, 0
  %v467 = vsel %vm89, %v441, 0
  %v470 = vsel %vm99, %v456, 0
  %v473 = vsel %vm99, %v457, 0
  %475 = vmatprep.subr.bf16.mxu0 %v455
  %476 = vmatpush1.bf16.msra.mxu0 %v454
  %477 = vmatprep.subr.bf16.mxu0 %v473
  %478 = vmatpush1.bf16.msra.mxu0 %v470
  %479 = vmatprep.subr.bf16.mxu0 0
  %480 = vmatpush1.bf16.msra.mxu0 0
  %481 = vmatprep.subr.bf16.mxu0 0
  %482 = vmatpush1.bf16.msra.mxu0 0
  %483 = vmatprep.subr.bf16.mxu0 0
  %484 = vmatpush1.bf16.msra.mxu0 0
  %485 = vmatprep.subr.bf16.mxu0 0
  %486 = vmatpush1.bf16.msra.mxu0 0
  %487 = vmatprep.subr.bf16.mxu0 0
  %488 = vmatpush1.bf16.msra.mxu0 0
  %489 = vmatprep.subr.bf16.mxu0 0
  %490 = vmatpush1.bf16.msra.mxu0 0
  %491 = vmatprep.subr.bf16.mxu0 0
  %492 = vmatpush1.bf16.msra.mxu0 0
  %493 = vmatprep.subr.bf16.mxu0 0
  %494 = vmatpush1.bf16.msra.mxu0 0
  %495 = vmatprep.subr.bf16.mxu0 0
  %496 = vmatpush1.bf16.msra.mxu0 0
  %497 = vmatprep.subr.bf16.mxu0 0
  %498 = vmatpush1.bf16.msra.mxu0 0
  %499 = vmatprep.subr.bf16.mxu0 0
  %500 = vmatpush1.bf16.msra.mxu0 0
  %501 = vmatprep.subr.bf16.mxu0 0
  %502 = vmatpush1.bf16.msra.mxu0 0
  %503 = vmatprep.subr.bf16.mxu0 0
  %504 = vmatpush1.bf16.msra.mxu0 0
  %505 = vmatprep.subr.bf16.mxu0 0
  %506 = vmatpush1.bf16.msra.mxu0 0
  %507 = vmatprep.mubr.bf16.mxu0 0
  %508 = vmatmul.mubr.bf16.gmra.mrb[0].mxu0 %v461
  %v509 = vpop.f32.mrb[0].mxu0
  %v510 = vadd.f32 0.0, %v509
  %v511 = vpop.f32.mrb[0].mxu0
  %v512 = vadd.f32 0.0, %v511
  %v513 = vpop.f32.mrb[0].mxu0
  %v514 = vadd.f32 0.0, %v513
  %v515 = vpop.f32.mrb[0].mxu0
  %v516 = vadd.f32 0.0, %v515
  %517 = vmatprep.mubr.bf16.mxu0 0
  %518 = vmatmul.mubr.bf16.gmra.mrb[0].mxu0 %v464
  %v519 = vpop.f32.mrb[0].mxu0
  %v520 = vadd.f32 0.0, %v519
  %v521 = vpop.f32.mrb[0].mxu0
  %v522 = vadd.f32 0.0, %v521
  %v523 = vpop.f32.mrb[0].mxu0
  %v524 = vadd.f32 0.0, %v523
  %v525 = vpop.f32.mrb[0].mxu0
  %v526 = vadd.f32 0.0, %v525
  %527 = vmatprep.mubr.bf16.mxu0 0
  %528 = vmatmul.mubr.bf16.gmra.mrb[0].mxu0 %v467
  %v529 = vpop.f32.mrb[0].mxu0
  %v530 = vadd.f32 0.0, %v529
  %v531 = vpop.f32.mrb[0].mxu0
  %v532 = vadd.f32 0.0, %v531
  %v533 = vpop.f32.mrb[0].mxu0
  %v534 = vadd.f32 0.0, %v533
  %v535 = vpop.f32.mrb[0].mxu0
  %v536 = vadd.f32 0.0, %v535
  %537 = vdwg.mxu0
  %v538 = vadd.f32 %v403, %v510
  %v539 = vadd.f32 %v404, %v512
  %v540 = vadd.f32 %v405, %v514
  %v541 = vadd.f32 %v406, %v516
  %v542 = vadd.f32 %v407, %v520
  %v543 = vadd.f32 %v408, %v522
  %v544 = vadd.f32 %v409, %v524
  %v545 = vadd.f32 %v410, %v526
  %v546 = vadd.f32 %v411, %v530
  %v547 = vadd.f32 %v412, %v532
  %v548 = vadd.f32 %v413, %v534
  %v549 = vadd.f32 %v414, %v536
  %s550 = scalar_lea.vmem %s0, 4
  %v551 = vld [vmem:[%s550] sm:$0xf]
  %v552 = vld [vmem:[%s550 + $0x4] sm:$0xf]
  %v553 = vld [vmem:[%s550 + $0x8] sm:$0xf]
  %v554 = vld [vmem:[%s550 + $0xc] sm:$0xf]
  %v555 = vld [vmem:[%s550 + $0x10] sm:$0xf]
  %v556 = vld [vmem:[%s550 + $0x14] sm:$0xf]
  %s557 = scalar_lea.vmem %s1, 128
  %v558 = vld [vmem:[%s557] sm:$0xff]
  %v559 = vld [vmem:[%s557 + $0x8] sm:$0xff]
  %v560 = vld [vmem:[%s557 + $0x10] sm:$0xff]
  %v561 = vld [vmem:[%s557 + $0x18] sm:$0x33]
  %v568 = vunpack.c.l.b16 %v551
  %v569 = vunpack.c.l.b16 %v552
  %v570 = vunpack.c.l.b16 %v553
  %v571 = vunpack.c.l.b16 %v554
  %v572 = vunpack.c.l.b16 %v555
  %v573 = vunpack.c.l.b16 %v556
  %v574 = vpack.c.b16 %v569, %v568
  %v575 = vpack.c.b16 %v571, %v570
  %v576 = vpack.c.b16 %v573, %v572
  %v581 = vunpack.c.l.b16 %v558
  %v582 = vunpack.c.h.b16 %v558
  %v583 = vunpack.c.l.b16 %v559
  %v584 = vunpack.c.h.b16 %v559
  %v585 = vunpack.c.l.b16 %v560
  %v586 = vunpack.c.h.b16 %v560
  %v587 = vunpack.c.l.b16 %v561
  %v588 = vunpack.c.h.b16 %v561
  %v589 = vpack.c.b16 %v583, %v581
  %v590 = vpack.c.b16 %v584, %v582
  %v591 = vpack.c.b16 %v587, %v585
  %v592 = vpack.c.b16 %v588, %v586
  %v596 = vsel %vm89, %v574, 0
  %v599 = vsel %vm89, %v575, 0
  %v602 = vsel %vm89, %v576, 0
  %v605 = vsel %vm99, %v591, 0
  %v608 = vsel %vm99, %v592, 0
  %610 = vmatprep.subr.bf16.mxu0 %v590
  %611 = vmatpush1.bf16.msra.mxu0 %v589
  %612 = vmatprep.subr.bf16.mxu0 %v608
  %613 = vmatpush1.bf16.msra.mxu0 %v605
  %614 = vmatprep.subr.bf16.mxu0 0
  %615 = vmatpush1.bf16.msra.mxu0 0
  %616 = vmatprep.subr.bf16.mxu0 0
  %617 = vmatpush1.bf16.msra.mxu0 0
  %618 = vmatprep.subr.bf16.mxu0 0
  %619 = vmatpush1.bf16.msra.mxu0 0
  %620 = vmatprep.subr.bf16.mxu0 0
  %621 = vmatpush1.bf16.msra.mxu0 0
  %622 = vmatprep.subr.bf16.mxu0 0
  %623 = vmatpush1.bf16.msra.mxu0 0
  %624 = vmatprep.subr.bf16.mxu0 0
  %625 = vmatpush1.bf16.msra.mxu0 0
  %626 = vmatprep.subr.bf16.mxu0 0
  %627 = vmatpush1.bf16.msra.mxu0 0
  %628 = vmatprep.subr.bf16.mxu0 0
  %629 = vmatpush1.bf16.msra.mxu0 0
  %630 = vmatprep.subr.bf16.mxu0 0
  %631 = vmatpush1.bf16.msra.mxu0 0
  %632 = vmatprep.subr.bf16.mxu0 0
  %633 = vmatpush1.bf16.msra.mxu0 0
  %634 = vmatprep.subr.bf16.mxu0 0
  %635 = vmatpush1.bf16.msra.mxu0 0
  %636 = vmatprep.subr.bf16.mxu0 0
  %637 = vmatpush1.bf16.msra.mxu0 0
  %638 = vmatprep.subr.bf16.mxu0 0
  %639 = vmatpush1.bf16.msra.mxu0 0
  %640 = vmatprep.subr.bf16.mxu0 0
  %641 = vmatpush1.bf16.msra.mxu0 0
  %642 = vmatprep.mubr.bf16.mxu0 0
  %643 = vmatmul.mubr.bf16.gmra.mrb[0].mxu0 %v596
  %v644 = vpop.f32.mrb[0].mxu0
  %v645 = vadd.f32 0.0, %v644
  %v646 = vpop.f32.mrb[0].mxu0
  %v647 = vadd.f32 0.0, %v646
  %v648 = vpop.f32.mrb[0].mxu0
  %v649 = vadd.f32 0.0, %v648
  %v650 = vpop.f32.mrb[0].mxu0
  %v651 = vadd.f32 0.0, %v650
  %652 = vmatprep.mubr.bf16.mxu0 0
  %653 = vmatmul.mubr.bf16.gmra.mrb[0].mxu0 %v599
  %v654 = vpop.f32.mrb[0].mxu0
  %v655 = vadd.f32 0.0, %v654
  %v656 = vpop.f32.mrb[0].mxu0
  %v657 = vadd.f32 0.0, %v656
  %v658 = vpop.f32.mrb[0].mxu0
  %v659 = vadd.f32 0.0, %v658
  %v660 = vpop.f32.mrb[0].mxu0
  %v661 = vadd.f32 0.0, %v660
  %662 = vmatprep.mubr.bf16.mxu0 0
  %663 = vmatmul.mubr.bf16.gmra.mrb[0].mxu0 %v602
  %v664 = vpop.f32.mrb[0].mxu0
  %v665 = vadd.f32 0.0, %v664
  %v666 = vpop.f32.mrb[0].mxu0
  %v667 = vadd.f32 0.0, %v666
  %v668 = vpop.f32.mrb[0].mxu0
  %v669 = vadd.f32 0.0, %v668
  %v670 = vpop.f32.mrb[0].mxu0
  %v671 = vadd.f32 0.0, %v670
  %672 = vdwg.mxu0
  %v673 = vadd.f32 %v538, %v645
  %v674 = vadd.f32 %v539, %v647
  %v675 = vadd.f32 %v540, %v649
  %v676 = vadd.f32 %v541, %v651
  %v677 = vadd.f32 %v542, %v655
  %v678 = vadd.f32 %v543, %v657
  %v679 = vadd.f32 %v544, %v659
  %v680 = vadd.f32 %v545, %v661
  %v681 = vadd.f32 %v546, %v665
  %v682 = vadd.f32 %v547, %v667
  %v683 = vadd.f32 %v548, %v669
  %v684 = vadd.f32 %v549, %v671
  %v685 = vmax.f32 %v673, %v674
  %v686 = vmax.f32 %v675, %v676
  %v687 = vmax.f32 %v677, %v678
  %v688 = vmax.f32 %v679, %v680
  %v689 = vmax.f32 %v681, %v682
  %v690 = vmax.f32 %v683, %v684
  %691 = vmatprep.subr.bf16.mxu0 %v84
  %692 = vmatpush1.bf16.msra.mxu0 %v83
  %693 = vmatprep.subr.bf16.mxu0 %v104
  %694 = vmatpush1.bf16.msra.mxu0 %v101
  %695 = vmatprep.subr.bf16.mxu0 0
  %696 = vmatpush1.bf16.msra.mxu0 0
  %697 = vmatprep.subr.bf16.mxu0 0
  %698 = vmatpush1.bf16.msra.mxu0 0
  %699 = vmatprep.subr.bf16.mxu0 0
  %700 = vmatpush1.bf16.msra.mxu0 0
  %701 = vmatprep.subr.bf16.mxu0 0
  %702 = vmatpush1.bf16.msra.mxu0 0
  %703 = vmatprep.subr.bf16.mxu0 0
  %704 = vmatpush1.bf16.msra.mxu0 0
  %705 = vmatprep.subr.bf16.mxu0 0
  %706 = vmatpush1.bf16.msra.mxu0 0
  %707 = vmatprep.subr.bf16.mxu0 0
  %708 = vmatpush1.bf16.msra.mxu0 0
  %709 = vmatprep.subr.bf16.mxu0 0
  %710 = vmatpush1.bf16.msra.mxu0 0
  %711 = vmatprep.subr.bf16.mxu0 0
  %712 = vmatpush1.bf16.msra.mxu0 0
  %713 = vmatprep.subr.bf16.mxu0 0
  %714 = vmatpush1.bf16.msra.mxu0 0
  %715 = vmatprep.subr.bf16.mxu0 0
  %716 = vmatpush1.bf16.msra.mxu0 0
  %717 = vmatprep.subr.bf16.mxu0 0
  %718 = vmatpush1.bf16.msra.mxu0 0
  %719 = vmatprep.subr.bf16.mxu0 0
  %720 = vmatpush1.bf16.msra.mxu0 0
  %721 = vmatprep.subr.bf16.mxu0 0
  %722 = vmatpush1.bf16.msra.mxu0 0
  %723 = vmatprep.mubr.bf16.mxu0 0
  %724 = vmatmul.mubr.bf16.gmra.mrb[0].mxu0 %v326
  %v725 = vpop.f32.mrb[0].mxu0
  %v726 = vadd.f32 0.0, %v725
  %v727 = vpop.f32.mrb[0].mxu0
  %v728 = vadd.f32 0.0, %v727
  %v729 = vpop.f32.mrb[0].mxu0
  %v730 = vadd.f32 0.0, %v729
  %v731 = vpop.f32.mrb[0].mxu0
  %v732 = vadd.f32 0.0, %v731
  %733 = vmatprep.mubr.bf16.mxu0 0
  %734 = vmatmul.mubr.bf16.gmra.mrb[0].mxu0 %v329
  %v735 = vpop.f32.mrb[0].mxu0
  %v736 = vadd.f32 0.0, %v735
  %v737 = vpop.f32.mrb[0].mxu0
  %v738 = vadd.f32 0.0, %v737
  %v739 = vpop.f32.mrb[0].mxu0
  %v740 = vadd.f32 0.0, %v739
  %v741 = vpop.f32.mrb[0].mxu0
  %v742 = vadd.f32 0.0, %v741
  %743 = vmatprep.mubr.bf16.mxu0 0
  %744 = vmatmul.mubr.bf16.gmra.mrb[0].mxu0 %v332
  %v745 = vpop.f32.mrb[0].mxu0
  %v746 = vadd.f32 0.0, %v745
  %v747 = vpop.f32.mrb[0].mxu0
  %v748 = vadd.f32 0.0, %v747
  %v749 = vpop.f32.mrb[0].mxu0
  %v750 = vadd.f32 0.0, %v749
  %v751 = vpop.f32.mrb[0].mxu0
  %v752 = vadd.f32 0.0, %v751
  %753 = vdwg.mxu0
  %754 = vmatprep.subr.bf16.mxu0 %v197
  %755 = vmatpush1.bf16.msra.mxu0 %v196
  %756 = vmatprep.subr.bf16.mxu0 %v215
  %757 = vmatpush1.bf16.msra.mxu0 %v212
  %758 = vmatprep.subr.bf16.mxu0 0
  %759 = vmatpush1.bf16.msra.mxu0 0
  %760 = vmatprep.subr.bf16.mxu0 0
  %761 = vmatpush1.bf16.msra.mxu0 0
  %762 = vmatprep.subr.bf16.mxu0 0
  %763 = vmatpush1.bf16.msra.mxu0 0
  %764 = vmatprep.subr.bf16.mxu0 0
  %765 = vmatpush1.bf16.msra.mxu0 0
  %766 = vmatprep.subr.bf16.mxu0 0
  %767 = vmatpush1.bf16.msra.mxu0 0
  %768 = vmatprep.subr.bf16.mxu0 0
  %769 = vmatpush1.bf16.msra.mxu0 0
  %770 = vmatprep.subr.bf16.mxu0 0
  %771 = vmatpush1.bf16.msra.mxu0 0
  %772 = vmatprep.subr.bf16.mxu0 0
  %773 = vmatpush1.bf16.msra.mxu0 0
  %774 = vmatprep.subr.bf16.mxu0 0
  %775 = vmatpush1.bf16.msra.mxu0 0
  %776 = vmatprep.subr.bf16.mxu0 0
  %777 = vmatpush1.bf16.msra.mxu0 0
  %778 = vmatprep.subr.bf16.mxu0 0
  %779 = vmatpush1.bf16.msra.mxu0 0
  %780 = vmatprep.subr.bf16.mxu0 0
  %781 = vmatpush1.bf16.msra.mxu0 0
  %782 = vmatprep.subr.bf16.mxu0 0
  %783 = vmatpush1.bf16.msra.mxu0 0
  %784 = vmatprep.subr.bf16.mxu0 0
  %785 = vmatpush1.bf16.msra.mxu0 0
  %786 = vmatprep.mubr.bf16.mxu0 0
  %787 = vmatmul.mubr.bf16.gmra.mrb[0].mxu0 %v91
  %v788 = vpop.f32.mrb[0].mxu0
  %v789 = vadd.f32 %v726, %v788
  %v790 = vpop.f32.mrb[0].mxu0
  %v791 = vadd.f32 %v728, %v790
  %v792 = vpop.f32.mrb[0].mxu0
  %v793 = vadd.f32 %v730, %v792
  %v794 = vpop.f32.mrb[0].mxu0
  %v795 = vadd.f32 %v732, %v794
  %796 = vmatprep.mubr.bf16.mxu0 0
  %797 = vmatmul.mubr.bf16.gmra.mrb[0].mxu0 %v94
  %v798 = vpop.f32.mrb[0].mxu0
  %v799 = vadd.f32 %v736, %v798
  %v800 = vpop.f32.mrb[0].mxu0
  %v801 = vadd.f32 %v738, %v800
  %v802 = vpop.f32.mrb[0].mxu0
  %v803 = vadd.f32 %v740, %v802
  %v804 = vpop.f32.mrb[0].mxu0
  %v805 = vadd.f32 %v742, %v804
  %806 = vmatprep.mubr.bf16.mxu0 0
  %807 = vmatmul.mubr.bf16.gmra.mrb[0].mxu0 %v97
  %v808 = vpop.f32.mrb[0].mxu0
  %v809 = vadd.f32 %v746, %v808
  %v810 = vpop.f32.mrb[0].mxu0
  %v811 = vadd.f32 %v748, %v810
  %v812 = vpop.f32.mrb[0].mxu0
  %v813 = vadd.f32 %v750, %v812
  %v814 = vpop.f32.mrb[0].mxu0
  %v815 = vadd.f32 %v752, %v814
  %816 = vdwg.mxu0
  %817 = vmatprep.subr.bf16.mxu0 %v320
  %818 = vmatpush1.bf16.msra.mxu0 %v319
  %819 = vmatprep.subr.bf16.mxu0 %v338
  %820 = vmatpush1.bf16.msra.mxu0 %v335
  %821 = vmatprep.subr.bf16.mxu0 0
  %822 = vmatpush1.bf16.msra.mxu0 0
  %823 = vmatprep.subr.bf16.mxu0 0
  %824 = vmatpush1.bf16.msra.mxu0 0
  %825 = vmatprep.subr.bf16.mxu0 0
  %826 = vmatpush1.bf16.msra.mxu0 0
  %827 = vmatprep.subr.bf16.mxu0 0
  %828 = vmatpush1.bf16.msra.mxu0 0
  %829 = vmatprep.subr.bf16.mxu0 0
  %830 = vmatpush1.bf16.msra.mxu0 0
  %831 = vmatprep.subr.bf16.mxu0 0
  %832 = vmatpush1.bf16.msra.mxu0 0
  %833 = vmatprep.subr.bf16.mxu0 0
  %834 = vmatpush1.bf16.msra.mxu0 0
  %835 = vmatprep.subr.bf16.mxu0 0
  %836 = vmatpush1.bf16.msra.mxu0 0
  %837 = vmatprep.subr.bf16.mxu0 0
  %838 = vmatpush1.bf16.msra.mxu0 0
  %839 = vmatprep.subr.bf16.mxu0 0
  %840 = vmatpush1.bf16.msra.mxu0 0
  %841 = vmatprep.subr.bf16.mxu0 0
  %842 = vmatpush1.bf16.msra.mxu0 0
  %843 = vmatprep.subr.bf16.mxu0 0
  %844 = vmatpush1.bf16.msra.mxu0 0
  %845 = vmatprep.subr.bf16.mxu0 0
  %846 = vmatpush1.bf16.msra.mxu0 0
  %847 = vmatprep.subr.bf16.mxu0 0
  %848 = vmatpush1.bf16.msra.mxu0 0
  %849 = vmatprep.mubr.bf16.mxu0 0
  %850 = vmatmul.mubr.bf16.gmra.mrb[0].mxu0 %v461
  %v851 = vpop.f32.mrb[0].mxu0
  %v852 = vadd.f32 0.0, %v851
  %v853 = vpop.f32.mrb[0].mxu0
  %v854 = vadd.f32 0.0, %v853
  %v855 = vpop.f32.mrb[0].mxu0
  %v856 = vadd.f32 0.0, %v855
  %v857 = vpop.f32.mrb[0].mxu0
  %v858 = vadd.f32 0.0, %v857
  %859 = vmatprep.mubr.bf16.mxu0 0
  %860 = vmatmul.mubr.bf16.gmra.mrb[0].mxu0 %v464
  %v861 = vpop.f32.mrb[0].mxu0
  %v862 = vadd.f32 0.0, %v861
  %v863 = vpop.f32.mrb[0].mxu0
  %v864 = vadd.f32 0.0, %v863
  %v865 = vpop.f32.mrb[0].mxu0
  %v866 = vadd.f32 0.0, %v865
  %v867 = vpop.f32.mrb[0].mxu0
  %v868 = vadd.f32 0.0, %v867
  %869 = vmatprep.mubr.bf16.mxu0 0
  %870 = vmatmul.mubr.bf16.gmra.mrb[0].mxu0 %v467
  %v871 = vpop.f32.mrb[0].mxu0
  %v872 = vadd.f32 0.0, %v871
  %v873 = vpop.f32.mrb[0].mxu0
  %v874 = vadd.f32 0.0, %v873
  %v875 = vpop.f32.mrb[0].mxu0
  %v876 = vadd.f32 0.0, %v875
  %v877 = vpop.f32.mrb[0].mxu0
  %v878 = vadd.f32 0.0, %v877
  %879 = vdwg.mxu0
  %v880 = vadd.f32 %v789, %v852
  %v881 = vadd.f32 %v791, %v854
  %v882 = vadd.f32 %v793, %v856
  %v883 = vadd.f32 %v795, %v858
  %v884 = vadd.f32 %v799, %v862
  %v885 = vadd.f32 %v801, %v864
  %v886 = vadd.f32 %v803, %v866
  %v887 = vadd.f32 %v805, %v868
  %v888 = vadd.f32 %v809, %v872
  %v889 = vadd.f32 %v811, %v874
  %v890 = vadd.f32 %v813, %v876
  %v891 = vadd.f32 %v815, %v878
  %892 = vmatprep.subr.bf16.mxu0 %v455
  %893 = vmatpush1.bf16.msra.mxu0 %v454
  %894 = vmatprep.subr.bf16.mxu0 %v473
  %895 = vmatpush1.bf16.msra.mxu0 %v470
  %896 = vmatprep.subr.bf16.mxu0 0
  %897 = vmatpush1.bf16.msra.mxu0 0
  %898 = vmatprep.subr.bf16.mxu0 0
  %899 = vmatpush1.bf16.msra.mxu0 0
  %900 = vmatprep.subr.bf16.mxu0 0
  %901 = vmatpush1.bf16.msra.mxu0 0
  %902 = vmatprep.subr.bf16.mxu0 0
  %903 = vmatpush1.bf16.msra.mxu0 0
  %904 = vmatprep.subr.bf16.mxu0 0
  %905 = vmatpush1.bf16.msra.mxu0 0
  %906 = vmatprep.subr.bf16.mxu0 0
  %907 = vmatpush1.bf16.msra.mxu0 0
  %908 = vmatprep.subr.bf16.mxu0 0
  %909 = vmatpush1.bf16.msra.mxu0 0
  %910 = vmatprep.subr.bf16.mxu0 0
  %911 = vmatpush1.bf16.msra.mxu0 0
  %912 = vmatprep.subr.bf16.mxu0 0
  %913 = vmatpush1.bf16.msra.mxu0 0
  %914 = vmatprep.subr.bf16.mxu0 0
  %915 = vmatpush1.bf16.msra.mxu0 0
  %916 = vmatprep.subr.bf16.mxu0 0
  %917 = vmatpush1.bf16.msra.mxu0 0
  %918 = vmatprep.subr.bf16.mxu0 0
  %919 = vmatpush1.bf16.msra.mxu0 0
  %920 = vmatprep.subr.bf16.mxu0 0
  %921 = vmatpush1.bf16.msra.mxu0 0
  %922 = vmatprep.subr.bf16.mxu0 0
  %923 = vmatpush1.bf16.msra.mxu0 0
  %924 = vmatprep.mubr.bf16.mxu0 0
  %925 = vmatmul.mubr.bf16.gmra.mrb[0].mxu0 %v596
  %v926 = vpop.f32.mrb[0].mxu0
  %v927 = vadd.f32 0.0, %v926
  %v928 = vpop.f32.mrb[0].mxu0
  %v929 = vadd.f32 0.0, %v928
  %v930 = vpop.f32.mrb[0].mxu0
  %v931 = vadd.f32 0.0, %v930
  %v932 = vpop.f32.mrb[0].mxu0
  %v933 = vadd.f32 0.0, %v932
  %934 = vmatprep.mubr.bf16.mxu0 0
  %935 = vmatmul.mubr.bf16.gmra.mrb[0].mxu0 %v599
  %v936 = vpop.f32.mrb[0].mxu0
  %v937 = vadd.f32 0.0, %v936
  %v938 = vpop.f32.mrb[0].mxu0
  %v939 = vadd.f32 0.0, %v938
  %v940 = vpop.f32.mrb[0].mxu0
  %v941 = vadd.f32 0.0, %v940
  %v942 = vpop.f32.mrb[0].mxu0
  %v943 = vadd.f32 0.0, %v942
  %944 = vmatprep.mubr.bf16.mxu0 0
  %945 = vmatmul.mubr.bf16.gmra.mrb[0].mxu0 %v602
  %v946 = vpop.f32.mrb[0].mxu0
  %v947 = vadd.f32 0.0, %v946
  %v948 = vpop.f32.mrb[0].mxu0
  %v949 = vadd.f32 0.0, %v948
  %v950 = vpop.f32.mrb[0].mxu0
  %v951 = vadd.f32 0.0, %v950
  %v952 = vpop.f32.mrb[0].mxu0
  %v953 = vadd.f32 0.0, %v952
  %954 = vdwg.mxu0
  %v955 = vadd.f32 %v880, %v927
  %v956 = vadd.f32 %v881, %v929
  %v957 = vadd.f32 %v882, %v931
  %v958 = vadd.f32 %v883, %v933
  %v959 = vadd.f32 %v884, %v937
  %v960 = vadd.f32 %v885, %v939
  %v961 = vadd.f32 %v886, %v941
  %v962 = vadd.f32 %v887, %v943
  %v963 = vadd.f32 %v888, %v947
  %v964 = vadd.f32 %v889, %v949
  %v965 = vadd.f32 %v890, %v951
  %v966 = vadd.f32 %v891, %v953
  %s967 = scalar_lea.vmem %s0, 32
  %v968 = vld [vmem:[%s967] sm:$0xf]
  %v969 = vld [vmem:[%s967 + $0x4] sm:$0xf]
  %v970 = vld [vmem:[%s967 + $0x8] sm:$0xf]
  %v971 = vld [vmem:[%s967 + $0xc] sm:$0xf]
  %v972 = vld [vmem:[%s967 + $0x10] sm:$0xf]
  %v973 = vld [vmem:[%s967 + $0x14] sm:$0xf]
  %v980 = vunpack.c.l.b16 %v968
  %v981 = vunpack.c.l.b16 %v969
  %v982 = vunpack.c.l.b16 %v970
  %v983 = vunpack.c.l.b16 %v971
  %v984 = vunpack.c.l.b16 %v972
  %v985 = vunpack.c.l.b16 %v973
  %v986 = vpack.c.b16 %v981, %v980
  %v987 = vpack.c.b16 %v983, %v982
  %v988 = vpack.c.b16 %v985, %v984
  %v990 = vsel %vm89, %v986, 0
  %v993 = vsel %vm89, %v987, 0
  %v996 = vsel %vm89, %v988, 0
  %998 = vmatprep.subr.bf16.mxu0 %v590
  %999 = vmatpush1.bf16.msra.mxu0 %v589
  %1000 = vmatprep.subr.bf16.mxu0 %v608
  %1001 = vmatpush1.bf16.msra.mxu0 %v605
  %1002 = vmatprep.subr.bf16.mxu0 0
  %1003 = vmatpush1.bf16.msra.mxu0 0
  %1004 = vmatprep.subr.bf16.mxu0 0
  %1005 = vmatpush1.bf16.msra.mxu0 0
  %1006 = vmatprep.subr.bf16.mxu0 0
  %1007 = vmatpush1.bf16.msra.mxu0 0
  %1008 = vmatprep.subr.bf16.mxu0 0
  %1009 = vmatpush1.bf16.msra.mxu0 0
  %1010 = vmatprep.subr.bf16.mxu0 0
  %1011 = vmatpush1.bf16.msra.mxu0 0
  %1012 = vmatprep.subr.bf16.mxu0 0
  %1013 = vmatpush1.bf16.msra.mxu0 0
  %1014 = vmatprep.subr.bf16.mxu0 0
  %1015 = vmatpush1.bf16.msra.mxu0 0
  %1016 = vmatprep.subr.bf16.mxu0 0
  %1017 = vmatpush1.bf16.msra.mxu0 0
  %1018 = vmatprep.subr.bf16.mxu0 0
  %1019 = vmatpush1.bf16.msra.mxu0 0
  %1020 = vmatprep.subr.bf16.mxu0 0
  %1021 = vmatpush1.bf16.msra.mxu0 0
  %1022 = vmatprep.subr.bf16.mxu0 0
  %1023 = vmatpush1.bf16.msra.mxu0 0
  %1024 = vmatprep.subr.bf16.mxu0 0
  %1025 = vmatpush1.bf16.msra.mxu0 0
  %1026 = vmatprep.subr.bf16.mxu0 0
  %1027 = vmatpush1.bf16.msra.mxu0 0
  %1028 = vmatprep.subr.bf16.mxu0 0
  %1029 = vmatpush1.bf16.msra.mxu0 0
  %1030 = vmatprep.mubr.bf16.mxu0 0
  %1031 = vmatmul.mubr.bf16.gmra.mrb[0].mxu0 %v990
  %v1032 = vpop.f32.mrb[0].mxu0
  %v1033 = vadd.f32 0.0, %v1032
  %v1034 = vpop.f32.mrb[0].mxu0
  %v1035 = vadd.f32 0.0, %v1034
  %v1036 = vpop.f32.mrb[0].mxu0
  %v1037 = vadd.f32 0.0, %v1036
  %v1038 = vpop.f32.mrb[0].mxu0
  %v1039 = vadd.f32 0.0, %v1038
  %1040 = vmatprep.mubr.bf16.mxu0 0
  %1041 = vmatmul.mubr.bf16.gmra.mrb[0].mxu0 %v993
  %v1042 = vpop.f32.mrb[0].mxu0
  %v1043 = vadd.f32 0.0, %v1042
  %v1044 = vpop.f32.mrb[0].mxu0
  %v1045 = vadd.f32 0.0, %v1044
  %v1046 = vpop.f32.mrb[0].mxu0
  %v1047 = vadd.f32 0.0, %v1046
  %v1048 = vpop.f32.mrb[0].mxu0
  %v1049 = vadd.f32 0.0, %v1048
  %1050 = vmatprep.mubr.bf16.mxu0 0
  %1051 = vmatmul.mubr.bf16.gmra.mrb[0].mxu0 %v996
  %v1052 = vpop.f32.mrb[0].mxu0
  %v1053 = vadd.f32 0.0, %v1052
  %v1054 = vpop.f32.mrb[0].mxu0
  %v1055 = vadd.f32 0.0, %v1054
  %v1056 = vpop.f32.mrb[0].mxu0
  %v1057 = vadd.f32 0.0, %v1056
  %v1058 = vpop.f32.mrb[0].mxu0
  %v1059 = vadd.f32 0.0, %v1058
  %1060 = vdwg.mxu0
  %v1061 = vadd.f32 %v955, %v1033
  %v1062 = vadd.f32 %v956, %v1035
  %v1063 = vadd.f32 %v957, %v1037
  %v1064 = vadd.f32 %v958, %v1039
  %v1065 = vadd.f32 %v959, %v1043
  %v1066 = vadd.f32 %v960, %v1045
  %v1067 = vadd.f32 %v961, %v1047
  %v1068 = vadd.f32 %v962, %v1049
  %v1069 = vadd.f32 %v963, %v1053
  %v1070 = vadd.f32 %v964, %v1055
  %v1071 = vadd.f32 %v965, %v1057
  %v1072 = vadd.f32 %v966, %v1059
  %v1073 = vmax.f32 %v1061, %v1062
  %v1074 = vmax.f32 %v1063, %v1064
  %v1075 = vmax.f32 %v1065, %v1066
  %v1076 = vmax.f32 %v1067, %v1068
  %v1077 = vmax.f32 %v1069, %v1070
  %v1078 = vmax.f32 %v1071, %v1072
  %v1079 = vmax.f32 %v685, %v1073
  %v1080 = vmax.f32 %v686, %v1074
  %v1081 = vmax.f32 %v687, %v1075
  %v1082 = vmax.f32 %v688, %v1076
  %v1083 = vmax.f32 %v689, %v1077
  %v1084 = vmax.f32 %v690, %v1078
  %v1086 = vlaneseq
  %v1087 = vshrl.u32 %v1086, 7
  %v1088 = vsub.s32 0, %v1087
  %v1089 = vrot.slane %v33, %v1088
  %v1091 = vadd.f32 %v1079, %v1089
  %v1092 = vadd.f32 %v1080, %v1089
  %v1093 = vadd.f32 %v1081, %v1089
  %v1094 = vadd.f32 %v1082, %v1089
  %v1095 = vadd.f32 %v1083, %v1089
  %v1096 = vadd.f32 %v1084, %v1089
  %v1097 = vmax.f32 %v1091, 0.0
  %v1098 = vmax.f32 %v1092, 0.0
  %v1099 = vmax.f32 %v1093, 0.0
  %v1100 = vmax.f32 %v1094, 0.0
  %v1101 = vmax.f32 %v1095, 0.0
  %v1102 = vmax.f32 %v1096, 0.0
  %v1103 = vpack.c.bf16 %v1098, %v1097
  %v1104 = vpack.c.bf16 %v1100, %v1099
  %v1105 = vpack.c.bf16 %v1102, %v1101
  %1106 = vmatprep.subr.bf16.mxu0 %v84
  %1107 = vmatpush1.bf16.msra.mxu0 %v83
  %1108 = vmatprep.subr.bf16.mxu0 %v104
  %1109 = vmatpush1.bf16.msra.mxu0 %v101
  %1110 = vmatprep.subr.bf16.mxu0 0
  %1111 = vmatpush1.bf16.msra.mxu0 0
  %1112 = vmatprep.subr.bf16.mxu0 0
  %1113 = vmatpush1.bf16.msra.mxu0 0
  %1114 = vmatprep.subr.bf16.mxu0 0
  %1115 = vmatpush1.bf16.msra.mxu0 0
  %1116 = vmatprep.subr.bf16.mxu0 0
  %1117 = vmatpush1.bf16.msra.mxu0 0
  %1118 = vmatprep.subr.bf16.mxu0 0
  %1119 = vmatpush1.bf16.msra.mxu0 0
  %1120 = vmatprep.subr.bf16.mxu0 0
  %1121 = vmatpush1.bf16.msra.mxu0 0
  %1122 = vmatprep.subr.bf16.mxu0 0
  %1123 = vmatpush1.bf16.msra.mxu0 0
  %1124 = vmatprep.subr.bf16.mxu0 0
  %1125 = vmatpush1.bf16.msra.mxu0 0
  %1126 = vmatprep.subr.bf16.mxu0 0
  %1127 = vmatpush1.bf16.msra.mxu0 0
  %1128 = vmatprep.subr.bf16.mxu0 0
  %1129 = vmatpush1.bf16.msra.mxu0 0
  %1130 = vmatprep.subr.bf16.mxu0 0
  %1131 = vmatpush1.bf16.msra.mxu0 0
  %1132 = vmatprep.subr.bf16.mxu0 0
  %1133 = vmatpush1.bf16.msra.mxu0 0
  %1134 = vmatprep.subr.bf16.mxu0 0
  %1135 = vmatpush1.bf16.msra.mxu0 0
  %1136 = vmatprep.subr.bf16.mxu0 0
  %1137 = vmatpush1.bf16.msra.mxu0 0
  %1138 = vmatprep.mubr.bf16.mxu0 0
  %1139 = vmatmul.mubr.bf16.gmra.mrb[0].mxu0 %v461
  %v1140 = vpop.f32.mrb[0].mxu0
  %v1141 = vadd.f32 0.0, %v1140
  %v1142 = vpop.f32.mrb[0].mxu0
  %v1143 = vadd.f32 0.0, %v1142
  %v1144 = vpop.f32.mrb[0].mxu0
  %v1145 = vadd.f32 0.0, %v1144
  %v1146 = vpop.f32.mrb[0].mxu0
  %v1147 = vadd.f32 0.0, %v1146
  %1148 = vmatprep.mubr.bf16.mxu0 0
  %1149 = vmatmul.mubr.bf16.gmra.mrb[0].mxu0 %v464
  %v1150 = vpop.f32.mrb[0].mxu0
  %v1151 = vadd.f32 0.0, %v1150
  %v1152 = vpop.f32.mrb[0].mxu0
  %v1153 = vadd.f32 0.0, %v1152
  %v1154 = vpop.f32.mrb[0].mxu0
  %v1155 = vadd.f32 0.0, %v1154
  %v1156 = vpop.f32.mrb[0].mxu0
  %v1157 = vadd.f32 0.0, %v1156
  %1158 = vmatprep.mubr.bf16.mxu0 0
  %1159 = vmatmul.mubr.bf16.gmra.mrb[0].mxu0 %v467
  %v1160 = vpop.f32.mrb[0].mxu0
  %v1161 = vadd.f32 0.0, %v1160
  %v1162 = vpop.f32.mrb[0].mxu0
  %v1163 = vadd.f32 0.0, %v1162
  %v1164 = vpop.f32.mrb[0].mxu0
  %v1165 = vadd.f32 0.0, %v1164
  %v1166 = vpop.f32.mrb[0].mxu0
  %v1167 = vadd.f32 0.0, %v1166
  %1168 = vdwg.mxu0
  %1169 = vmatprep.subr.bf16.mxu0 %v197
  %1170 = vmatpush1.bf16.msra.mxu0 %v196
  %1171 = vmatprep.subr.bf16.mxu0 %v215
  %1172 = vmatpush1.bf16.msra.mxu0 %v212
  %1173 = vmatprep.subr.bf16.mxu0 0
  %1174 = vmatpush1.bf16.msra.mxu0 0
  %1175 = vmatprep.subr.bf16.mxu0 0
  %1176 = vmatpush1.bf16.msra.mxu0 0
  %1177 = vmatprep.subr.bf16.mxu0 0
  %1178 = vmatpush1.bf16.msra.mxu0 0
  %1179 = vmatprep.subr.bf16.mxu0 0
  %1180 = vmatpush1.bf16.msra.mxu0 0
  %1181 = vmatprep.subr.bf16.mxu0 0
  %1182 = vmatpush1.bf16.msra.mxu0 0
  %1183 = vmatprep.subr.bf16.mxu0 0
  %1184 = vmatpush1.bf16.msra.mxu0 0
  %1185 = vmatprep.subr.bf16.mxu0 0
  %1186 = vmatpush1.bf16.msra.mxu0 0
  %1187 = vmatprep.subr.bf16.mxu0 0
  %1188 = vmatpush1.bf16.msra.mxu0 0
  %1189 = vmatprep.subr.bf16.mxu0 0
  %1190 = vmatpush1.bf16.msra.mxu0 0
  %1191 = vmatprep.subr.bf16.mxu0 0
  %1192 = vmatpush1.bf16.msra.mxu0 0
  %1193 = vmatprep.subr.bf16.mxu0 0
  %1194 = vmatpush1.bf16.msra.mxu0 0
  %1195 = vmatprep.subr.bf16.mxu0 0
  %1196 = vmatpush1.bf16.msra.mxu0 0
  %1197 = vmatprep.subr.bf16.mxu0 0
  %1198 = vmatpush1.bf16.msra.mxu0 0
  %1199 = vmatprep.subr.bf16.mxu0 0
  %1200 = vmatpush1.bf16.msra.mxu0 0
  %1201 = vmatprep.mubr.bf16.mxu0 0
  %1202 = vmatmul.mubr.bf16.gmra.mrb[0].mxu0 %v326
  %v1203 = vpop.f32.mrb[0].mxu0
  %v1204 = vadd.f32 %v1141, %v1203
  %v1205 = vpop.f32.mrb[0].mxu0
  %v1206 = vadd.f32 %v1143, %v1205
  %v1207 = vpop.f32.mrb[0].mxu0
  %v1208 = vadd.f32 %v1145, %v1207
  %v1209 = vpop.f32.mrb[0].mxu0
  %v1210 = vadd.f32 %v1147, %v1209
  %1211 = vmatprep.mubr.bf16.mxu0 0
  %1212 = vmatmul.mubr.bf16.gmra.mrb[0].mxu0 %v329
  %v1213 = vpop.f32.mrb[0].mxu0
  %v1214 = vadd.f32 %v1151, %v1213
  %v1215 = vpop.f32.mrb[0].mxu0
  %v1216 = vadd.f32 %v1153, %v1215
  %v1217 = vpop.f32.mrb[0].mxu0
  %v1218 = vadd.f32 %v1155, %v1217
  %v1219 = vpop.f32.mrb[0].mxu0
  %v1220 = vadd.f32 %v1157, %v1219
  %1221 = vmatprep.mubr.bf16.mxu0 0
  %1222 = vmatmul.mubr.bf16.gmra.mrb[0].mxu0 %v332
  %v1223 = vpop.f32.mrb[0].mxu0
  %v1224 = vadd.f32 %v1161, %v1223
  %v1225 = vpop.f32.mrb[0].mxu0
  %v1226 = vadd.f32 %v1163, %v1225
  %v1227 = vpop.f32.mrb[0].mxu0
  %v1228 = vadd.f32 %v1165, %v1227
  %v1229 = vpop.f32.mrb[0].mxu0
  %v1230 = vadd.f32 %v1167, %v1229
  %1231 = vdwg.mxu0
  %1232 = vmatprep.subr.bf16.mxu0 %v320
  %1233 = vmatpush1.bf16.msra.mxu0 %v319
  %1234 = vmatprep.subr.bf16.mxu0 %v338
  %1235 = vmatpush1.bf16.msra.mxu0 %v335
  %1236 = vmatprep.subr.bf16.mxu0 0
  %1237 = vmatpush1.bf16.msra.mxu0 0
  %1238 = vmatprep.subr.bf16.mxu0 0
  %1239 = vmatpush1.bf16.msra.mxu0 0
  %1240 = vmatprep.subr.bf16.mxu0 0
  %1241 = vmatpush1.bf16.msra.mxu0 0
  %1242 = vmatprep.subr.bf16.mxu0 0
  %1243 = vmatpush1.bf16.msra.mxu0 0
  %1244 = vmatprep.subr.bf16.mxu0 0
  %1245 = vmatpush1.bf16.msra.mxu0 0
  %1246 = vmatprep.subr.bf16.mxu0 0
  %1247 = vmatpush1.bf16.msra.mxu0 0
  %1248 = vmatprep.subr.bf16.mxu0 0
  %1249 = vmatpush1.bf16.msra.mxu0 0
  %1250 = vmatprep.subr.bf16.mxu0 0
  %1251 = vmatpush1.bf16.msra.mxu0 0
  %1252 = vmatprep.subr.bf16.mxu0 0
  %1253 = vmatpush1.bf16.msra.mxu0 0
  %1254 = vmatprep.subr.bf16.mxu0 0
  %1255 = vmatpush1.bf16.msra.mxu0 0
  %1256 = vmatprep.subr.bf16.mxu0 0
  %1257 = vmatpush1.bf16.msra.mxu0 0
  %1258 = vmatprep.subr.bf16.mxu0 0
  %1259 = vmatpush1.bf16.msra.mxu0 0
  %1260 = vmatprep.subr.bf16.mxu0 0
  %1261 = vmatpush1.bf16.msra.mxu0 0
  %1262 = vmatprep.subr.bf16.mxu0 0
  %1263 = vmatpush1.bf16.msra.mxu0 0
  %1264 = vmatprep.mubr.bf16.mxu0 0
  %1265 = vmatmul.mubr.bf16.gmra.mrb[0].mxu0 %v596
  %v1266 = vpop.f32.mrb[0].mxu0
  %v1267 = vadd.f32 0.0, %v1266
  %v1268 = vpop.f32.mrb[0].mxu0
  %v1269 = vadd.f32 0.0, %v1268
  %v1270 = vpop.f32.mrb[0].mxu0
  %v1271 = vadd.f32 0.0, %v1270
  %v1272 = vpop.f32.mrb[0].mxu0
  %v1273 = vadd.f32 0.0, %v1272
  %1274 = vmatprep.mubr.bf16.mxu0 0
  %1275 = vmatmul.mubr.bf16.gmra.mrb[0].mxu0 %v599
  %v1276 = vpop.f32.mrb[0].mxu0
  %v1277 = vadd.f32 0.0, %v1276
  %v1278 = vpop.f32.mrb[0].mxu0
  %v1279 = vadd.f32 0.0, %v1278
  %v1280 = vpop.f32.mrb[0].mxu0
  %v1281 = vadd.f32 0.0, %v1280
  %v1282 = vpop.f32.mrb[0].mxu0
  %v1283 = vadd.f32 0.0, %v1282
  %1284 = vmatprep.mubr.bf16.mxu0 0
  %1285 = vmatmul.mubr.bf16.gmra.mrb[0].mxu0 %v602
  %v1286 = vpop.f32.mrb[0].mxu0
  %v1287 = vadd.f32 0.0, %v1286
  %v1288 = vpop.f32.mrb[0].mxu0
  %v1289 = vadd.f32 0.0, %v1288
  %v1290 = vpop.f32.mrb[0].mxu0
  %v1291 = vadd.f32 0.0, %v1290
  %v1292 = vpop.f32.mrb[0].mxu0
  %v1293 = vadd.f32 0.0, %v1292
  %1294 = vdwg.mxu0
  %v1295 = vadd.f32 %v1204, %v1267
  %v1296 = vadd.f32 %v1206, %v1269
  %v1297 = vadd.f32 %v1208, %v1271
  %v1298 = vadd.f32 %v1210, %v1273
  %v1299 = vadd.f32 %v1214, %v1277
  %v1300 = vadd.f32 %v1216, %v1279
  %v1301 = vadd.f32 %v1218, %v1281
  %v1302 = vadd.f32 %v1220, %v1283
  %v1303 = vadd.f32 %v1224, %v1287
  %v1304 = vadd.f32 %v1226, %v1289
  %v1305 = vadd.f32 %v1228, %v1291
  %v1306 = vadd.f32 %v1230, %v1293
  %1307 = vmatprep.subr.bf16.mxu0 %v455
  %1308 = vmatpush1.bf16.msra.mxu0 %v454
  %1309 = vmatprep.subr.bf16.mxu0 %v473
  %1310 = vmatpush1.bf16.msra.mxu0 %v470
  %1311 = vmatprep.subr.bf16.mxu0 0
  %1312 = vmatpush1.bf16.msra.mxu0 0
  %1313 = vmatprep.subr.bf16.mxu0 0
  %1314 = vmatpush1.bf16.msra.mxu0 0
  %1315 = vmatprep.subr.bf16.mxu0 0
  %1316 = vmatpush1.bf16.msra.mxu0 0
  %1317 = vmatprep.subr.bf16.mxu0 0
  %1318 = vmatpush1.bf16.msra.mxu0 0
  %1319 = vmatprep.subr.bf16.mxu0 0
  %1320 = vmatpush1.bf16.msra.mxu0 0
  %1321 = vmatprep.subr.bf16.mxu0 0
  %1322 = vmatpush1.bf16.msra.mxu0 0
  %1323 = vmatprep.subr.bf16.mxu0 0
  %1324 = vmatpush1.bf16.msra.mxu0 0
  %1325 = vmatprep.subr.bf16.mxu0 0
  %1326 = vmatpush1.bf16.msra.mxu0 0
  %1327 = vmatprep.subr.bf16.mxu0 0
  %1328 = vmatpush1.bf16.msra.mxu0 0
  %1329 = vmatprep.subr.bf16.mxu0 0
  %1330 = vmatpush1.bf16.msra.mxu0 0
  %1331 = vmatprep.subr.bf16.mxu0 0
  %1332 = vmatpush1.bf16.msra.mxu0 0
  %1333 = vmatprep.subr.bf16.mxu0 0
  %1334 = vmatpush1.bf16.msra.mxu0 0
  %1335 = vmatprep.subr.bf16.mxu0 0
  %1336 = vmatpush1.bf16.msra.mxu0 0
  %1337 = vmatprep.subr.bf16.mxu0 0
  %1338 = vmatpush1.bf16.msra.mxu0 0
  %1339 = vmatprep.mubr.bf16.mxu0 0
  %1340 = vmatmul.mubr.bf16.gmra.mrb[0].mxu0 %v990
  %v1341 = vpop.f32.mrb[0].mxu0
  %v1342 = vadd.f32 0.0, %v1341
  %v1343 = vpop.f32.mrb[0].mxu0
  %v1344 = vadd.f32 0.0, %v1343
  %v1345 = vpop.f32.mrb[0].mxu0
  %v1346 = vadd.f32 0.0, %v1345
  %v1347 = vpop.f32.mrb[0].mxu0
  %v1348 = vadd.f32 0.0, %v1347
  %1349 = vmatprep.mubr.bf16.mxu0 0
  %1350 = vmatmul.mubr.bf16.gmra.mrb[0].mxu0 %v993
  %v1351 = vpop.f32.mrb[0].mxu0
  %v1352 = vadd.f32 0.0, %v1351
  %v1353 = vpop.f32.mrb[0].mxu0
  %v1354 = vadd.f32 0.0, %v1353
  %v1355 = vpop.f32.mrb[0].mxu0
  %v1356 = vadd.f32 0.0, %v1355
  %v1357 = vpop.f32.mrb[0].mxu0
  %v1358 = vadd.f32 0.0, %v1357
  %1359 = vmatprep.mubr.bf16.mxu0 0
  %1360 = vmatmul.mubr.bf16.gmra.mrb[0].mxu0 %v996
  %v1361 = vpop.f32.mrb[0].mxu0
  %v1362 = vadd.f32 0.0, %v1361
  %v1363 = vpop.f32.mrb[0].mxu0
  %v1364 = vadd.f32 0.0, %v1363
  %v1365 = vpop.f32.mrb[0].mxu0
  %v1366 = vadd.f32 0.0, %v1365
  %v1367 = vpop.f32.mrb[0].mxu0
  %v1368 = vadd.f32 0.0, %v1367
  %1369 = vdwg.mxu0
  %v1370 = vadd.f32 %v1295, %v1342
  %v1371 = vadd.f32 %v1296, %v1344
  %v1372 = vadd.f32 %v1297, %v1346
  %v1373 = vadd.f32 %v1298, %v1348
  %v1374 = vadd.f32 %v1299, %v1352
  %v1375 = vadd.f32 %v1300, %v1354
  %v1376 = vadd.f32 %v1301, %v1356
  %v1377 = vadd.f32 %v1302, %v1358
  %v1378 = vadd.f32 %v1303, %v1362
  %v1379 = vadd.f32 %v1304, %v1364
  %v1380 = vadd.f32 %v1305, %v1366
  %v1381 = vadd.f32 %v1306, %v1368
  %s1382 = scalar_lea.vmem %s0, 60
  %v1383 = vld [vmem:[%s1382] sm:$0xf]
  %v1384 = vld [vmem:[%s1382 + $0x4] sm:$0xf]
  %v1385 = vld [vmem:[%s1382 + $0x8] sm:$0xf]
  %v1386 = vld [vmem:[%s1382 + $0xc] sm:$0xf]
  %v1387 = vld [vmem:[%s1382 + $0x10] sm:$0xf]
  %v1388 = vld [vmem:[%s1382 + $0x14] sm:$0xf]
  %v1395 = vunpack.c.l.b16 %v1383
  %v1396 = vunpack.c.l.b16 %v1384
  %v1397 = vunpack.c.l.b16 %v1385
  %v1398 = vunpack.c.l.b16 %v1386
  %v1399 = vunpack.c.l.b16 %v1387
  %v1400 = vunpack.c.l.b16 %v1388
  %v1401 = vpack.c.b16 %v1396, %v1395
  %v1402 = vpack.c.b16 %v1398, %v1397
  %v1403 = vpack.c.b16 %v1400, %v1399
  %v1405 = vsel %vm89, %v1401, 0
  %v1408 = vsel %vm89, %v1402, 0
  %v1411 = vsel %vm89, %v1403, 0
  %1413 = vmatprep.subr.bf16.mxu0 %v590
  %1414 = vmatpush1.bf16.msra.mxu0 %v589
  %1415 = vmatprep.subr.bf16.mxu0 %v608
  %1416 = vmatpush1.bf16.msra.mxu0 %v605
  %1417 = vmatprep.subr.bf16.mxu0 0
  %1418 = vmatpush1.bf16.msra.mxu0 0
  %1419 = vmatprep.subr.bf16.mxu0 0
  %1420 = vmatpush1.bf16.msra.mxu0 0
  %1421 = vmatprep.subr.bf16.mxu0 0
  %1422 = vmatpush1.bf16.msra.mxu0 0
  %1423 = vmatprep.subr.bf16.mxu0 0
  %1424 = vmatpush1.bf16.msra.mxu0 0
  %1425 = vmatprep.subr.bf16.mxu0 0
  %1426 = vmatpush1.bf16.msra.mxu0 0
  %1427 = vmatprep.subr.bf16.mxu0 0
  %1428 = vmatpush1.bf16.msra.mxu0 0
  %1429 = vmatprep.subr.bf16.mxu0 0
  %1430 = vmatpush1.bf16.msra.mxu0 0
  %1431 = vmatprep.subr.bf16.mxu0 0
  %1432 = vmatpush1.bf16.msra.mxu0 0
  %1433 = vmatprep.subr.bf16.mxu0 0
  %1434 = vmatpush1.bf16.msra.mxu0 0
  %1435 = vmatprep.subr.bf16.mxu0 0
  %1436 = vmatpush1.bf16.msra.mxu0 0
  %1437 = vmatprep.subr.bf16.mxu0 0
  %1438 = vmatpush1.bf16.msra.mxu0 0
  %1439 = vmatprep.subr.bf16.mxu0 0
  %1440 = vmatpush1.bf16.msra.mxu0 0
  %1441 = vmatprep.subr.bf16.mxu0 0
  %1442 = vmatpush1.bf16.msra.mxu0 0
  %1443 = vmatprep.subr.bf16.mxu0 0
  %1444 = vmatpush1.bf16.msra.mxu0 0
  %1445 = vmatprep.mubr.bf16.mxu0 0
  %1446 = vmatmul.mubr.bf16.gmra.mrb[0].mxu0 %v1405
  %v1447 = vpop.f32.mrb[0].mxu0
  %v1448 = vadd.f32 0.0, %v1447
  %v1449 = vpop.f32.mrb[0].mxu0
  %v1450 = vadd.f32 0.0, %v1449
  %v1451 = vpop.f32.mrb[0].mxu0
  %v1452 = vadd.f32 0.0, %v1451
  %v1453 = vpop.f32.mrb[0].mxu0
  %v1454 = vadd.f32 0.0, %v1453
  %1455 = vmatprep.mubr.bf16.mxu0 0
  %1456 = vmatmul.mubr.bf16.gmra.mrb[0].mxu0 %v1408
  %v1457 = vpop.f32.mrb[0].mxu0
  %v1458 = vadd.f32 0.0, %v1457
  %v1459 = vpop.f32.mrb[0].mxu0
  %v1460 = vadd.f32 0.0, %v1459
  %v1461 = vpop.f32.mrb[0].mxu0
  %v1462 = vadd.f32 0.0, %v1461
  %v1463 = vpop.f32.mrb[0].mxu0
  %v1464 = vadd.f32 0.0, %v1463
  %1465 = vmatprep.mubr.bf16.mxu0 0
  %1466 = vmatmul.mubr.bf16.gmra.mrb[0].mxu0 %v1411
  %v1467 = vpop.f32.mrb[0].mxu0
  %v1468 = vadd.f32 0.0, %v1467
  %v1469 = vpop.f32.mrb[0].mxu0
  %v1470 = vadd.f32 0.0, %v1469
  %v1471 = vpop.f32.mrb[0].mxu0
  %v1472 = vadd.f32 0.0, %v1471
  %v1473 = vpop.f32.mrb[0].mxu0
  %v1474 = vadd.f32 0.0, %v1473
  %1475 = vdwg.mxu0
  %v1476 = vadd.f32 %v1370, %v1448
  %v1477 = vadd.f32 %v1371, %v1450
  %v1478 = vadd.f32 %v1372, %v1452
  %v1479 = vadd.f32 %v1373, %v1454
  %v1480 = vadd.f32 %v1374, %v1458
  %v1481 = vadd.f32 %v1375, %v1460
  %v1482 = vadd.f32 %v1376, %v1462
  %v1483 = vadd.f32 %v1377, %v1464
  %v1484 = vadd.f32 %v1378, %v1468
  %v1485 = vadd.f32 %v1379, %v1470
  %v1486 = vadd.f32 %v1380, %v1472
  %v1487 = vadd.f32 %v1381, %v1474
  %v1488 = vmax.f32 %v1476, %v1477
  %v1489 = vmax.f32 %v1478, %v1479
  %v1490 = vmax.f32 %v1480, %v1481
  %v1491 = vmax.f32 %v1482, %v1483
  %v1492 = vmax.f32 %v1484, %v1485
  %v1493 = vmax.f32 %v1486, %v1487
  %1494 = vmatprep.subr.bf16.mxu0 %v84
  %1495 = vmatpush1.bf16.msra.mxu0 %v83
  %1496 = vmatprep.subr.bf16.mxu0 %v104
  %1497 = vmatpush1.bf16.msra.mxu0 %v101
  %1498 = vmatprep.subr.bf16.mxu0 0
  %1499 = vmatpush1.bf16.msra.mxu0 0
  %1500 = vmatprep.subr.bf16.mxu0 0
  %1501 = vmatpush1.bf16.msra.mxu0 0
  %1502 = vmatprep.subr.bf16.mxu0 0
  %1503 = vmatpush1.bf16.msra.mxu0 0
  %1504 = vmatprep.subr.bf16.mxu0 0
  %1505 = vmatpush1.bf16.msra.mxu0 0
  %1506 = vmatprep.subr.bf16.mxu0 0
  %1507 = vmatpush1.bf16.msra.mxu0 0
  %1508 = vmatprep.subr.bf16.mxu0 0
  %1509 = vmatpush1.bf16.msra.mxu0 0
  %1510 = vmatprep.subr.bf16.mxu0 0
  %1511 = vmatpush1.bf16.msra.mxu0 0
  %1512 = vmatprep.subr.bf16.mxu0 0
  %1513 = vmatpush1.bf16.msra.mxu0 0
  %1514 = vmatprep.subr.bf16.mxu0 0
  %1515 = vmatpush1.bf16.msra.mxu0 0
  %1516 = vmatprep.subr.bf16.mxu0 0
  %1517 = vmatpush1.bf16.msra.mxu0 0
  %1518 = vmatprep.subr.bf16.mxu0 0
  %1519 = vmatpush1.bf16.msra.mxu0 0
  %1520 = vmatprep.subr.bf16.mxu0 0
  %1521 = vmatpush1.bf16.msra.mxu0 0
  %1522 = vmatprep.subr.bf16.mxu0 0
  %1523 = vmatpush1.bf16.msra.mxu0 0
  %1524 = vmatprep.subr.bf16.mxu0 0
  %1525 = vmatpush1.bf16.msra.mxu0 0
  %1526 = vmatprep.mubr.bf16.mxu0 0
  %1527 = vmatmul.mubr.bf16.gmra.mrb[0].mxu0 %v596
  %v1528 = vpop.f32.mrb[0].mxu0
  %v1529 = vadd.f32 0.0, %v1528
  %v1530 = vpop.f32.mrb[0].mxu0
  %v1531 = vadd.f32 0.0, %v1530
  %v1532 = vpop.f32.mrb[0].mxu0
  %v1533 = vadd.f32 0.0, %v1532
  %v1534 = vpop.f32.mrb[0].mxu0
  %v1535 = vadd.f32 0.0, %v1534
  %1536 = vmatprep.mubr.bf16.mxu0 0
  %1537 = vmatmul.mubr.bf16.gmra.mrb[0].mxu0 %v599
  %v1538 = vpop.f32.mrb[0].mxu0
  %v1539 = vadd.f32 0.0, %v1538
  %v1540 = vpop.f32.mrb[0].mxu0
  %v1541 = vadd.f32 0.0, %v1540
  %v1542 = vpop.f32.mrb[0].mxu0
  %v1543 = vadd.f32 0.0, %v1542
  %v1544 = vpop.f32.mrb[0].mxu0
  %v1545 = vadd.f32 0.0, %v1544
  %1546 = vmatprep.mubr.bf16.mxu0 0
  %1547 = vmatmul.mubr.bf16.gmra.mrb[0].mxu0 %v602
  %v1548 = vpop.f32.mrb[0].mxu0
  %v1549 = vadd.f32 0.0, %v1548
  %v1550 = vpop.f32.mrb[0].mxu0
  %v1551 = vadd.f32 0.0, %v1550
  %v1552 = vpop.f32.mrb[0].mxu0
  %v1553 = vadd.f32 0.0, %v1552
  %v1554 = vpop.f32.mrb[0].mxu0
  %v1555 = vadd.f32 0.0, %v1554
  %1556 = vdwg.mxu0
  %1557 = vmatprep.subr.bf16.mxu0 %v197
  %1558 = vmatpush1.bf16.msra.mxu0 %v196
  %1559 = vmatprep.subr.bf16.mxu0 %v215
  %1560 = vmatpush1.bf16.msra.mxu0 %v212
  %1561 = vmatprep.subr.bf16.mxu0 0
  %1562 = vmatpush1.bf16.msra.mxu0 0
  %1563 = vmatprep.subr.bf16.mxu0 0
  %1564 = vmatpush1.bf16.msra.mxu0 0
  %1565 = vmatprep.subr.bf16.mxu0 0
  %1566 = vmatpush1.bf16.msra.mxu0 0
  %1567 = vmatprep.subr.bf16.mxu0 0
  %1568 = vmatpush1.bf16.msra.mxu0 0
  %1569 = vmatprep.subr.bf16.mxu0 0
  %1570 = vmatpush1.bf16.msra.mxu0 0
  %1571 = vmatprep.subr.bf16.mxu0 0
  %1572 = vmatpush1.bf16.msra.mxu0 0
  %1573 = vmatprep.subr.bf16.mxu0 0
  %1574 = vmatpush1.bf16.msra.mxu0 0
  %1575 = vmatprep.subr.bf16.mxu0 0
  %1576 = vmatpush1.bf16.msra.mxu0 0
  %1577 = vmatprep.subr.bf16.mxu0 0
  %1578 = vmatpush1.bf16.msra.mxu0 0
  %1579 = vmatprep.subr.bf16.mxu0 0
  %1580 = vmatpush1.bf16.msra.mxu0 0
  %1581 = vmatprep.subr.bf16.mxu0 0
  %1582 = vmatpush1.bf16.msra.mxu0 0
  %1583 = vmatprep.subr.bf16.mxu0 0
  %1584 = vmatpush1.bf16.msra.mxu0 0
  %1585 = vmatprep.subr.bf16.mxu0 0
  %1586 = vmatpush1.bf16.msra.mxu0 0
  %1587 = vmatprep.subr.bf16.mxu0 0
  %1588 = vmatpush1.bf16.msra.mxu0 0
  %1589 = vmatprep.mubr.bf16.mxu0 0
  %1590 = vmatmul.mubr.bf16.gmra.mrb[0].mxu0 %v461
  %v1591 = vpop.f32.mrb[0].mxu0
  %v1592 = vadd.f32 %v1529, %v1591
  %v1593 = vpop.f32.mrb[0].mxu0
  %v1594 = vadd.f32 %v1531, %v1593
  %v1595 = vpop.f32.mrb[0].mxu0
  %v1596 = vadd.f32 %v1533, %v1595
  %v1597 = vpop.f32.mrb[0].mxu0
  %v1598 = vadd.f32 %v1535, %v1597
  %1599 = vmatprep.mubr.bf16.mxu0 0
  %1600 = vmatmul.mubr.bf16.gmra.mrb[0].mxu0 %v464
  %v1601 = vpop.f32.mrb[0].mxu0
  %v1602 = vadd.f32 %v1539, %v1601
  %v1603 = vpop.f32.mrb[0].mxu0
  %v1604 = vadd.f32 %v1541, %v1603
  %v1605 = vpop.f32.mrb[0].mxu0
  %v1606 = vadd.f32 %v1543, %v1605
  %v1607 = vpop.f32.mrb[0].mxu0
  %v1608 = vadd.f32 %v1545, %v1607
  %1609 = vmatprep.mubr.bf16.mxu0 0
  %1610 = vmatmul.mubr.bf16.gmra.mrb[0].mxu0 %v467
  %v1611 = vpop.f32.mrb[0].mxu0
  %v1612 = vadd.f32 %v1549, %v1611
  %v1613 = vpop.f32.mrb[0].mxu0
  %v1614 = vadd.f32 %v1551, %v1613
  %v1615 = vpop.f32.mrb[0].mxu0
  %v1616 = vadd.f32 %v1553, %v1615
  %v1617 = vpop.f32.mrb[0].mxu0
  %v1618 = vadd.f32 %v1555, %v1617
  %1619 = vdwg.mxu0
  %1620 = vmatprep.subr.bf16.mxu0 %v320
  %1621 = vmatpush1.bf16.msra.mxu0 %v319
  %1622 = vmatprep.subr.bf16.mxu0 %v338
  %1623 = vmatpush1.bf16.msra.mxu0 %v335
  %1624 = vmatprep.subr.bf16.mxu0 0
  %1625 = vmatpush1.bf16.msra.mxu0 0
  %1626 = vmatprep.subr.bf16.mxu0 0
  %1627 = vmatpush1.bf16.msra.mxu0 0
  %1628 = vmatprep.subr.bf16.mxu0 0
  %1629 = vmatpush1.bf16.msra.mxu0 0
  %1630 = vmatprep.subr.bf16.mxu0 0
  %1631 = vmatpush1.bf16.msra.mxu0 0
  %1632 = vmatprep.subr.bf16.mxu0 0
  %1633 = vmatpush1.bf16.msra.mxu0 0
  %1634 = vmatprep.subr.bf16.mxu0 0
  %1635 = vmatpush1.bf16.msra.mxu0 0
  %1636 = vmatprep.subr.bf16.mxu0 0
  %1637 = vmatpush1.bf16.msra.mxu0 0
  %1638 = vmatprep.subr.bf16.mxu0 0
  %1639 = vmatpush1.bf16.msra.mxu0 0
  %1640 = vmatprep.subr.bf16.mxu0 0
  %1641 = vmatpush1.bf16.msra.mxu0 0
  %1642 = vmatprep.subr.bf16.mxu0 0
  %1643 = vmatpush1.bf16.msra.mxu0 0
  %1644 = vmatprep.subr.bf16.mxu0 0
  %1645 = vmatpush1.bf16.msra.mxu0 0
  %1646 = vmatprep.subr.bf16.mxu0 0
  %1647 = vmatpush1.bf16.msra.mxu0 0
  %1648 = vmatprep.subr.bf16.mxu0 0
  %1649 = vmatpush1.bf16.msra.mxu0 0
  %1650 = vmatprep.subr.bf16.mxu0 0
  %1651 = vmatpush1.bf16.msra.mxu0 0
  %1652 = vmatprep.mubr.bf16.mxu0 0
  %1653 = vmatmul.mubr.bf16.gmra.mrb[0].mxu0 %v990
  %v1654 = vpop.f32.mrb[0].mxu0
  %v1655 = vadd.f32 0.0, %v1654
  %v1656 = vpop.f32.mrb[0].mxu0
  %v1657 = vadd.f32 0.0, %v1656
  %v1658 = vpop.f32.mrb[0].mxu0
  %v1659 = vadd.f32 0.0, %v1658
  %v1660 = vpop.f32.mrb[0].mxu0
  %v1661 = vadd.f32 0.0, %v1660
  %1662 = vmatprep.mubr.bf16.mxu0 0
  %1663 = vmatmul.mubr.bf16.gmra.mrb[0].mxu0 %v993
  %v1664 = vpop.f32.mrb[0].mxu0
  %v1665 = vadd.f32 0.0, %v1664
  %v1666 = vpop.f32.mrb[0].mxu0
  %v1667 = vadd.f32 0.0, %v1666
  %v1668 = vpop.f32.mrb[0].mxu0
  %v1669 = vadd.f32 0.0, %v1668
  %v1670 = vpop.f32.mrb[0].mxu0
  %v1671 = vadd.f32 0.0, %v1670
  %1672 = vmatprep.mubr.bf16.mxu0 0
  %1673 = vmatmul.mubr.bf16.gmra.mrb[0].mxu0 %v996
  %v1674 = vpop.f32.mrb[0].mxu0
  %v1675 = vadd.f32 0.0, %v1674
  %v1676 = vpop.f32.mrb[0].mxu0
  %v1677 = vadd.f32 0.0, %v1676
  %v1678 = vpop.f32.mrb[0].mxu0
  %v1679 = vadd.f32 0.0, %v1678
  %v1680 = vpop.f32.mrb[0].mxu0
  %v1681 = vadd.f32 0.0, %v1680
  %1682 = vdwg.mxu0
  %v1683 = vadd.f32 %v1592, %v1655
  %v1684 = vadd.f32 %v1594, %v1657
  %v1685 = vadd.f32 %v1596, %v1659
  %v1686 = vadd.f32 %v1598, %v1661
  %v1687 = vadd.f32 %v1602, %v1665
  %v1688 = vadd.f32 %v1604, %v1667
  %v1689 = vadd.f32 %v1606, %v1669
  %v1690 = vadd.f32 %v1608, %v1671
  %v1691 = vadd.f32 %v1612, %v1675
  %v1692 = vadd.f32 %v1614, %v1677
  %v1693 = vadd.f32 %v1616, %v1679
  %v1694 = vadd.f32 %v1618, %v1681
  %1695 = vmatprep.subr.bf16.mxu0 %v455
  %1696 = vmatpush1.bf16.msra.mxu0 %v454
  %1697 = vmatprep.subr.bf16.mxu0 %v473
  %1698 = vmatpush1.bf16.msra.mxu0 %v470
  %1699 = vmatprep.subr.bf16.mxu0 0
  %1700 = vmatpush1.bf16.msra.mxu0 0
  %1701 = vmatprep.subr.bf16.mxu0 0
  %1702 = vmatpush1.bf16.msra.mxu0 0
  %1703 = vmatprep.subr.bf16.mxu0 0
  %1704 = vmatpush1.bf16.msra.mxu0 0
  %1705 = vmatprep.subr.bf16.mxu0 0
  %1706 = vmatpush1.bf16.msra.mxu0 0
  %1707 = vmatprep.subr.bf16.mxu0 0
  %1708 = vmatpush1.bf16.msra.mxu0 0
  %1709 = vmatprep.subr.bf16.mxu0 0
  %1710 = vmatpush1.bf16.msra.mxu0 0
  %1711 = vmatprep.subr.bf16.mxu0 0
  %1712 = vmatpush1.bf16.msra.mxu0 0
  %1713 = vmatprep.subr.bf16.mxu0 0
  %1714 = vmatpush1.bf16.msra.mxu0 0
  %1715 = vmatprep.subr.bf16.mxu0 0
  %1716 = vmatpush1.bf16.msra.mxu0 0
  %1717 = vmatprep.subr.bf16.mxu0 0
  %1718 = vmatpush1.bf16.msra.mxu0 0
  %1719 = vmatprep.subr.bf16.mxu0 0
  %1720 = vmatpush1.bf16.msra.mxu0 0
  %1721 = vmatprep.subr.bf16.mxu0 0
  %1722 = vmatpush1.bf16.msra.mxu0 0
  %1723 = vmatprep.subr.bf16.mxu0 0
  %1724 = vmatpush1.bf16.msra.mxu0 0
  %1725 = vmatprep.subr.bf16.mxu0 0
  %1726 = vmatpush1.bf16.msra.mxu0 0
  %1727 = vmatprep.mubr.bf16.mxu0 0
  %1728 = vmatmul.mubr.bf16.gmra.mrb[0].mxu0 %v1405
  %v1729 = vpop.f32.mrb[0].mxu0
  %v1730 = vadd.f32 0.0, %v1729
  %v1731 = vpop.f32.mrb[0].mxu0
  %v1732 = vadd.f32 0.0, %v1731
  %v1733 = vpop.f32.mrb[0].mxu0
  %v1734 = vadd.f32 0.0, %v1733
  %v1735 = vpop.f32.mrb[0].mxu0
  %v1736 = vadd.f32 0.0, %v1735
  %1737 = vmatprep.mubr.bf16.mxu0 0
  %1738 = vmatmul.mubr.bf16.gmra.mrb[0].mxu0 %v1408
  %v1739 = vpop.f32.mrb[0].mxu0
  %v1740 = vadd.f32 0.0, %v1739
  %v1741 = vpop.f32.mrb[0].mxu0
  %v1742 = vadd.f32 0.0, %v1741
  %v1743 = vpop.f32.mrb[0].mxu0
  %v1744 = vadd.f32 0.0, %v1743
  %v1745 = vpop.f32.mrb[0].mxu0
  %v1746 = vadd.f32 0.0, %v1745
  %1747 = vmatprep.mubr.bf16.mxu0 0
  %1748 = vmatmul.mubr.bf16.gmra.mrb[0].mxu0 %v1411
  %v1749 = vpop.f32.mrb[0].mxu0
  %v1750 = vadd.f32 0.0, %v1749
  %v1751 = vpop.f32.mrb[0].mxu0
  %v1752 = vadd.f32 0.0, %v1751
  %v1753 = vpop.f32.mrb[0].mxu0
  %v1754 = vadd.f32 0.0, %v1753
  %v1755 = vpop.f32.mrb[0].mxu0
  %v1756 = vadd.f32 0.0, %v1755
  %1757 = vdwg.mxu0
  %v1758 = vadd.f32 %v1683, %v1730
  %v1759 = vadd.f32 %v1684, %v1732
  %v1760 = vadd.f32 %v1685, %v1734
  %v1761 = vadd.f32 %v1686, %v1736
  %v1762 = vadd.f32 %v1687, %v1740
  %v1763 = vadd.f32 %v1688, %v1742
  %v1764 = vadd.f32 %v1689, %v1744
  %v1765 = vadd.f32 %v1690, %v1746
  %v1766 = vadd.f32 %v1691, %v1750
  %v1767 = vadd.f32 %v1692, %v1752
  %v1768 = vadd.f32 %v1693, %v1754
  %v1769 = vadd.f32 %v1694, %v1756
  %s1770 = scalar_lea.vmem %s0, 88
  %v1771 = vld [vmem:[%s1770] sm:$0xf]
  %v1772 = vld [vmem:[%s1770 + $0x4] sm:$0xf]
  %v1773 = vld [vmem:[%s1770 + $0x8] sm:$0xf]
  %v1774 = vld [vmem:[%s1770 + $0xc] sm:$0xf]
  %v1775 = vld [vmem:[%s1770 + $0x10] sm:$0xf]
  %v1776 = vld [vmem:[%s1770 + $0x14] sm:$0xf]
  %v1783 = vunpack.c.l.b16 %v1771
  %v1784 = vunpack.c.l.b16 %v1772
  %v1785 = vunpack.c.l.b16 %v1773
  %v1786 = vunpack.c.l.b16 %v1774
  %v1787 = vunpack.c.l.b16 %v1775
  %v1788 = vunpack.c.l.b16 %v1776
  %v1789 = vpack.c.b16 %v1784, %v1783
  %v1790 = vpack.c.b16 %v1786, %v1785
  %v1791 = vpack.c.b16 %v1788, %v1787
  %v1793 = vsel %vm89, %v1789, 0
  %v1796 = vsel %vm89, %v1790, 0
  %v1799 = vsel %vm89, %v1791, 0
  %1801 = vmatprep.subr.bf16.mxu0 %v590
  %1802 = vmatpush1.bf16.msra.mxu0 %v589
  %1803 = vmatprep.subr.bf16.mxu0 %v608
  %1804 = vmatpush1.bf16.msra.mxu0 %v605
  %1805 = vmatprep.subr.bf16.mxu0 0
  %1806 = vmatpush1.bf16.msra.mxu0 0
  %1807 = vmatprep.subr.bf16.mxu0 0
  %1808 = vmatpush1.bf16.msra.mxu0 0
  %1809 = vmatprep.subr.bf16.mxu0 0
  %1810 = vmatpush1.bf16.msra.mxu0 0
  %1811 = vmatprep.subr.bf16.mxu0 0
  %1812 = vmatpush1.bf16.msra.mxu0 0
  %1813 = vmatprep.subr.bf16.mxu0 0
  %1814 = vmatpush1.bf16.msra.mxu0 0
  %1815 = vmatprep.subr.bf16.mxu0 0
  %1816 = vmatpush1.bf16.msra.mxu0 0
  %1817 = vmatprep.subr.bf16.mxu0 0
  %1818 = vmatpush1.bf16.msra.mxu0 0
  %1819 = vmatprep.subr.bf16.mxu0 0
  %1820 = vmatpush1.bf16.msra.mxu0 0
  %1821 = vmatprep.subr.bf16.mxu0 0
  %1822 = vmatpush1.bf16.msra.mxu0 0
  %1823 = vmatprep.subr.bf16.mxu0 0
  %1824 = vmatpush1.bf16.msra.mxu0 0
  %1825 = vmatprep.subr.bf16.mxu0 0
  %1826 = vmatpush1.bf16.msra.mxu0 0
  %1827 = vmatprep.subr.bf16.mxu0 0
  %1828 = vmatpush1.bf16.msra.mxu0 0
  %1829 = vmatprep.subr.bf16.mxu0 0
  %1830 = vmatpush1.bf16.msra.mxu0 0
  %1831 = vmatprep.subr.bf16.mxu0 0
  %1832 = vmatpush1.bf16.msra.mxu0 0
  %1833 = vmatprep.mubr.bf16.mxu0 0
  %1834 = vmatmul.mubr.bf16.gmra.mrb[0].mxu0 %v1793
  %v1835 = vpop.f32.mrb[0].mxu0
  %v1836 = vadd.f32 0.0, %v1835
  %v1837 = vpop.f32.mrb[0].mxu0
  %v1838 = vadd.f32 0.0, %v1837
  %v1839 = vpop.f32.mrb[0].mxu0
  %v1840 = vadd.f32 0.0, %v1839
  %v1841 = vpop.f32.mrb[0].mxu0
  %v1842 = vadd.f32 0.0, %v1841
  %1843 = vmatprep.mubr.bf16.mxu0 0
  %1844 = vmatmul.mubr.bf16.gmra.mrb[0].mxu0 %v1796
  %v1845 = vpop.f32.mrb[0].mxu0
  %v1846 = vadd.f32 0.0, %v1845
  %v1847 = vpop.f32.mrb[0].mxu0
  %v1848 = vadd.f32 0.0, %v1847
  %v1849 = vpop.f32.mrb[0].mxu0
  %v1850 = vadd.f32 0.0, %v1849
  %v1851 = vpop.f32.mrb[0].mxu0
  %v1852 = vadd.f32 0.0, %v1851
  %1853 = vmatprep.mubr.bf16.mxu0 0
  %1854 = vmatmul.mubr.bf16.gmra.mrb[0].mxu0 %v1799
  %v1855 = vpop.f32.mrb[0].mxu0
  %v1856 = vadd.f32 0.0, %v1855
  %v1857 = vpop.f32.mrb[0].mxu0
  %v1858 = vadd.f32 0.0, %v1857
  %v1859 = vpop.f32.mrb[0].mxu0
  %v1860 = vadd.f32 0.0, %v1859
  %v1861 = vpop.f32.mrb[0].mxu0
  %v1862 = vadd.f32 0.0, %v1861
  %1863 = vdwg.mxu0
  %v1864 = vadd.f32 %v1758, %v1836
  %v1865 = vadd.f32 %v1759, %v1838
  %v1866 = vadd.f32 %v1760, %v1840
  %v1867 = vadd.f32 %v1761, %v1842
  %v1868 = vadd.f32 %v1762, %v1846
  %v1869 = vadd.f32 %v1763, %v1848
  %v1870 = vadd.f32 %v1764, %v1850
  %v1871 = vadd.f32 %v1765, %v1852
  %v1872 = vadd.f32 %v1766, %v1856
  %v1873 = vadd.f32 %v1767, %v1858
  %v1874 = vadd.f32 %v1768, %v1860
  %v1875 = vadd.f32 %v1769, %v1862
  %v1876 = vmax.f32 %v1864, %v1865
  %v1877 = vmax.f32 %v1866, %v1867
  %v1878 = vmax.f32 %v1868, %v1869
  %v1879 = vmax.f32 %v1870, %v1871
  %v1880 = vmax.f32 %v1872, %v1873
  %v1881 = vmax.f32 %v1874, %v1875
  %v1882 = vmax.f32 %v1488, %v1876
  %v1883 = vmax.f32 %v1489, %v1877
  %v1884 = vmax.f32 %v1490, %v1878
  %v1885 = vmax.f32 %v1491, %v1879
  %v1886 = vmax.f32 %v1492, %v1880
  %v1887 = vmax.f32 %v1493, %v1881
  %v1888 = vadd.f32 %v1882, %v1089
  %v1889 = vadd.f32 %v1883, %v1089
  %v1890 = vadd.f32 %v1884, %v1089
  %v1891 = vadd.f32 %v1885, %v1089
  %v1892 = vadd.f32 %v1886, %v1089
  %v1893 = vadd.f32 %v1887, %v1089
  %v1894 = vmax.f32 %v1888, 0.0
  %v1895 = vmax.f32 %v1889, 0.0
  %v1896 = vmax.f32 %v1890, 0.0
  %v1897 = vmax.f32 %v1891, 0.0
  %v1898 = vmax.f32 %v1892, 0.0
  %v1899 = vmax.f32 %v1893, 0.0
  %v1900 = vpack.c.bf16 %v1895, %v1894
  %v1901 = vpack.c.bf16 %v1897, %v1896
  %v1902 = vpack.c.bf16 %v1899, %v1898
  %v1903 = vld [vmem:[%s2] sm:$0xff]
  %v1904 = vld [vmem:[%s2 + $0x8] sm:$0xff]
  %v1905 = vld [vmem:[%s2 + $0x10] sm:$0xff]
  %v1906 = vld [vmem:[%s2 + $0x18] sm:$0xff]
  %v1907 = vld [vmem:[%s2 + $0x20] sm:$0xff]
  %v1908 = vld [vmem:[%s2 + $0x28] sm:$0xff]
  %v1909 = vld [vmem:[%s2 + $0x30] sm:$0xff]
  %v1910 = vld [vmem:[%s2 + $0x38] sm:$0xff]
  %v1911 = vld [vmem:[%s2 + $0x40] sm:$0xff]
  %v1912 = vld [vmem:[%s2 + $0x48] sm:$0xff]
  %v1913 = vld [vmem:[%s2 + $0x50] sm:$0xff]
  %v1914 = vld [vmem:[%s2 + $0x58] sm:$0xff]
  %v1915 = vld [vmem:[%s2 + $0x60] sm:$0xff]
  %v1916 = vld [vmem:[%s2 + $0x68] sm:$0xff]
  %v1917 = vld [vmem:[%s2 + $0x70] sm:$0xff]
  %v1918 = vld [vmem:[%s2 + $0x78] sm:$0xff]
  %s1919 = scalar_lea.vmem %s2, 128
  %v1920 = vld [vmem:[%s1919] sm:$0xff]
  %v1921 = vld [vmem:[%s1919 + $0x8] sm:$0xff]
  %v1922 = vld [vmem:[%s1919 + $0x10] sm:$0xff]
  %v1923 = vld [vmem:[%s1919 + $0x18] sm:$0xff]
  %v1924 = vld [vmem:[%s1919 + $0x20] sm:$0xff]
  %v1925 = vld [vmem:[%s1919 + $0x28] sm:$0xff]
  %v1926 = vld [vmem:[%s1919 + $0x30] sm:$0xff]
  %v1927 = vld [vmem:[%s1919 + $0x38] sm:$0xff]
  %v1928 = vld [vmem:[%s1919 + $0x40] sm:$0xff]
  %v1929 = vld [vmem:[%s1919 + $0x48] sm:$0xff]
  %v1930 = vld [vmem:[%s1919 + $0x50] sm:$0xff]
  %v1931 = vld [vmem:[%s1919 + $0x58] sm:$0xff]
  %v1932 = vld [vmem:[%s1919 + $0x60] sm:$0xff]
  %v1933 = vld [vmem:[%s1919 + $0x68] sm:$0xff]
  %v1934 = vld [vmem:[%s1919 + $0x70] sm:$0xff]
  %v1935 = vld [vmem:[%s1919 + $0x78] sm:$0xff]
  %v1952 = vunpack.c.l.b16 %v1920
  %v1953 = vunpack.c.h.b16 %v1920
  %v1954 = vunpack.c.l.b16 %v1921
  %v1955 = vunpack.c.h.b16 %v1921
  %v1956 = vunpack.c.l.b16 %v1922
  %v1957 = vunpack.c.h.b16 %v1922
  %v1958 = vunpack.c.l.b16 %v1923
  %v1959 = vunpack.c.h.b16 %v1923
  %v1960 = vunpack.c.l.b16 %v1924
  %v1961 = vunpack.c.h.b16 %v1924
  %v1962 = vunpack.c.l.b16 %v1925
  %v1963 = vunpack.c.h.b16 %v1925
  %v1964 = vunpack.c.l.b16 %v1926
  %v1965 = vunpack.c.h.b16 %v1926
  %v1966 = vunpack.c.l.b16 %v1927
  %v1967 = vunpack.c.h.b16 %v1927
  %v1968 = vunpack.c.l.b16 %v1928
  %v1969 = vunpack.c.h.b16 %v1928
  %v1970 = vunpack.c.l.b16 %v1929
  %v1971 = vunpack.c.h.b16 %v1929
  %v1972 = vunpack.c.l.b16 %v1930
  %v1973 = vunpack.c.h.b16 %v1930
  %v1974 = vunpack.c.l.b16 %v1931
  %v1975 = vunpack.c.h.b16 %v1931
  %v1976 = vunpack.c.l.b16 %v1932
  %v1977 = vunpack.c.h.b16 %v1932
  %v1978 = vunpack.c.l.b16 %v1933
  %v1979 = vunpack.c.h.b16 %v1933
  %v1980 = vunpack.c.l.b16 %v1934
  %v1981 = vunpack.c.h.b16 %v1934
  %v1982 = vunpack.c.l.b16 %v1935
  %v1983 = vunpack.c.h.b16 %v1935
  %v1984 = vpack.c.b16 %v1954, %v1952
  %v1985 = vpack.c.b16 %v1955, %v1953
  %v1986 = vpack.c.b16 %v1958, %v1956
  %v1987 = vpack.c.b16 %v1959, %v1957
  %v1988 = vpack.c.b16 %v1962, %v1960
  %v1989 = vpack.c.b16 %v1963, %v1961
  %v1990 = vpack.c.b16 %v1966, %v1964
  %v1991 = vpack.c.b16 %v1967, %v1965
  %v1992 = vpack.c.b16 %v1970, %v1968
  %v1993 = vpack.c.b16 %v1971, %v1969
  %v1994 = vpack.c.b16 %v1974, %v1972
  %v1995 = vpack.c.b16 %v1975, %v1973
  %v1996 = vpack.c.b16 %v1978, %v1976
  %v1997 = vpack.c.b16 %v1979, %v1977
  %v1998 = vpack.c.b16 %v1982, %v1980
  %v1999 = vpack.c.b16 %v1983, %v1981
  %2016 = vmatprep.subr.bf16.mxu0 %v1985
  %2017 = vmatpush1.bf16.msra.mxu0 %v1984
  %2018 = vmatprep.subr.bf16.mxu0 %v1987
  %2019 = vmatpush1.bf16.msra.mxu0 %v1986
  %2020 = vmatprep.subr.bf16.mxu0 %v1989
  %2021 = vmatpush1.bf16.msra.mxu0 %v1988
  %2022 = vmatprep.subr.bf16.mxu0 %v1991
  %2023 = vmatpush1.bf16.msra.mxu0 %v1990
  %2024 = vmatprep.subr.bf16.mxu0 %v1993
  %2025 = vmatpush1.bf16.msra.mxu0 %v1992
  %2026 = vmatprep.subr.bf16.mxu0 %v1995
  %2027 = vmatpush1.bf16.msra.mxu0 %v1994
  %2028 = vmatprep.subr.bf16.mxu0 %v1997
  %2029 = vmatpush1.bf16.msra.mxu0 %v1996
  %2030 = vmatprep.subr.bf16.mxu0 %v1999
  %2031 = vmatpush1.bf16.msra.mxu0 %v1998
  %2032 = vmatprep.subr.bf16.mxu0 0
  %2033 = vmatpush1.bf16.msra.mxu0 0
  %2034 = vmatprep.subr.bf16.mxu0 0
  %2035 = vmatpush1.bf16.msra.mxu0 0
  %2036 = vmatprep.subr.bf16.mxu0 0
  %2037 = vmatpush1.bf16.msra.mxu0 0
  %2038 = vmatprep.subr.bf16.mxu0 0
  %2039 = vmatpush1.bf16.msra.mxu0 0
  %2040 = vmatprep.subr.bf16.mxu0 0
  %2041 = vmatpush1.bf16.msra.mxu0 0
  %2042 = vmatprep.subr.bf16.mxu0 0
  %2043 = vmatpush1.bf16.msra.mxu0 0
  %2044 = vmatprep.subr.bf16.mxu0 0
  %2045 = vmatpush1.bf16.msra.mxu0 0
  %2046 = vmatprep.subr.bf16.mxu0 0
  %2047 = vmatpush1.bf16.msra.mxu0 0
  %2048 = vmatprep.mubr.bf16.mxu0 0
  %2049 = vmatmul.mubr.bf16.gmra.mrb[0].mxu0 %v1900
  %v2050 = vpop.f32.mrb[0].mxu0
  %v2051 = vadd.f32 0.0, %v2050
  %v2052 = vpop.f32.mrb[0].mxu0
  %v2053 = vadd.f32 0.0, %v2052
  %v2054 = vpop.f32.mrb[0].mxu0
  %v2055 = vadd.f32 0.0, %v2054
  %v2056 = vpop.f32.mrb[0].mxu0
  %v2057 = vadd.f32 0.0, %v2056
  %2058 = vmatprep.mubr.bf16.mxu0 0
  %2059 = vmatmul.mubr.bf16.gmra.mrb[0].mxu0 %v1901
  %v2060 = vpop.f32.mrb[0].mxu0
  %v2061 = vadd.f32 0.0, %v2060
  %v2062 = vpop.f32.mrb[0].mxu0
  %v2063 = vadd.f32 0.0, %v2062
  %v2064 = vpop.f32.mrb[0].mxu0
  %v2065 = vadd.f32 0.0, %v2064
  %v2066 = vpop.f32.mrb[0].mxu0
  %v2067 = vadd.f32 0.0, %v2066
  %2068 = vdwg.mxu0
  %v2085 = vunpack.c.l.b16 %v1903
  %v2086 = vunpack.c.h.b16 %v1903
  %v2087 = vunpack.c.l.b16 %v1904
  %v2088 = vunpack.c.h.b16 %v1904
  %v2089 = vunpack.c.l.b16 %v1905
  %v2090 = vunpack.c.h.b16 %v1905
  %v2091 = vunpack.c.l.b16 %v1906
  %v2092 = vunpack.c.h.b16 %v1906
  %v2093 = vunpack.c.l.b16 %v1907
  %v2094 = vunpack.c.h.b16 %v1907
  %v2095 = vunpack.c.l.b16 %v1908
  %v2096 = vunpack.c.h.b16 %v1908
  %v2097 = vunpack.c.l.b16 %v1909
  %v2098 = vunpack.c.h.b16 %v1909
  %v2099 = vunpack.c.l.b16 %v1910
  %v2100 = vunpack.c.h.b16 %v1910
  %v2101 = vunpack.c.l.b16 %v1911
  %v2102 = vunpack.c.h.b16 %v1911
  %v2103 = vunpack.c.l.b16 %v1912
  %v2104 = vunpack.c.h.b16 %v1912
  %v2105 = vunpack.c.l.b16 %v1913
  %v2106 = vunpack.c.h.b16 %v1913
  %v2107 = vunpack.c.l.b16 %v1914
  %v2108 = vunpack.c.h.b16 %v1914
  %v2109 = vunpack.c.l.b16 %v1915
  %v2110 = vunpack.c.h.b16 %v1915
  %v2111 = vunpack.c.l.b16 %v1916
  %v2112 = vunpack.c.h.b16 %v1916
  %v2113 = vunpack.c.l.b16 %v1917
  %v2114 = vunpack.c.h.b16 %v1917
  %v2115 = vunpack.c.l.b16 %v1918
  %v2116 = vunpack.c.h.b16 %v1918
  %v2117 = vpack.c.b16 %v2087, %v2085
  %v2118 = vpack.c.b16 %v2088, %v2086
  %v2119 = vpack.c.b16 %v2091, %v2089
  %v2120 = vpack.c.b16 %v2092, %v2090
  %v2121 = vpack.c.b16 %v2095, %v2093
  %v2122 = vpack.c.b16 %v2096, %v2094
  %v2123 = vpack.c.b16 %v2099, %v2097
  %v2124 = vpack.c.b16 %v2100, %v2098
  %v2125 = vpack.c.b16 %v2103, %v2101
  %v2126 = vpack.c.b16 %v2104, %v2102
  %v2127 = vpack.c.b16 %v2107, %v2105
  %v2128 = vpack.c.b16 %v2108, %v2106
  %v2129 = vpack.c.b16 %v2111, %v2109
  %v2130 = vpack.c.b16 %v2112, %v2110
  %v2131 = vpack.c.b16 %v2115, %v2113
  %v2132 = vpack.c.b16 %v2116, %v2114
  %2149 = vmatprep.subr.bf16.mxu0 %v2118
  %2150 = vmatpush1.bf16.msra.mxu0 %v2117
  %2151 = vmatprep.subr.bf16.mxu0 %v2120
  %2152 = vmatpush1.bf16.msra.mxu0 %v2119
  %2153 = vmatprep.subr.bf16.mxu0 %v2122
  %2154 = vmatpush1.bf16.msra.mxu0 %v2121
  %2155 = vmatprep.subr.bf16.mxu0 %v2124
  %2156 = vmatpush1.bf16.msra.mxu0 %v2123
  %2157 = vmatprep.subr.bf16.mxu0 %v2126
  %2158 = vmatpush1.bf16.msra.mxu0 %v2125
  %2159 = vmatprep.subr.bf16.mxu0 %v2128
  %2160 = vmatpush1.bf16.msra.mxu0 %v2127
  %2161 = vmatprep.subr.bf16.mxu0 %v2130
  %2162 = vmatpush1.bf16.msra.mxu0 %v2129
  %2163 = vmatprep.subr.bf16.mxu0 %v2132
  %2164 = vmatpush1.bf16.msra.mxu0 %v2131
  %2165 = vmatprep.subr.bf16.mxu0 0
  %2166 = vmatpush1.bf16.msra.mxu0 0
  %2167 = vmatprep.subr.bf16.mxu0 0
  %2168 = vmatpush1.bf16.msra.mxu0 0
  %2169 = vmatprep.subr.bf16.mxu0 0
  %2170 = vmatpush1.bf16.msra.mxu0 0
  %2171 = vmatprep.subr.bf16.mxu0 0
  %2172 = vmatpush1.bf16.msra.mxu0 0
  %2173 = vmatprep.subr.bf16.mxu0 0
  %2174 = vmatpush1.bf16.msra.mxu0 0
  %2175 = vmatprep.subr.bf16.mxu0 0
  %2176 = vmatpush1.bf16.msra.mxu0 0
  %2177 = vmatprep.subr.bf16.mxu0 0
  %2178 = vmatpush1.bf16.msra.mxu0 0
  %2179 = vmatprep.subr.bf16.mxu0 0
  %2180 = vmatpush1.bf16.msra.mxu0 0
  %2181 = vmatprep.mubr.bf16.mxu0 0
  %2182 = vmatmul.mubr.bf16.gmra.mrb[0].mxu0 %v1103
  %v2183 = vpop.f32.mrb[0].mxu0
  %v2184 = vadd.f32 %v2051, %v2183
  %v2185 = vpop.f32.mrb[0].mxu0
  %v2186 = vadd.f32 %v2053, %v2185
  %v2187 = vpop.f32.mrb[0].mxu0
  %v2188 = vadd.f32 %v2055, %v2187
  %v2189 = vpop.f32.mrb[0].mxu0
  %v2190 = vadd.f32 %v2057, %v2189
  %2191 = vmatprep.mubr.bf16.mxu0 0
  %2192 = vmatmul.mubr.bf16.gmra.mrb[0].mxu0 %v1104
  %v2193 = vpop.f32.mrb[0].mxu0
  %v2194 = vadd.f32 %v2061, %v2193
  %v2195 = vpop.f32.mrb[0].mxu0
  %v2196 = vadd.f32 %v2063, %v2195
  %v2197 = vpop.f32.mrb[0].mxu0
  %v2198 = vadd.f32 %v2065, %v2197
  %v2199 = vpop.f32.mrb[0].mxu0
  %v2200 = vadd.f32 %v2067, %v2199
  %2201 = vdwg.mxu0
  %s2202 = scalar_lea.vmem %s2, 256
  %v2203 = vld [vmem:[%s2202] sm:$0xff]
  %v2204 = vld [vmem:[%s2202 + $0x8] sm:$0xff]
  %v2205 = vld [vmem:[%s2202 + $0x10] sm:$0xff]
  %v2206 = vld [vmem:[%s2202 + $0x18] sm:$0xff]
  %v2207 = vld [vmem:[%s2202 + $0x20] sm:$0xff]
  %v2208 = vld [vmem:[%s2202 + $0x28] sm:$0xff]
  %v2209 = vld [vmem:[%s2202 + $0x30] sm:$0xff]
  %v2210 = vld [vmem:[%s2202 + $0x38] sm:$0xff]
  %v2211 = vld [vmem:[%s2202 + $0x40] sm:$0xff]
  %v2212 = vld [vmem:[%s2202 + $0x48] sm:$0xff]
  %v2213 = vld [vmem:[%s2202 + $0x50] sm:$0xff]
  %v2214 = vld [vmem:[%s2202 + $0x58] sm:$0xff]
  %v2215 = vld [vmem:[%s2202 + $0x60] sm:$0xff]
  %v2216 = vld [vmem:[%s2202 + $0x68] sm:$0xff]
  %v2217 = vld [vmem:[%s2202 + $0x70] sm:$0xff]
  %v2218 = vld [vmem:[%s2202 + $0x78] sm:$0xff]
  %vm2222 = vcmask 1043456
  %v2223 = vrot.slane %v1103, 4
  %v2224 = vrot.slane %v1104, 4
  %v2225 = vsel %vm2222, %v2223, %v2224
  %v2226 = vrot.slane %v1105, 4
  %v2227 = vsel %vm2222, %v2224, %v2226
  %v2246 = vunpack.c.l.b16 %v2203
  %v2247 = vunpack.c.h.b16 %v2203
  %v2248 = vunpack.c.l.b16 %v2204
  %v2249 = vunpack.c.h.b16 %v2204
  %v2250 = vunpack.c.l.b16 %v2205
  %v2251 = vunpack.c.h.b16 %v2205
  %v2252 = vunpack.c.l.b16 %v2206
  %v2253 = vunpack.c.h.b16 %v2206
  %v2254 = vunpack.c.l.b16 %v2207
  %v2255 = vunpack.c.h.b16 %v2207
  %v2256 = vunpack.c.l.b16 %v2208
  %v2257 = vunpack.c.h.b16 %v2208
  %v2258 = vunpack.c.l.b16 %v2209
  %v2259 = vunpack.c.h.b16 %v2209
  %v2260 = vunpack.c.l.b16 %v2210
  %v2261 = vunpack.c.h.b16 %v2210
  %v2262 = vunpack.c.l.b16 %v2211
  %v2263 = vunpack.c.h.b16 %v2211
  %v2264 = vunpack.c.l.b16 %v2212
  %v2265 = vunpack.c.h.b16 %v2212
  %v2266 = vunpack.c.l.b16 %v2213
  %v2267 = vunpack.c.h.b16 %v2213
  %v2268 = vunpack.c.l.b16 %v2214
  %v2269 = vunpack.c.h.b16 %v2214
  %v2270 = vunpack.c.l.b16 %v2215
  %v2271 = vunpack.c.h.b16 %v2215
  %v2272 = vunpack.c.l.b16 %v2216
  %v2273 = vunpack.c.h.b16 %v2216
  %v2274 = vunpack.c.l.b16 %v2217
  %v2275 = vunpack.c.h.b16 %v2217
  %v2276 = vunpack.c.l.b16 %v2218
  %v2277 = vunpack.c.h.b16 %v2218
  %v2278 = vpack.c.b16 %v2248, %v2246
  %v2279 = vpack.c.b16 %v2249, %v2247
  %v2280 = vpack.c.b16 %v2252, %v2250
  %v2281 = vpack.c.b16 %v2253, %v2251
  %v2282 = vpack.c.b16 %v2256, %v2254
  %v2283 = vpack.c.b16 %v2257, %v2255
  %v2284 = vpack.c.b16 %v2260, %v2258
  %v2285 = vpack.c.b16 %v2261, %v2259
  %v2286 = vpack.c.b16 %v2264, %v2262
  %v2287 = vpack.c.b16 %v2265, %v2263
  %v2288 = vpack.c.b16 %v2268, %v2266
  %v2289 = vpack.c.b16 %v2269, %v2267
  %v2290 = vpack.c.b16 %v2272, %v2270
  %v2291 = vpack.c.b16 %v2273, %v2271
  %v2292 = vpack.c.b16 %v2276, %v2274
  %v2293 = vpack.c.b16 %v2277, %v2275
  %2310 = vmatprep.subr.bf16.mxu0 %v2279
  %2311 = vmatpush1.bf16.msra.mxu0 %v2278
  %2312 = vmatprep.subr.bf16.mxu0 %v2281
  %2313 = vmatpush1.bf16.msra.mxu0 %v2280
  %2314 = vmatprep.subr.bf16.mxu0 %v2283
  %2315 = vmatpush1.bf16.msra.mxu0 %v2282
  %2316 = vmatprep.subr.bf16.mxu0 %v2285
  %2317 = vmatpush1.bf16.msra.mxu0 %v2284
  %2318 = vmatprep.subr.bf16.mxu0 %v2287
  %2319 = vmatpush1.bf16.msra.mxu0 %v2286
  %2320 = vmatprep.subr.bf16.mxu0 %v2289
  %2321 = vmatpush1.bf16.msra.mxu0 %v2288
  %2322 = vmatprep.subr.bf16.mxu0 %v2291
  %2323 = vmatpush1.bf16.msra.mxu0 %v2290
  %2324 = vmatprep.subr.bf16.mxu0 %v2293
  %2325 = vmatpush1.bf16.msra.mxu0 %v2292
  %2326 = vmatprep.subr.bf16.mxu0 0
  %2327 = vmatpush1.bf16.msra.mxu0 0
  %2328 = vmatprep.subr.bf16.mxu0 0
  %2329 = vmatpush1.bf16.msra.mxu0 0
  %2330 = vmatprep.subr.bf16.mxu0 0
  %2331 = vmatpush1.bf16.msra.mxu0 0
  %2332 = vmatprep.subr.bf16.mxu0 0
  %2333 = vmatpush1.bf16.msra.mxu0 0
  %2334 = vmatprep.subr.bf16.mxu0 0
  %2335 = vmatpush1.bf16.msra.mxu0 0
  %2336 = vmatprep.subr.bf16.mxu0 0
  %2337 = vmatpush1.bf16.msra.mxu0 0
  %2338 = vmatprep.subr.bf16.mxu0 0
  %2339 = vmatpush1.bf16.msra.mxu0 0
  %2340 = vmatprep.subr.bf16.mxu0 0
  %2341 = vmatpush1.bf16.msra.mxu0 0
  %2342 = vmatprep.mubr.bf16.mxu0 0
  %2343 = vmatmul.mubr.bf16.gmra.mrb[0].mxu0 %v2225
  %v2344 = vpop.f32.mrb[0].mxu0
  %v2345 = vadd.f32 0.0, %v2344
  %v2346 = vpop.f32.mrb[0].mxu0
  %v2347 = vadd.f32 0.0, %v2346
  %v2348 = vpop.f32.mrb[0].mxu0
  %v2349 = vadd.f32 0.0, %v2348
  %v2350 = vpop.f32.mrb[0].mxu0
  %v2351 = vadd.f32 0.0, %v2350
  %2352 = vmatprep.mubr.bf16.mxu0 0
  %2353 = vmatmul.mubr.bf16.gmra.mrb[0].mxu0 %v2227
  %v2354 = vpop.f32.mrb[0].mxu0
  %v2355 = vadd.f32 0.0, %v2354
  %v2356 = vpop.f32.mrb[0].mxu0
  %v2357 = vadd.f32 0.0, %v2356
  %v2358 = vpop.f32.mrb[0].mxu0
  %v2359 = vadd.f32 0.0, %v2358
  %v2360 = vpop.f32.mrb[0].mxu0
  %v2361 = vadd.f32 0.0, %v2360
  %2362 = vdwg.mxu0
  %v2363 = vadd.f32 %v2184, %v2345
  %v2364 = vadd.f32 %v2186, %v2347
  %v2365 = vadd.f32 %v2188, %v2349
  %v2366 = vadd.f32 %v2190, %v2351
  %v2367 = vadd.f32 %v2194, %v2355
  %v2368 = vadd.f32 %v2196, %v2357
  %v2369 = vadd.f32 %v2198, %v2359
  %v2370 = vadd.f32 %v2200, %v2361
  %s2371 = scalar_lea.vmem %s2, 384
  %v2372 = vld [vmem:[%s2371] sm:$0xff]
  %v2373 = vld [vmem:[%s2371 + $0x8] sm:$0xff]
  %v2374 = vld [vmem:[%s2371 + $0x10] sm:$0xff]
  %v2375 = vld [vmem:[%s2371 + $0x18] sm:$0xff]
  %v2376 = vld [vmem:[%s2371 + $0x20] sm:$0xff]
  %v2377 = vld [vmem:[%s2371 + $0x28] sm:$0xff]
  %v2378 = vld [vmem:[%s2371 + $0x30] sm:$0xff]
  %v2379 = vld [vmem:[%s2371 + $0x38] sm:$0xff]
  %v2380 = vld [vmem:[%s2371 + $0x40] sm:$0xff]
  %v2381 = vld [vmem:[%s2371 + $0x48] sm:$0xff]
  %v2382 = vld [vmem:[%s2371 + $0x50] sm:$0xff]
  %v2383 = vld [vmem:[%s2371 + $0x58] sm:$0xff]
  %v2384 = vld [vmem:[%s2371 + $0x60] sm:$0xff]
  %v2385 = vld [vmem:[%s2371 + $0x68] sm:$0xff]
  %v2386 = vld [vmem:[%s2371 + $0x70] sm:$0xff]
  %v2387 = vld [vmem:[%s2371 + $0x78] sm:$0xff]
  %v2391 = vrot.slane %v1900, 4
  %v2392 = vrot.slane %v1901, 4
  %v2393 = vsel %vm2222, %v2391, %v2392
  %v2394 = vrot.slane %v1902, 4
  %v2395 = vsel %vm2222, %v2392, %v2394
  %v2414 = vunpack.c.l.b16 %v2372
  %v2415 = vunpack.c.h.b16 %v2372
  %v2416 = vunpack.c.l.b16 %v2373
  %v2417 = vunpack.c.h.b16 %v2373
  %v2418 = vunpack.c.l.b16 %v2374
  %v2419 = vunpack.c.h.b16 %v2374
  %v2420 = vunpack.c.l.b16 %v2375
  %v2421 = vunpack.c.h.b16 %v2375
  %v2422 = vunpack.c.l.b16 %v2376
  %v2423 = vunpack.c.h.b16 %v2376
  %v2424 = vunpack.c.l.b16 %v2377
  %v2425 = vunpack.c.h.b16 %v2377
  %v2426 = vunpack.c.l.b16 %v2378
  %v2427 = vunpack.c.h.b16 %v2378
  %v2428 = vunpack.c.l.b16 %v2379
  %v2429 = vunpack.c.h.b16 %v2379
  %v2430 = vunpack.c.l.b16 %v2380
  %v2431 = vunpack.c.h.b16 %v2380
  %v2432 = vunpack.c.l.b16 %v2381
  %v2433 = vunpack.c.h.b16 %v2381
  %v2434 = vunpack.c.l.b16 %v2382
  %v2435 = vunpack.c.h.b16 %v2382
  %v2436 = vunpack.c.l.b16 %v2383
  %v2437 = vunpack.c.h.b16 %v2383
  %v2438 = vunpack.c.l.b16 %v2384
  %v2439 = vunpack.c.h.b16 %v2384
  %v2440 = vunpack.c.l.b16 %v2385
  %v2441 = vunpack.c.h.b16 %v2385
  %v2442 = vunpack.c.l.b16 %v2386
  %v2443 = vunpack.c.h.b16 %v2386
  %v2444 = vunpack.c.l.b16 %v2387
  %v2445 = vunpack.c.h.b16 %v2387
  %v2446 = vpack.c.b16 %v2416, %v2414
  %v2447 = vpack.c.b16 %v2417, %v2415
  %v2448 = vpack.c.b16 %v2420, %v2418
  %v2449 = vpack.c.b16 %v2421, %v2419
  %v2450 = vpack.c.b16 %v2424, %v2422
  %v2451 = vpack.c.b16 %v2425, %v2423
  %v2452 = vpack.c.b16 %v2428, %v2426
  %v2453 = vpack.c.b16 %v2429, %v2427
  %v2454 = vpack.c.b16 %v2432, %v2430
  %v2455 = vpack.c.b16 %v2433, %v2431
  %v2456 = vpack.c.b16 %v2436, %v2434
  %v2457 = vpack.c.b16 %v2437, %v2435
  %v2458 = vpack.c.b16 %v2440, %v2438
  %v2459 = vpack.c.b16 %v2441, %v2439
  %v2460 = vpack.c.b16 %v2444, %v2442
  %v2461 = vpack.c.b16 %v2445, %v2443
  %2478 = vmatprep.subr.bf16.mxu0 %v2447
  %2479 = vmatpush1.bf16.msra.mxu0 %v2446
  %2480 = vmatprep.subr.bf16.mxu0 %v2449
  %2481 = vmatpush1.bf16.msra.mxu0 %v2448
  %2482 = vmatprep.subr.bf16.mxu0 %v2451
  %2483 = vmatpush1.bf16.msra.mxu0 %v2450
  %2484 = vmatprep.subr.bf16.mxu0 %v2453
  %2485 = vmatpush1.bf16.msra.mxu0 %v2452
  %2486 = vmatprep.subr.bf16.mxu0 %v2455
  %2487 = vmatpush1.bf16.msra.mxu0 %v2454
  %2488 = vmatprep.subr.bf16.mxu0 %v2457
  %2489 = vmatpush1.bf16.msra.mxu0 %v2456
  %2490 = vmatprep.subr.bf16.mxu0 %v2459
  %2491 = vmatpush1.bf16.msra.mxu0 %v2458
  %2492 = vmatprep.subr.bf16.mxu0 %v2461
  %2493 = vmatpush1.bf16.msra.mxu0 %v2460
  %2494 = vmatprep.subr.bf16.mxu0 0
  %2495 = vmatpush1.bf16.msra.mxu0 0
  %2496 = vmatprep.subr.bf16.mxu0 0
  %2497 = vmatpush1.bf16.msra.mxu0 0
  %2498 = vmatprep.subr.bf16.mxu0 0
  %2499 = vmatpush1.bf16.msra.mxu0 0
  %2500 = vmatprep.subr.bf16.mxu0 0
  %2501 = vmatpush1.bf16.msra.mxu0 0
  %2502 = vmatprep.subr.bf16.mxu0 0
  %2503 = vmatpush1.bf16.msra.mxu0 0
  %2504 = vmatprep.subr.bf16.mxu0 0
  %2505 = vmatpush1.bf16.msra.mxu0 0
  %2506 = vmatprep.subr.bf16.mxu0 0
  %2507 = vmatpush1.bf16.msra.mxu0 0
  %2508 = vmatprep.subr.bf16.mxu0 0
  %2509 = vmatpush1.bf16.msra.mxu0 0
  %2510 = vmatprep.mubr.bf16.mxu0 0
  %2511 = vmatmul.mubr.bf16.gmra.mrb[0].mxu0 %v2393
  %v2512 = vpop.f32.mrb[0].mxu0
  %v2513 = vadd.f32 0.0, %v2512
  %v2514 = vpop.f32.mrb[0].mxu0
  %v2515 = vadd.f32 0.0, %v2514
  %v2516 = vpop.f32.mrb[0].mxu0
  %v2517 = vadd.f32 0.0, %v2516
  %v2518 = vpop.f32.mrb[0].mxu0
  %v2519 = vadd.f32 0.0, %v2518
  %2520 = vmatprep.mubr.bf16.mxu0 0
  %2521 = vmatmul.mubr.bf16.gmra.mrb[0].mxu0 %v2395
  %v2522 = vpop.f32.mrb[0].mxu0
  %v2523 = vadd.f32 0.0, %v2522
  %v2524 = vpop.f32.mrb[0].mxu0
  %v2525 = vadd.f32 0.0, %v2524
  %v2526 = vpop.f32.mrb[0].mxu0
  %v2527 = vadd.f32 0.0, %v2526
  %v2528 = vpop.f32.mrb[0].mxu0
  %v2529 = vadd.f32 0.0, %v2528
  %2530 = vdwg.mxu0
  %v2531 = vadd.f32 %v2363, %v2513
  %v2532 = vadd.f32 %v2364, %v2515
  %v2533 = vadd.f32 %v2365, %v2517
  %v2534 = vadd.f32 %v2366, %v2519
  %v2535 = vadd.f32 %v2367, %v2523
  %v2536 = vadd.f32 %v2368, %v2525
  %v2537 = vadd.f32 %v2369, %v2527
  %v2538 = vadd.f32 %v2370, %v2529
  %s2539 = scalar_lea.vmem %s2, 512
  %v2540 = vld [vmem:[%s2539] sm:$0xff]
  %v2541 = vld [vmem:[%s2539 + $0x8] sm:$0xff]
  %v2542 = vld [vmem:[%s2539 + $0x10] sm:$0xff]
  %v2543 = vld [vmem:[%s2539 + $0x18] sm:$0xff]
  %v2544 = vld [vmem:[%s2539 + $0x20] sm:$0xff]
  %v2545 = vld [vmem:[%s2539 + $0x28] sm:$0xff]
  %v2546 = vld [vmem:[%s2539 + $0x30] sm:$0xff]
  %v2547 = vld [vmem:[%s2539 + $0x38] sm:$0xff]
  %v2548 = vld [vmem:[%s2539 + $0x40] sm:$0xff]
  %v2549 = vld [vmem:[%s2539 + $0x48] sm:$0xff]
  %v2550 = vld [vmem:[%s2539 + $0x50] sm:$0xff]
  %v2551 = vld [vmem:[%s2539 + $0x58] sm:$0xff]
  %v2552 = vld [vmem:[%s2539 + $0x60] sm:$0xff]
  %v2553 = vld [vmem:[%s2539 + $0x68] sm:$0xff]
  %v2554 = vld [vmem:[%s2539 + $0x70] sm:$0xff]
  %v2555 = vld [vmem:[%s2539 + $0x78] sm:$0xff]
  %v2572 = vunpack.c.l.b16 %v2540
  %v2573 = vunpack.c.h.b16 %v2540
  %v2574 = vunpack.c.l.b16 %v2541
  %v2575 = vunpack.c.h.b16 %v2541
  %v2576 = vunpack.c.l.b16 %v2542
  %v2577 = vunpack.c.h.b16 %v2542
  %v2578 = vunpack.c.l.b16 %v2543
  %v2579 = vunpack.c.h.b16 %v2543
  %v2580 = vunpack.c.l.b16 %v2544
  %v2581 = vunpack.c.h.b16 %v2544
  %v2582 = vunpack.c.l.b16 %v2545
  %v2583 = vunpack.c.h.b16 %v2545
  %v2584 = vunpack.c.l.b16 %v2546
  %v2585 = vunpack.c.h.b16 %v2546
  %v2586 = vunpack.c.l.b16 %v2547
  %v2587 = vunpack.c.h.b16 %v2547
  %v2588 = vunpack.c.l.b16 %v2548
  %v2589 = vunpack.c.h.b16 %v2548
  %v2590 = vunpack.c.l.b16 %v2549
  %v2591 = vunpack.c.h.b16 %v2549
  %v2592 = vunpack.c.l.b16 %v2550
  %v2593 = vunpack.c.h.b16 %v2550
  %v2594 = vunpack.c.l.b16 %v2551
  %v2595 = vunpack.c.h.b16 %v2551
  %v2596 = vunpack.c.l.b16 %v2552
  %v2597 = vunpack.c.h.b16 %v2552
  %v2598 = vunpack.c.l.b16 %v2553
  %v2599 = vunpack.c.h.b16 %v2553
  %v2600 = vunpack.c.l.b16 %v2554
  %v2601 = vunpack.c.h.b16 %v2554
  %v2602 = vunpack.c.l.b16 %v2555
  %v2603 = vunpack.c.h.b16 %v2555
  %v2604 = vpack.c.b16 %v2574, %v2572
  %v2605 = vpack.c.b16 %v2575, %v2573
  %v2606 = vpack.c.b16 %v2578, %v2576
  %v2607 = vpack.c.b16 %v2579, %v2577
  %v2608 = vpack.c.b16 %v2582, %v2580
  %v2609 = vpack.c.b16 %v2583, %v2581
  %v2610 = vpack.c.b16 %v2586, %v2584
  %v2611 = vpack.c.b16 %v2587, %v2585
  %v2612 = vpack.c.b16 %v2590, %v2588
  %v2613 = vpack.c.b16 %v2591, %v2589
  %v2614 = vpack.c.b16 %v2594, %v2592
  %v2615 = vpack.c.b16 %v2595, %v2593
  %v2616 = vpack.c.b16 %v2598, %v2596
  %v2617 = vpack.c.b16 %v2599, %v2597
  %v2618 = vpack.c.b16 %v2602, %v2600
  %v2619 = vpack.c.b16 %v2603, %v2601
  %2636 = vmatprep.subr.bf16.mxu0 %v2605
  %2637 = vmatpush1.bf16.msra.mxu0 %v2604
  %2638 = vmatprep.subr.bf16.mxu0 %v2607
  %2639 = vmatpush1.bf16.msra.mxu0 %v2606
  %2640 = vmatprep.subr.bf16.mxu0 %v2609
  %2641 = vmatpush1.bf16.msra.mxu0 %v2608
  %2642 = vmatprep.subr.bf16.mxu0 %v2611
  %2643 = vmatpush1.bf16.msra.mxu0 %v2610
  %2644 = vmatprep.subr.bf16.mxu0 %v2613
  %2645 = vmatpush1.bf16.msra.mxu0 %v2612
  %2646 = vmatprep.subr.bf16.mxu0 %v2615
  %2647 = vmatpush1.bf16.msra.mxu0 %v2614
  %2648 = vmatprep.subr.bf16.mxu0 %v2617
  %2649 = vmatpush1.bf16.msra.mxu0 %v2616
  %2650 = vmatprep.subr.bf16.mxu0 %v2619
  %2651 = vmatpush1.bf16.msra.mxu0 %v2618
  %2652 = vmatprep.subr.bf16.mxu0 0
  %2653 = vmatpush1.bf16.msra.mxu0 0
  %2654 = vmatprep.subr.bf16.mxu0 0
  %2655 = vmatpush1.bf16.msra.mxu0 0
  %2656 = vmatprep.subr.bf16.mxu0 0
  %2657 = vmatpush1.bf16.msra.mxu0 0
  %2658 = vmatprep.subr.bf16.mxu0 0
  %2659 = vmatpush1.bf16.msra.mxu0 0
  %2660 = vmatprep.subr.bf16.mxu0 0
  %2661 = vmatpush1.bf16.msra.mxu0 0
  %2662 = vmatprep.subr.bf16.mxu0 0
  %2663 = vmatpush1.bf16.msra.mxu0 0
  %2664 = vmatprep.subr.bf16.mxu0 0
  %2665 = vmatpush1.bf16.msra.mxu0 0
  %2666 = vmatprep.subr.bf16.mxu0 0
  %2667 = vmatpush1.bf16.msra.mxu0 0
  %2668 = vmatprep.mubr.bf16.mxu0 0
  %2669 = vmatmul.mubr.bf16.gmra.mrb[0].mxu0 %v1104
  %v2670 = vpop.f32.mrb[0].mxu0
  %v2671 = vadd.f32 0.0, %v2670
  %v2672 = vpop.f32.mrb[0].mxu0
  %v2673 = vadd.f32 0.0, %v2672
  %v2674 = vpop.f32.mrb[0].mxu0
  %v2675 = vadd.f32 0.0, %v2674
  %v2676 = vpop.f32.mrb[0].mxu0
  %v2677 = vadd.f32 0.0, %v2676
  %2678 = vmatprep.mubr.bf16.mxu0 0
  %2679 = vmatmul.mubr.bf16.gmra.mrb[0].mxu0 %v1105
  %v2680 = vpop.f32.mrb[0].mxu0
  %v2681 = vadd.f32 0.0, %v2680
  %v2682 = vpop.f32.mrb[0].mxu0
  %v2683 = vadd.f32 0.0, %v2682
  %v2684 = vpop.f32.mrb[0].mxu0
  %v2685 = vadd.f32 0.0, %v2684
  %v2686 = vpop.f32.mrb[0].mxu0
  %v2687 = vadd.f32 0.0, %v2686
  %2688 = vdwg.mxu0
  %v2689 = vadd.f32 %v2531, %v2671
  %v2690 = vadd.f32 %v2532, %v2673
  %v2691 = vadd.f32 %v2533, %v2675
  %v2692 = vadd.f32 %v2534, %v2677
  %v2693 = vadd.f32 %v2535, %v2681
  %v2694 = vadd.f32 %v2536, %v2683
  %v2695 = vadd.f32 %v2537, %v2685
  %v2696 = vadd.f32 %v2538, %v2687
  %v2697 = vmax.f32 %v2689, %v2690
  %v2698 = vmax.f32 %v2691, %v2692
  %v2699 = vmax.f32 %v2693, %v2694
  %v2700 = vmax.f32 %v2695, %v2696
  %2701 = vmatprep.subr.bf16.mxu0 %v1985
  %2702 = vmatpush1.bf16.msra.mxu0 %v1984
  %2703 = vmatprep.subr.bf16.mxu0 %v1987
  %2704 = vmatpush1.bf16.msra.mxu0 %v1986
  %2705 = vmatprep.subr.bf16.mxu0 %v1989
  %2706 = vmatpush1.bf16.msra.mxu0 %v1988
  %2707 = vmatprep.subr.bf16.mxu0 %v1991
  %2708 = vmatpush1.bf16.msra.mxu0 %v1990
  %2709 = vmatprep.subr.bf16.mxu0 %v1993
  %2710 = vmatpush1.bf16.msra.mxu0 %v1992
  %2711 = vmatprep.subr.bf16.mxu0 %v1995
  %2712 = vmatpush1.bf16.msra.mxu0 %v1994
  %2713 = vmatprep.subr.bf16.mxu0 %v1997
  %2714 = vmatpush1.bf16.msra.mxu0 %v1996
  %2715 = vmatprep.subr.bf16.mxu0 %v1999
  %2716 = vmatpush1.bf16.msra.mxu0 %v1998
  %2717 = vmatprep.subr.bf16.mxu0 0
  %2718 = vmatpush1.bf16.msra.mxu0 0
  %2719 = vmatprep.subr.bf16.mxu0 0
  %2720 = vmatpush1.bf16.msra.mxu0 0
  %2721 = vmatprep.subr.bf16.mxu0 0
  %2722 = vmatpush1.bf16.msra.mxu0 0
  %2723 = vmatprep.subr.bf16.mxu0 0
  %2724 = vmatpush1.bf16.msra.mxu0 0
  %2725 = vmatprep.subr.bf16.mxu0 0
  %2726 = vmatpush1.bf16.msra.mxu0 0
  %2727 = vmatprep.subr.bf16.mxu0 0
  %2728 = vmatpush1.bf16.msra.mxu0 0
  %2729 = vmatprep.subr.bf16.mxu0 0
  %2730 = vmatpush1.bf16.msra.mxu0 0
  %2731 = vmatprep.subr.bf16.mxu0 0
  %2732 = vmatpush1.bf16.msra.mxu0 0
  %2733 = vmatprep.mubr.bf16.mxu0 0
  %2734 = vmatmul.mubr.bf16.gmra.mrb[0].mxu0 %v2225
  %v2735 = vpop.f32.mrb[0].mxu0
  %v2736 = vadd.f32 0.0, %v2735
  %v2737 = vpop.f32.mrb[0].mxu0
  %v2738 = vadd.f32 0.0, %v2737
  %v2739 = vpop.f32.mrb[0].mxu0
  %v2740 = vadd.f32 0.0, %v2739
  %v2741 = vpop.f32.mrb[0].mxu0
  %v2742 = vadd.f32 0.0, %v2741
  %2743 = vmatprep.mubr.bf16.mxu0 0
  %2744 = vmatmul.mubr.bf16.gmra.mrb[0].mxu0 %v2227
  %v2745 = vpop.f32.mrb[0].mxu0
  %v2746 = vadd.f32 0.0, %v2745
  %v2747 = vpop.f32.mrb[0].mxu0
  %v2748 = vadd.f32 0.0, %v2747
  %v2749 = vpop.f32.mrb[0].mxu0
  %v2750 = vadd.f32 0.0, %v2749
  %v2751 = vpop.f32.mrb[0].mxu0
  %v2752 = vadd.f32 0.0, %v2751
  %2753 = vdwg.mxu0
  %2754 = vmatprep.subr.bf16.mxu0 %v2118
  %2755 = vmatpush1.bf16.msra.mxu0 %v2117
  %2756 = vmatprep.subr.bf16.mxu0 %v2120
  %2757 = vmatpush1.bf16.msra.mxu0 %v2119
  %2758 = vmatprep.subr.bf16.mxu0 %v2122
  %2759 = vmatpush1.bf16.msra.mxu0 %v2121
  %2760 = vmatprep.subr.bf16.mxu0 %v2124
  %2761 = vmatpush1.bf16.msra.mxu0 %v2123
  %2762 = vmatprep.subr.bf16.mxu0 %v2126
  %2763 = vmatpush1.bf16.msra.mxu0 %v2125
  %2764 = vmatprep.subr.bf16.mxu0 %v2128
  %2765 = vmatpush1.bf16.msra.mxu0 %v2127
  %2766 = vmatprep.subr.bf16.mxu0 %v2130
  %2767 = vmatpush1.bf16.msra.mxu0 %v2129
  %2768 = vmatprep.subr.bf16.mxu0 %v2132
  %2769 = vmatpush1.bf16.msra.mxu0 %v2131
  %2770 = vmatprep.subr.bf16.mxu0 0
  %2771 = vmatpush1.bf16.msra.mxu0 0
  %2772 = vmatprep.subr.bf16.mxu0 0
  %2773 = vmatpush1.bf16.msra.mxu0 0
  %2774 = vmatprep.subr.bf16.mxu0 0
  %2775 = vmatpush1.bf16.msra.mxu0 0
  %2776 = vmatprep.subr.bf16.mxu0 0
  %2777 = vmatpush1.bf16.msra.mxu0 0
  %2778 = vmatprep.subr.bf16.mxu0 0
  %2779 = vmatpush1.bf16.msra.mxu0 0
  %2780 = vmatprep.subr.bf16.mxu0 0
  %2781 = vmatpush1.bf16.msra.mxu0 0
  %2782 = vmatprep.subr.bf16.mxu0 0
  %2783 = vmatpush1.bf16.msra.mxu0 0
  %2784 = vmatprep.subr.bf16.mxu0 0
  %2785 = vmatpush1.bf16.msra.mxu0 0
  %2786 = vmatprep.mubr.bf16.mxu0 0
  %2787 = vmatmul.mubr.bf16.gmra.mrb[0].mxu0 %v1900
  %v2788 = vpop.f32.mrb[0].mxu0
  %v2789 = vadd.f32 %v2736, %v2788
  %v2790 = vpop.f32.mrb[0].mxu0
  %v2791 = vadd.f32 %v2738, %v2790
  %v2792 = vpop.f32.mrb[0].mxu0
  %v2793 = vadd.f32 %v2740, %v2792
  %v2794 = vpop.f32.mrb[0].mxu0
  %v2795 = vadd.f32 %v2742, %v2794
  %2796 = vmatprep.mubr.bf16.mxu0 0
  %2797 = vmatmul.mubr.bf16.gmra.mrb[0].mxu0 %v1901
  %v2798 = vpop.f32.mrb[0].mxu0
  %v2799 = vadd.f32 %v2746, %v2798
  %v2800 = vpop.f32.mrb[0].mxu0
  %v2801 = vadd.f32 %v2748, %v2800
  %v2802 = vpop.f32.mrb[0].mxu0
  %v2803 = vadd.f32 %v2750, %v2802
  %v2804 = vpop.f32.mrb[0].mxu0
  %v2805 = vadd.f32 %v2752, %v2804
  %2806 = vdwg.mxu0
  %2807 = vmatprep.subr.bf16.mxu0 %v2279
  %2808 = vmatpush1.bf16.msra.mxu0 %v2278
  %2809 = vmatprep.subr.bf16.mxu0 %v2281
  %2810 = vmatpush1.bf16.msra.mxu0 %v2280
  %2811 = vmatprep.subr.bf16.mxu0 %v2283
  %2812 = vmatpush1.bf16.msra.mxu0 %v2282
  %2813 = vmatprep.subr.bf16.mxu0 %v2285
  %2814 = vmatpush1.bf16.msra.mxu0 %v2284
  %2815 = vmatprep.subr.bf16.mxu0 %v2287
  %2816 = vmatpush1.bf16.msra.mxu0 %v2286
  %2817 = vmatprep.subr.bf16.mxu0 %v2289
  %2818 = vmatpush1.bf16.msra.mxu0 %v2288
  %2819 = vmatprep.subr.bf16.mxu0 %v2291
  %2820 = vmatpush1.bf16.msra.mxu0 %v2290
  %2821 = vmatprep.subr.bf16.mxu0 %v2293
  %2822 = vmatpush1.bf16.msra.mxu0 %v2292
  %2823 = vmatprep.subr.bf16.mxu0 0
  %2824 = vmatpush1.bf16.msra.mxu0 0
  %2825 = vmatprep.subr.bf16.mxu0 0
  %2826 = vmatpush1.bf16.msra.mxu0 0
  %2827 = vmatprep.subr.bf16.mxu0 0
  %2828 = vmatpush1.bf16.msra.mxu0 0
  %2829 = vmatprep.subr.bf16.mxu0 0
  %2830 = vmatpush1.bf16.msra.mxu0 0
  %2831 = vmatprep.subr.bf16.mxu0 0
  %2832 = vmatpush1.bf16.msra.mxu0 0
  %2833 = vmatprep.subr.bf16.mxu0 0
  %2834 = vmatpush1.bf16.msra.mxu0 0
  %2835 = vmatprep.subr.bf16.mxu0 0
  %2836 = vmatpush1.bf16.msra.mxu0 0
  %2837 = vmatprep.subr.bf16.mxu0 0
  %2838 = vmatpush1.bf16.msra.mxu0 0
  %2839 = vmatprep.mubr.bf16.mxu0 0
  %2840 = vmatmul.mubr.bf16.gmra.mrb[0].mxu0 %v2393
  %v2841 = vpop.f32.mrb[0].mxu0
  %v2842 = vadd.f32 0.0, %v2841
  %v2843 = vpop.f32.mrb[0].mxu0
  %v2844 = vadd.f32 0.0, %v2843
  %v2845 = vpop.f32.mrb[0].mxu0
  %v2846 = vadd.f32 0.0, %v2845
  %v2847 = vpop.f32.mrb[0].mxu0
  %v2848 = vadd.f32 0.0, %v2847
  %2849 = vmatprep.mubr.bf16.mxu0 0
  %2850 = vmatmul.mubr.bf16.gmra.mrb[0].mxu0 %v2395
  %v2851 = vpop.f32.mrb[0].mxu0
  %v2852 = vadd.f32 0.0, %v2851
  %v2853 = vpop.f32.mrb[0].mxu0
  %v2854 = vadd.f32 0.0, %v2853
  %v2855 = vpop.f32.mrb[0].mxu0
  %v2856 = vadd.f32 0.0, %v2855
  %v2857 = vpop.f32.mrb[0].mxu0
  %v2858 = vadd.f32 0.0, %v2857
  %2859 = vdwg.mxu0
  %v2860 = vadd.f32 %v2789, %v2842
  %v2861 = vadd.f32 %v2791, %v2844
  %v2862 = vadd.f32 %v2793, %v2846
  %v2863 = vadd.f32 %v2795, %v2848
  %v2864 = vadd.f32 %v2799, %v2852
  %v2865 = vadd.f32 %v2801, %v2854
  %v2866 = vadd.f32 %v2803, %v2856
  %v2867 = vadd.f32 %v2805, %v2858
  %2868 = vmatprep.subr.bf16.mxu0 %v2447
  %2869 = vmatpush1.bf16.msra.mxu0 %v2446
  %2870 = vmatprep.subr.bf16.mxu0 %v2449
  %2871 = vmatpush1.bf16.msra.mxu0 %v2448
  %2872 = vmatprep.subr.bf16.mxu0 %v2451
  %2873 = vmatpush1.bf16.msra.mxu0 %v2450
  %2874 = vmatprep.subr.bf16.mxu0 %v2453
  %2875 = vmatpush1.bf16.msra.mxu0 %v2452
  %2876 = vmatprep.subr.bf16.mxu0 %v2455
  %2877 = vmatpush1.bf16.msra.mxu0 %v2454
  %2878 = vmatprep.subr.bf16.mxu0 %v2457
  %2879 = vmatpush1.bf16.msra.mxu0 %v2456
  %2880 = vmatprep.subr.bf16.mxu0 %v2459
  %2881 = vmatpush1.bf16.msra.mxu0 %v2458
  %2882 = vmatprep.subr.bf16.mxu0 %v2461
  %2883 = vmatpush1.bf16.msra.mxu0 %v2460
  %2884 = vmatprep.subr.bf16.mxu0 0
  %2885 = vmatpush1.bf16.msra.mxu0 0
  %2886 = vmatprep.subr.bf16.mxu0 0
  %2887 = vmatpush1.bf16.msra.mxu0 0
  %2888 = vmatprep.subr.bf16.mxu0 0
  %2889 = vmatpush1.bf16.msra.mxu0 0
  %2890 = vmatprep.subr.bf16.mxu0 0
  %2891 = vmatpush1.bf16.msra.mxu0 0
  %2892 = vmatprep.subr.bf16.mxu0 0
  %2893 = vmatpush1.bf16.msra.mxu0 0
  %2894 = vmatprep.subr.bf16.mxu0 0
  %2895 = vmatpush1.bf16.msra.mxu0 0
  %2896 = vmatprep.subr.bf16.mxu0 0
  %2897 = vmatpush1.bf16.msra.mxu0 0
  %2898 = vmatprep.subr.bf16.mxu0 0
  %2899 = vmatpush1.bf16.msra.mxu0 0
  %2900 = vmatprep.mubr.bf16.mxu0 0
  %2901 = vmatmul.mubr.bf16.gmra.mrb[0].mxu0 %v1104
  %v2902 = vpop.f32.mrb[0].mxu0
  %v2903 = vadd.f32 0.0, %v2902
  %v2904 = vpop.f32.mrb[0].mxu0
  %v2905 = vadd.f32 0.0, %v2904
  %v2906 = vpop.f32.mrb[0].mxu0
  %v2907 = vadd.f32 0.0, %v2906
  %v2908 = vpop.f32.mrb[0].mxu0
  %v2909 = vadd.f32 0.0, %v2908
  %2910 = vmatprep.mubr.bf16.mxu0 0
  %2911 = vmatmul.mubr.bf16.gmra.mrb[0].mxu0 %v1105
  %v2912 = vpop.f32.mrb[0].mxu0
  %v2913 = vadd.f32 0.0, %v2912
  %v2914 = vpop.f32.mrb[0].mxu0
  %v2915 = vadd.f32 0.0, %v2914
  %v2916 = vpop.f32.mrb[0].mxu0
  %v2917 = vadd.f32 0.0, %v2916
  %v2918 = vpop.f32.mrb[0].mxu0
  %v2919 = vadd.f32 0.0, %v2918
  %2920 = vdwg.mxu0
  %v2921 = vadd.f32 %v2860, %v2903
  %v2922 = vadd.f32 %v2861, %v2905
  %v2923 = vadd.f32 %v2862, %v2907
  %v2924 = vadd.f32 %v2863, %v2909
  %v2925 = vadd.f32 %v2864, %v2913
  %v2926 = vadd.f32 %v2865, %v2915
  %v2927 = vadd.f32 %v2866, %v2917
  %v2928 = vadd.f32 %v2867, %v2919
  %2929 = vmatprep.subr.bf16.mxu0 %v2605
  %2930 = vmatpush1.bf16.msra.mxu0 %v2604
  %2931 = vmatprep.subr.bf16.mxu0 %v2607
  %2932 = vmatpush1.bf16.msra.mxu0 %v2606
  %2933 = vmatprep.subr.bf16.mxu0 %v2609
  %2934 = vmatpush1.bf16.msra.mxu0 %v2608
  %2935 = vmatprep.subr.bf16.mxu0 %v2611
  %2936 = vmatpush1.bf16.msra.mxu0 %v2610
  %2937 = vmatprep.subr.bf16.mxu0 %v2613
  %2938 = vmatpush1.bf16.msra.mxu0 %v2612
  %2939 = vmatprep.subr.bf16.mxu0 %v2615
  %2940 = vmatpush1.bf16.msra.mxu0 %v2614
  %2941 = vmatprep.subr.bf16.mxu0 %v2617
  %2942 = vmatpush1.bf16.msra.mxu0 %v2616
  %2943 = vmatprep.subr.bf16.mxu0 %v2619
  %2944 = vmatpush1.bf16.msra.mxu0 %v2618
  %2945 = vmatprep.subr.bf16.mxu0 0
  %2946 = vmatpush1.bf16.msra.mxu0 0
  %2947 = vmatprep.subr.bf16.mxu0 0
  %2948 = vmatpush1.bf16.msra.mxu0 0
  %2949 = vmatprep.subr.bf16.mxu0 0
  %2950 = vmatpush1.bf16.msra.mxu0 0
  %2951 = vmatprep.subr.bf16.mxu0 0
  %2952 = vmatpush1.bf16.msra.mxu0 0
  %2953 = vmatprep.subr.bf16.mxu0 0
  %2954 = vmatpush1.bf16.msra.mxu0 0
  %2955 = vmatprep.subr.bf16.mxu0 0
  %2956 = vmatpush1.bf16.msra.mxu0 0
  %2957 = vmatprep.subr.bf16.mxu0 0
  %2958 = vmatpush1.bf16.msra.mxu0 0
  %2959 = vmatprep.subr.bf16.mxu0 0
  %2960 = vmatpush1.bf16.msra.mxu0 0
  %2961 = vmatprep.mubr.bf16.mxu0 0
  %2962 = vmatmul.mubr.bf16.gmra.mrb[0].mxu0 %v1901
  %v2963 = vpop.f32.mrb[0].mxu0
  %v2964 = vadd.f32 0.0, %v2963
  %v2965 = vpop.f32.mrb[0].mxu0
  %v2966 = vadd.f32 0.0, %v2965
  %v2967 = vpop.f32.mrb[0].mxu0
  %v2968 = vadd.f32 0.0, %v2967
  %v2969 = vpop.f32.mrb[0].mxu0
  %v2970 = vadd.f32 0.0, %v2969
  %2971 = vmatprep.mubr.bf16.mxu0 0
  %2972 = vmatmul.mubr.bf16.gmra.mrb[0].mxu0 %v1902
  %v2973 = vpop.f32.mrb[0].mxu0
  %v2974 = vadd.f32 0.0, %v2973
  %v2975 = vpop.f32.mrb[0].mxu0
  %v2976 = vadd.f32 0.0, %v2975
  %v2977 = vpop.f32.mrb[0].mxu0
  %v2978 = vadd.f32 0.0, %v2977
  %v2979 = vpop.f32.mrb[0].mxu0
  %v2980 = vadd.f32 0.0, %v2979
  %2981 = vdwg.mxu0
  %v2982 = vadd.f32 %v2921, %v2964
  %v2983 = vadd.f32 %v2922, %v2966
  %v2984 = vadd.f32 %v2923, %v2968
  %v2985 = vadd.f32 %v2924, %v2970
  %v2986 = vadd.f32 %v2925, %v2974
  %v2987 = vadd.f32 %v2926, %v2976
  %v2988 = vadd.f32 %v2927, %v2978
  %v2989 = vadd.f32 %v2928, %v2980
  %v2990 = vmax.f32 %v2982, %v2983
  %v2991 = vmax.f32 %v2984, %v2985
  %v2992 = vmax.f32 %v2986, %v2987
  %v2993 = vmax.f32 %v2988, %v2989
  %v2994 = vmax.f32 %v2697, %v2990
  %v2995 = vmax.f32 %v2698, %v2991
  %v2996 = vmax.f32 %v2699, %v2992
  %v2997 = vmax.f32 %v2700, %v2993
  %v2998 = vld [vmem:[%s6] sm:$0x1]
  %v3000 = vlaneseq
  %v3001 = vshrl.u32 %v3000, 7
  %v3002 = vsub.s32 0, %v3001
  %v3003 = vrot.slane %v2998, %v3002
  %v3005 = vadd.f32 %v2994, %v3003
  %v3006 = vadd.f32 %v2995, %v3003
  %v3007 = vadd.f32 %v2996, %v3003
  %v3008 = vadd.f32 %v2997, %v3003
  %v3009 = vmax.f32 %v3005, 0.0
  %v3010 = vmax.f32 %v3006, 0.0
  %v3011 = vmax.f32 %v3007, 0.0
  %v3012 = vmax.f32 %v3008, 0.0
  %v3013 = vpack.c.bf16 %v3010, %v3009
  %v3014 = vpack.c.bf16 %v3012, %v3011
  %v3015 = vld [vmem:[%s3] sm:$0xf]
  %v3016 = vld [vmem:[%s3 + $0x4] sm:$0xf]
  %v3017 = vld [vmem:[%s3 + $0x8] sm:$0xf]
  %v3018 = vld [vmem:[%s3 + $0xc] sm:$0xf]
  %v3019 = vld [vmem:[%s3 + $0x10] sm:$0xf]
  %v3020 = vld [vmem:[%s3 + $0x14] sm:$0xf]
  %v3021 = vld [vmem:[%s3 + $0x18] sm:$0xf]
  %v3022 = vld [vmem:[%s3 + $0x1c] sm:$0xf]
  %v3023 = vld [vmem:[%s3 + $0x20] sm:$0xf]
  %v3024 = vld [vmem:[%s3 + $0x24] sm:$0xf]
  %v3025 = vld [vmem:[%s3 + $0x28] sm:$0xf]
  %v3026 = vld [vmem:[%s3 + $0x2c] sm:$0xf]
  %v3027 = vld [vmem:[%s3 + $0x30] sm:$0xf]
  %v3028 = vld [vmem:[%s3 + $0x34] sm:$0xf]
  %v3029 = vld [vmem:[%s3 + $0x38] sm:$0xf]
  %v3030 = vld [vmem:[%s3 + $0x3c] sm:$0xf]
  %s3031 = scalar_lea.vmem %s3, 64
  %v3032 = vld [vmem:[%s3031] sm:$0xf]
  %v3033 = vld [vmem:[%s3031 + $0x4] sm:$0xf]
  %v3034 = vld [vmem:[%s3031 + $0x8] sm:$0xf]
  %v3035 = vld [vmem:[%s3031 + $0xc] sm:$0xf]
  %v3036 = vld [vmem:[%s3031 + $0x10] sm:$0xf]
  %v3037 = vld [vmem:[%s3031 + $0x14] sm:$0xf]
  %v3038 = vld [vmem:[%s3031 + $0x18] sm:$0xf]
  %v3039 = vld [vmem:[%s3031 + $0x1c] sm:$0xf]
  %v3040 = vld [vmem:[%s3031 + $0x20] sm:$0xf]
  %v3041 = vld [vmem:[%s3031 + $0x24] sm:$0xf]
  %v3042 = vld [vmem:[%s3031 + $0x28] sm:$0xf]
  %v3043 = vld [vmem:[%s3031 + $0x2c] sm:$0xf]
  %v3044 = vld [vmem:[%s3031 + $0x30] sm:$0xf]
  %v3045 = vld [vmem:[%s3031 + $0x34] sm:$0xf]
  %v3046 = vld [vmem:[%s3031 + $0x38] sm:$0xf]
  %v3047 = vld [vmem:[%s3031 + $0x3c] sm:$0xf]
  %v3049 = vrot.slane %v3013, 4
  %v3067 = vunpack.c.l.b16 %v3032
  %v3068 = vunpack.c.l.b16 %v3033
  %v3069 = vunpack.c.l.b16 %v3034
  %v3070 = vunpack.c.l.b16 %v3035
  %v3071 = vunpack.c.l.b16 %v3036
  %v3072 = vunpack.c.l.b16 %v3037
  %v3073 = vunpack.c.l.b16 %v3038
  %v3074 = vunpack.c.l.b16 %v3039
  %v3075 = vunpack.c.l.b16 %v3040
  %v3076 = vunpack.c.l.b16 %v3041
  %v3077 = vunpack.c.l.b16 %v3042
  %v3078 = vunpack.c.l.b16 %v3043
  %v3079 = vunpack.c.l.b16 %v3044
  %v3080 = vunpack.c.l.b16 %v3045
  %v3081 = vunpack.c.l.b16 %v3046
  %v3082 = vunpack.c.l.b16 %v3047
  %v3083 = vpack.c.b16 %v3068, %v3067
  %v3084 = vpack.c.b16 %v3070, %v3069
  %v3085 = vpack.c.b16 %v3072, %v3071
  %v3086 = vpack.c.b16 %v3074, %v3073
  %v3087 = vpack.c.b16 %v3076, %v3075
  %v3088 = vpack.c.b16 %v3078, %v3077
  %v3089 = vpack.c.b16 %v3080, %v3079
  %v3090 = vpack.c.b16 %v3082, %v3081
  %3099 = vmatprep.subr.bf16.mxu0 0
  %3100 = vmatpush1.bf16.msra.mxu0 %v3083
  %3101 = vmatprep.subr.bf16.mxu0 0
  %3102 = vmatpush1.bf16.msra.mxu0 %v3084
  %3103 = vmatprep.subr.bf16.mxu0 0
  %3104 = vmatpush1.bf16.msra.mxu0 %v3085
  %3105 = vmatprep.subr.bf16.mxu0 0
  %3106 = vmatpush1.bf16.msra.mxu0 %v3086
  %3107 = vmatprep.subr.bf16.mxu0 0
  %3108 = vmatpush1.bf16.msra.mxu0 %v3087
  %3109 = vmatprep.subr.bf16.mxu0 0
  %3110 = vmatpush1.bf16.msra.mxu0 %v3088
  %3111 = vmatprep.subr.bf16.mxu0 0
  %3112 = vmatpush1.bf16.msra.mxu0 %v3089
  %3113 = vmatprep.subr.bf16.mxu0 0
  %3114 = vmatpush1.bf16.msra.mxu0 %v3090
  %3115 = vmatprep.subr.bf16.mxu0 0
  %3116 = vmatpush1.bf16.msra.mxu0 0
  %3117 = vmatprep.subr.bf16.mxu0 0
  %3118 = vmatpush1.bf16.msra.mxu0 0
  %3119 = vmatprep.subr.bf16.mxu0 0
  %3120 = vmatpush1.bf16.msra.mxu0 0
  %3121 = vmatprep.subr.bf16.mxu0 0
  %3122 = vmatpush1.bf16.msra.mxu0 0
  %3123 = vmatprep.subr.bf16.mxu0 0
  %3124 = vmatpush1.bf16.msra.mxu0 0
  %3125 = vmatprep.subr.bf16.mxu0 0
  %3126 = vmatpush1.bf16.msra.mxu0 0
  %3127 = vmatprep.subr.bf16.mxu0 0
  %3128 = vmatpush1.bf16.msra.mxu0 0
  %3129 = vmatprep.subr.bf16.mxu0 0
  %3130 = vmatpush1.bf16.msra.mxu0 0
  %3131 = vmatprep.mubr.bf16.mxu0 0
  %3132 = vmatmul.mubr.bf16.gmra.mrb[0].mxu0 %v3049
  %v3133 = vpop.f32.mrb[0].mxu0
  %v3134 = vadd.f32 0.0, %v3133
  %v3135 = vpop.f32.mrb[0].mxu0
  %v3136 = vpop.f32.mrb[0].mxu0
  %v3137 = vpop.f32.mrb[0].mxu0
  %3138 = vdwg.mxu0
  %v3155 = vunpack.c.l.b16 %v3015
  %v3156 = vunpack.c.l.b16 %v3016
  %v3157 = vunpack.c.l.b16 %v3017
  %v3158 = vunpack.c.l.b16 %v3018
  %v3159 = vunpack.c.l.b16 %v3019
  %v3160 = vunpack.c.l.b16 %v3020
  %v3161 = vunpack.c.l.b16 %v3021
  %v3162 = vunpack.c.l.b16 %v3022
  %v3163 = vunpack.c.l.b16 %v3023
  %v3164 = vunpack.c.l.b16 %v3024
  %v3165 = vunpack.c.l.b16 %v3025
  %v3166 = vunpack.c.l.b16 %v3026
  %v3167 = vunpack.c.l.b16 %v3027
  %v3168 = vunpack.c.l.b16 %v3028
  %v3169 = vunpack.c.l.b16 %v3029
  %v3170 = vunpack.c.l.b16 %v3030
  %v3171 = vpack.c.b16 %v3156, %v3155
  %v3172 = vpack.c.b16 %v3158, %v3157
  %v3173 = vpack.c.b16 %v3160, %v3159
  %v3174 = vpack.c.b16 %v3162, %v3161
  %v3175 = vpack.c.b16 %v3164, %v3163
  %v3176 = vpack.c.b16 %v3166, %v3165
  %v3177 = vpack.c.b16 %v3168, %v3167
  %v3178 = vpack.c.b16 %v3170, %v3169
  %3187 = vmatprep.subr.bf16.mxu0 0
  %3188 = vmatpush1.bf16.msra.mxu0 %v3171
  %3189 = vmatprep.subr.bf16.mxu0 0
  %3190 = vmatpush1.bf16.msra.mxu0 %v3172
  %3191 = vmatprep.subr.bf16.mxu0 0
  %3192 = vmatpush1.bf16.msra.mxu0 %v3173
  %3193 = vmatprep.subr.bf16.mxu0 0
  %3194 = vmatpush1.bf16.msra.mxu0 %v3174
  %3195 = vmatprep.subr.bf16.mxu0 0
  %3196 = vmatpush1.bf16.msra.mxu0 %v3175
  %3197 = vmatprep.subr.bf16.mxu0 0
  %3198 = vmatpush1.bf16.msra.mxu0 %v3176
  %3199 = vmatprep.subr.bf16.mxu0 0
  %3200 = vmatpush1.bf16.msra.mxu0 %v3177
  %3201 = vmatprep.subr.bf16.mxu0 0
  %3202 = vmatpush1.bf16.msra.mxu0 %v3178
  %3203 = vmatprep.subr.bf16.mxu0 0
  %3204 = vmatpush1.bf16.msra.mxu0 0
  %3205 = vmatprep.subr.bf16.mxu0 0
  %3206 = vmatpush1.bf16.msra.mxu0 0
  %3207 = vmatprep.subr.bf16.mxu0 0
  %3208 = vmatpush1.bf16.msra.mxu0 0
  %3209 = vmatprep.subr.bf16.mxu0 0
  %3210 = vmatpush1.bf16.msra.mxu0 0
  %3211 = vmatprep.subr.bf16.mxu0 0
  %3212 = vmatpush1.bf16.msra.mxu0 0
  %3213 = vmatprep.subr.bf16.mxu0 0
  %3214 = vmatpush1.bf16.msra.mxu0 0
  %3215 = vmatprep.subr.bf16.mxu0 0
  %3216 = vmatpush1.bf16.msra.mxu0 0
  %3217 = vmatprep.subr.bf16.mxu0 0
  %3218 = vmatpush1.bf16.msra.mxu0 0
  %3219 = vmatprep.mubr.bf16.mxu0 0
  %3220 = vmatmul.mubr.bf16.gmra.mrb[0].mxu0 %v3013
  %v3221 = vpop.f32.mrb[0].mxu0
  %v3222 = vadd.f32 %v3134, %v3221
  %v3223 = vpop.f32.mrb[0].mxu0
  %v3224 = vpop.f32.mrb[0].mxu0
  %v3225 = vpop.f32.mrb[0].mxu0
  %3226 = vdwg.mxu0
  %s3227 = scalar_lea.vmem %s3, 128
  %v3228 = vld [vmem:[%s3227] sm:$0xf]
  %v3229 = vld [vmem:[%s3227 + $0x4] sm:$0xf]
  %v3230 = vld [vmem:[%s3227 + $0x8] sm:$0xf]
  %v3231 = vld [vmem:[%s3227 + $0xc] sm:$0xf]
  %v3232 = vld [vmem:[%s3227 + $0x10] sm:$0xf]
  %v3233 = vld [vmem:[%s3227 + $0x14] sm:$0xf]
  %v3234 = vld [vmem:[%s3227 + $0x18] sm:$0xf]
  %v3235 = vld [vmem:[%s3227 + $0x1c] sm:$0xf]
  %v3236 = vld [vmem:[%s3227 + $0x20] sm:$0xf]
  %v3237 = vld [vmem:[%s3227 + $0x24] sm:$0xf]
  %v3238 = vld [vmem:[%s3227 + $0x28] sm:$0xf]
  %v3239 = vld [vmem:[%s3227 + $0x2c] sm:$0xf]
  %v3240 = vld [vmem:[%s3227 + $0x30] sm:$0xf]
  %v3241 = vld [vmem:[%s3227 + $0x34] sm:$0xf]
  %v3242 = vld [vmem:[%s3227 + $0x38] sm:$0xf]
  %v3243 = vld [vmem:[%s3227 + $0x3c] sm:$0xf]
  %v3260 = vunpack.c.l.b16 %v3228
  %v3261 = vunpack.c.l.b16 %v3229
  %v3262 = vunpack.c.l.b16 %v3230
  %v3263 = vunpack.c.l.b16 %v3231
  %v3264 = vunpack.c.l.b16 %v3232
  %v3265 = vunpack.c.l.b16 %v3233
  %v3266 = vunpack.c.l.b16 %v3234
  %v3267 = vunpack.c.l.b16 %v3235
  %v3268 = vunpack.c.l.b16 %v3236
  %v3269 = vunpack.c.l.b16 %v3237
  %v3270 = vunpack.c.l.b16 %v3238
  %v3271 = vunpack.c.l.b16 %v3239
  %v3272 = vunpack.c.l.b16 %v3240
  %v3273 = vunpack.c.l.b16 %v3241
  %v3274 = vunpack.c.l.b16 %v3242
  %v3275 = vunpack.c.l.b16 %v3243
  %v3276 = vpack.c.b16 %v3261, %v3260
  %v3277 = vpack.c.b16 %v3263, %v3262
  %v3278 = vpack.c.b16 %v3265, %v3264
  %v3279 = vpack.c.b16 %v3267, %v3266
  %v3280 = vpack.c.b16 %v3269, %v3268
  %v3281 = vpack.c.b16 %v3271, %v3270
  %v3282 = vpack.c.b16 %v3273, %v3272
  %v3283 = vpack.c.b16 %v3275, %v3274
  %3292 = vmatprep.subr.bf16.mxu0 0
  %3293 = vmatpush1.bf16.msra.mxu0 %v3276
  %3294 = vmatprep.subr.bf16.mxu0 0
  %3295 = vmatpush1.bf16.msra.mxu0 %v3277
  %3296 = vmatprep.subr.bf16.mxu0 0
  %3297 = vmatpush1.bf16.msra.mxu0 %v3278
  %3298 = vmatprep.subr.bf16.mxu0 0
  %3299 = vmatpush1.bf16.msra.mxu0 %v3279
  %3300 = vmatprep.subr.bf16.mxu0 0
  %3301 = vmatpush1.bf16.msra.mxu0 %v3280
  %3302 = vmatprep.subr.bf16.mxu0 0
  %3303 = vmatpush1.bf16.msra.mxu0 %v3281
  %3304 = vmatprep.subr.bf16.mxu0 0
  %3305 = vmatpush1.bf16.msra.mxu0 %v3282
  %3306 = vmatprep.subr.bf16.mxu0 0
  %3307 = vmatpush1.bf16.msra.mxu0 %v3283
  %3308 = vmatprep.subr.bf16.mxu0 0
  %3309 = vmatpush1.bf16.msra.mxu0 0
  %3310 = vmatprep.subr.bf16.mxu0 0
  %3311 = vmatpush1.bf16.msra.mxu0 0
  %3312 = vmatprep.subr.bf16.mxu0 0
  %3313 = vmatpush1.bf16.msra.mxu0 0
  %3314 = vmatprep.subr.bf16.mxu0 0
  %3315 = vmatpush1.bf16.msra.mxu0 0
  %3316 = vmatprep.subr.bf16.mxu0 0
  %3317 = vmatpush1.bf16.msra.mxu0 0
  %3318 = vmatprep.subr.bf16.mxu0 0
  %3319 = vmatpush1.bf16.msra.mxu0 0
  %3320 = vmatprep.subr.bf16.mxu0 0
  %3321 = vmatpush1.bf16.msra.mxu0 0
  %3322 = vmatprep.subr.bf16.mxu0 0
  %3323 = vmatpush1.bf16.msra.mxu0 0
  %3324 = vmatprep.mubr.bf16.mxu0 0
  %3325 = vmatmul.mubr.bf16.gmra.mrb[0].mxu0 %v3014
  %v3326 = vpop.f32.mrb[0].mxu0
  %v3327 = vadd.f32 0.0, %v3326
  %v3328 = vpop.f32.mrb[0].mxu0
  %v3329 = vpop.f32.mrb[0].mxu0
  %v3330 = vpop.f32.mrb[0].mxu0
  %3331 = vdwg.mxu0
  %v3332 = vadd.f32 %v3222, %v3327
  %s3333 = scalar_lea.vmem %s3, 192
  %v3334 = vld [vmem:[%s3333] sm:$0xf]
  %v3335 = vld [vmem:[%s3333 + $0x4] sm:$0xf]
  %v3336 = vld [vmem:[%s3333 + $0x8] sm:$0xf]
  %v3337 = vld [vmem:[%s3333 + $0xc] sm:$0xf]
  %v3338 = vld [vmem:[%s3333 + $0x10] sm:$0xf]
  %v3339 = vld [vmem:[%s3333 + $0x14] sm:$0xf]
  %v3340 = vld [vmem:[%s3333 + $0x18] sm:$0xf]
  %v3341 = vld [vmem:[%s3333 + $0x1c] sm:$0xf]
  %v3342 = vld [vmem:[%s3333 + $0x20] sm:$0xf]
  %v3343 = vld [vmem:[%s3333 + $0x24] sm:$0xf]
  %v3344 = vld [vmem:[%s3333 + $0x28] sm:$0xf]
  %v3345 = vld [vmem:[%s3333 + $0x2c] sm:$0xf]
  %v3346 = vld [vmem:[%s3333 + $0x30] sm:$0xf]
  %v3347 = vld [vmem:[%s3333 + $0x34] sm:$0xf]
  %v3348 = vld [vmem:[%s3333 + $0x38] sm:$0xf]
  %v3349 = vld [vmem:[%s3333 + $0x3c] sm:$0xf]
  %v3351 = vrot.slane %v3014, 4
  %v3369 = vunpack.c.l.b16 %v3334
  %v3370 = vunpack.c.l.b16 %v3335
  %v3371 = vunpack.c.l.b16 %v3336
  %v3372 = vunpack.c.l.b16 %v3337
  %v3373 = vunpack.c.l.b16 %v3338
  %v3374 = vunpack.c.l.b16 %v3339
  %v3375 = vunpack.c.l.b16 %v3340
  %v3376 = vunpack.c.l.b16 %v3341
  %v3377 = vunpack.c.l.b16 %v3342
  %v3378 = vunpack.c.l.b16 %v3343
  %v3379 = vunpack.c.l.b16 %v3344
  %v3380 = vunpack.c.l.b16 %v3345
  %v3381 = vunpack.c.l.b16 %v3346
  %v3382 = vunpack.c.l.b16 %v3347
  %v3383 = vunpack.c.l.b16 %v3348
  %v3384 = vunpack.c.l.b16 %v3349
  %v3385 = vpack.c.b16 %v3370, %v3369
  %v3386 = vpack.c.b16 %v3372, %v3371
  %v3387 = vpack.c.b16 %v3374, %v3373
  %v3388 = vpack.c.b16 %v3376, %v3375
  %v3389 = vpack.c.b16 %v3378, %v3377
  %v3390 = vpack.c.b16 %v3380, %v3379
  %v3391 = vpack.c.b16 %v3382, %v3381
  %v3392 = vpack.c.b16 %v3384, %v3383
  %3401 = vmatprep.subr.bf16.mxu0 0
  %3402 = vmatpush1.bf16.msra.mxu0 %v3385
  %3403 = vmatprep.subr.bf16.mxu0 0
  %3404 = vmatpush1.bf16.msra.mxu0 %v3386
  %3405 = vmatprep.subr.bf16.mxu0 0
  %3406 = vmatpush1.bf16.msra.mxu0 %v3387
  %3407 = vmatprep.subr.bf16.mxu0 0
  %3408 = vmatpush1.bf16.msra.mxu0 %v3388
  %3409 = vmatprep.subr.bf16.mxu0 0
  %3410 = vmatpush1.bf16.msra.mxu0 %v3389
  %3411 = vmatprep.subr.bf16.mxu0 0
  %3412 = vmatpush1.bf16.msra.mxu0 %v3390
  %3413 = vmatprep.subr.bf16.mxu0 0
  %3414 = vmatpush1.bf16.msra.mxu0 %v3391
  %3415 = vmatprep.subr.bf16.mxu0 0
  %3416 = vmatpush1.bf16.msra.mxu0 %v3392
  %3417 = vmatprep.subr.bf16.mxu0 0
  %3418 = vmatpush1.bf16.msra.mxu0 0
  %3419 = vmatprep.subr.bf16.mxu0 0
  %3420 = vmatpush1.bf16.msra.mxu0 0
  %3421 = vmatprep.subr.bf16.mxu0 0
  %3422 = vmatpush1.bf16.msra.mxu0 0
  %3423 = vmatprep.subr.bf16.mxu0 0
  %3424 = vmatpush1.bf16.msra.mxu0 0
  %3425 = vmatprep.subr.bf16.mxu0 0
  %3426 = vmatpush1.bf16.msra.mxu0 0
  %3427 = vmatprep.subr.bf16.mxu0 0
  %3428 = vmatpush1.bf16.msra.mxu0 0
  %3429 = vmatprep.subr.bf16.mxu0 0
  %3430 = vmatpush1.bf16.msra.mxu0 0
  %3431 = vmatprep.subr.bf16.mxu0 0
  %3432 = vmatpush1.bf16.msra.mxu0 0
  %3433 = vmatprep.mubr.bf16.mxu0 0
  %3434 = vmatmul.mubr.bf16.gmra.mrb[0].mxu0 %v3351
  %v3435 = vpop.f32.mrb[0].mxu0
  %v3436 = vadd.f32 0.0, %v3435
  %v3437 = vpop.f32.mrb[0].mxu0
  %v3438 = vpop.f32.mrb[0].mxu0
  %v3439 = vpop.f32.mrb[0].mxu0
  %3440 = vdwg.mxu0
  %v3441 = vadd.f32 %v3332, %v3436
  %v3442 = vld [vmem:[%s7] sm:$0x1]
  %v3444 = vlaneseq
  %v3445 = vshrl.u32 %v3444, 7
  %v3446 = vsub.s32 0, %v3445
  %v3447 = vrot.slane %v3442, %v3446
  %v3449 = vadd.f32 %v3441, %v3447
  %v3450 = vmax.f32 %v3449, 0.0
  %v3451 = vpack.c.bf16 %v3450, %v3450
  %v3452 = vld [vmem:[%s4] sm:$0xf]
  %v3453 = vld [vmem:[%s4 + $0x4] sm:$0xf]
  %v3454 = vld [vmem:[%s4 + $0x8] sm:$0xf]
  %v3455 = vld [vmem:[%s4 + $0xc] sm:$0xf]
  %v3456 = vld [vmem:[%s4 + $0x10] sm:$0xf]
  %v3457 = vld [vmem:[%s4 + $0x14] sm:$0xf]
  %v3458 = vld [vmem:[%s4 + $0x18] sm:$0x1]
  %v3459 = vld [vmem:[%s8] sm:$0x1]
  %v3461 = vlaneseq
  %v3462 = vshrl.u32 %v3461, 7
  %v3463 = vsub.s32 0, %v3462
  %v3464 = vrot.slane %v3459, %v3463
  %v3473 = vunpack.c.l.b16 %v3452
  %v3474 = vunpack.c.l.b16 %v3453
  %v3475 = vunpack.c.l.b16 %v3454
  %v3476 = vunpack.c.l.b16 %v3455
  %v3477 = vunpack.c.l.b16 %v3456
  %v3478 = vunpack.c.l.b16 %v3457
  %v3479 = vunpack.c.l.b16 %v3458
  %v3480 = vpack.c.b16 %v3474, %v3473
  %v3481 = vpack.c.b16 %v3476, %v3475
  %v3482 = vpack.c.b16 %v3478, %v3477
  %v3483 = vpack.c.b16 %v3479, %v3479
  %vm3487 = vcmask 408576
  %v3489 = vsel %vm3487, %v3451, 0
  %vm3491 = vcmask 1040384
  %v3493 = vsel %vm3491, %v3483, 0
  %3495 = vmatprep.subr.bf16.mxu0 0
  %3496 = vmatpush1.bf16.msra.mxu0 %v3480
  %3497 = vmatprep.subr.bf16.mxu0 0
  %3498 = vmatpush1.bf16.msra.mxu0 %v3481
  %3499 = vmatprep.subr.bf16.mxu0 0
  %3500 = vmatpush1.bf16.msra.mxu0 %v3482
  %3501 = vmatprep.subr.bf16.mxu0 0
  %3502 = vmatpush1.bf16.msra.mxu0 %v3493
  %3503 = vmatprep.subr.bf16.mxu0 0
  %3504 = vmatpush1.bf16.msra.mxu0 0
  %3505 = vmatprep.subr.bf16.mxu0 0
  %3506 = vmatpush1.bf16.msra.mxu0 0
  %3507 = vmatprep.subr.bf16.mxu0 0
  %3508 = vmatpush1.bf16.msra.mxu0 0
  %3509 = vmatprep.subr.bf16.mxu0 0
  %3510 = vmatpush1.bf16.msra.mxu0 0
  %3511 = vmatprep.subr.bf16.mxu0 0
  %3512 = vmatpush1.bf16.msra.mxu0 0
  %3513 = vmatprep.subr.bf16.mxu0 0
  %3514 = vmatpush1.bf16.msra.mxu0 0
  %3515 = vmatprep.subr.bf16.mxu0 0
  %3516 = vmatpush1.bf16.msra.mxu0 0
  %3517 = vmatprep.subr.bf16.mxu0 0
  %3518 = vmatpush1.bf16.msra.mxu0 0
  %3519 = vmatprep.subr.bf16.mxu0 0
  %3520 = vmatpush1.bf16.msra.mxu0 0
  %3521 = vmatprep.subr.bf16.mxu0 0
  %3522 = vmatpush1.bf16.msra.mxu0 0
  %3523 = vmatprep.subr.bf16.mxu0 0
  %3524 = vmatpush1.bf16.msra.mxu0 0
  %3525 = vmatprep.subr.bf16.mxu0 0
  %3526 = vmatpush1.bf16.msra.mxu0 0
  %3527 = vmatprep.mubr.bf16.mxu0 0
  %3528 = vmatmul.mubr.bf16.gmra.mrb[0].mxu0 %v3489
  %v3529 = vpop.f32.mrb[0].mxu0
  %v3530 = vadd.f32 %v3464, %v3529
  %v3531 = vpop.f32.mrb[0].mxu0
  %v3532 = vpop.f32.mrb[0].mxu0
  %v3533 = vpop.f32.mrb[0].mxu0
  %3534 = vdwg.mxu0
  %vm3535 = vcmask 80896
  %v3536 = vsel %vm3535, %v3530, -inf
  %3537 = vmax.xlane.f32.xlu0 %v3536
  %v3538 = vpop.xlane.xlu0 %3537
  %v3539 = vsub.f32 %v3530, %v3538
  %v3540 = vmul.f32 %v3539, 1.442695
  %v3541 = vpow.pop %v3540
  %v3542 = vsel %vm3535, %v3541, 0.0
  %3543 = vadd.xlane.f32.xlu0 %v3542
  %v3544 = vpop.xlane.xlu0 %3543
  %v3545 = vlog2.pop %v3544
  %v3546 = vmul.f32 %v3545, 0.6931472
  %v3547 = vadd.f32 %v3538, %v3546
  %v3548 = vsub.f32 %v3530, %v3547
  %3549 = vst.msk [vmem:[%s9] sm:$0xff] %vm3535, %v3548
  // Predicated region
  $region38: #{nnet_forward.1} parent=0 // pred_check
    _
  $region39: #{nnet_forward.1} parent=0 // pred_check_branch
    %3551 = sbr.rel (0) target = $region41
  $region40: #{nnet_forward.1} parent=0 // pred_region
    _
  $region41: #{nnet_forward.1} parent=0 // pred_fallthru
    _
  // Predicated region
  $region42: #{nnet_forward.1} parent=0 // pred_check
    _
  $region43: #{nnet_forward.1} parent=0 // pred_check_branch
    %3553 = sbr.rel (0) target = $region45
  $region44: #{nnet_forward.1} parent=0 // pred_region
    _
  $region45: #{nnet_forward.1} parent=0 // pred_fallthru
    _

</llo_original>
